<compile_context>
chip_gen: v7x
topology: tpu7x:2x2x1
jax: 0.10.0
libtpu: 0.0.40
codegen_flags: <defaults>
</compile_context>

<pallas_src>
import functools
import math

import numpy as np
import jax
import jax.numpy as jnp
from jax.experimental import pallas as pl
from jax.experimental.pallas import tpu as pltpu


# ---------------------------------------------------------------------------
# Host-side constant matrices (built once, cached; fold into jit constants)
# ---------------------------------------------------------------------------

@functools.lru_cache(maxsize=None)
def _tile_upsample_matrix(tile_h, w_out, w_in, factor):
    """E[p, q] = 1 iff tile-local output token p reads tile-local input token q
    under nearest-neighbour upsampling by `factor` (same for every row tile)."""
    rows = np.arange(tile_h * w_out)
    ph, pw = rows // w_out, rows % w_out
    src = (ph // factor) * w_in + (pw // factor)
    e = np.zeros((tile_h * w_out, (tile_h // factor) * w_in), np.float32)
    e[rows, src] = 1.0
    return e


@functools.lru_cache(maxsize=None)
def _slab_expand_matrix(n_slabs, slab_width):
    """(n_slabs, n_slabs*slab_width) matrix broadcasting per-level softmax
    weights onto their output channel slab."""
    e = np.zeros((n_slabs, n_slabs * slab_width), np.float32)
    for k in range(n_slabs):
        e[k, k * slab_width:(k + 1) * slab_width] = 1.0
    return e


def _pick_tile_rows(h2, w2, w0, w1, target_tokens=1024):
    """Smallest valid row tile (multiple of 4 output rows) with >= target
    tokens whose blocks keep second-minor dims multiples of 8; fallback: whole
    map (full-extent blocks are always valid)."""
    for th in range(4, h2, 4):
        if h2 % th:
            continue
        if (th * w2) % 8 or ((th // 4) * w0) % 8 or ((th // 2) * w1) % 8:
            continue
        if th * w2 >= target_tokens:
            return th
    return h2


# ---------------------------------------------------------------------------
# Fused Pallas kernel: one (batch, row-tile) of the ASFF level-2 forward
# ---------------------------------------------------------------------------

def _asff_row_tile_kernel(x0_ref, x1_ref, x2_ref, e0_ref, e1_ref,
                          cw0_ref, cb0_ref, cw1_ref, cb1_ref,
                          wlw_ref, wlb_ref, wlvw_ref, wlvb_ref,
                          gate_ref, o_ref):
    f32, bf16 = jnp.float32, jnp.bfloat16

    # --- 1x1 compress conv + folded BN + ReLU6 on the pre-upsample rows -----
    l0c = jnp.clip(jnp.dot(x0_ref[...], cw0_ref[...],
                           preferred_element_type=f32) + cb0_ref[...], 0.0, 6.0)
    l1c = jnp.clip(jnp.dot(x1_ref[...], cw1_ref[...],
                           preferred_element_type=f32) + cb1_ref[...], 0.0, 6.0)

    # --- nearest-neighbour upsample: tiny tile-local 0/1 selection matmuls --
    l0u = jnp.dot(e0_ref[...], l0c.astype(bf16), preferred_element_type=f32)
    l1u = jnp.dot(e1_ref[...], l1c.astype(bf16), preferred_element_type=f32)
    l2 = x2_ref[...].astype(f32)

    # --- lane-dense concat: feeds the fused conv *and* the final store ------
    lcat = jnp.concatenate([l0u, l1u, l2], axis=-1)              # (T, 192) f32

    # --- 3 weight_level convs as ONE block-diagonal matmul, then 48->3 ------
    wv = jnp.clip(jnp.dot(lcat.astype(bf16), wlw_ref[...],
                          preferred_element_type=f32) + wlb_ref[...], 0.0, 6.0)
    logits = jnp.dot(wv, wlvw_ref[...],
                     preferred_element_type=f32) + wlvb_ref[...]  # (T, 3)

    # --- softmax over the 3 levels -------------------------------------------
    m = jnp.max(logits, axis=-1, keepdims=True)
    e = jnp.exp(logits - m)
    lw = e / jnp.sum(e, axis=-1, keepdims=True)                   # (T, 3)

    # --- per-pixel gate over all 192 lanes (SE scales pre-folded in) --------
    gate = jnp.dot(lw, gate_ref[...], preferred_element_type=f32)  # (T, 192)

    # --- single lane-dense store of the fused output row tile ---------------
    o_ref[...] = lcat * gate


# ---------------------------------------------------------------------------
# Wrapper: layout transforms + hoisted SE scales + pallas_call
# ---------------------------------------------------------------------------

def asff_level2_forward(x0_nchw, x1_nchw, x2_nchw, p):
    B, c0, h0, w0 = x0_nchw.shape
    _, c1, h1, w1 = x1_nchw.shape
    _, ci, h2, w2 = x2_nchw.shape
    assert (h2, w2) == (4 * h0, 4 * w0) and (h2, w2) == (2 * h1, 2 * w1)
    hw = h2 * w2
    cc = p['wl_w'].shape[-1]
    bf16 = jnp.bfloat16

    def tokens(x):  # NCHW -> (B, H*W, C)
        b, c, h, w = x.shape
        return jnp.transpose(x, (0, 2, 3, 1)).reshape(b, h * w, c)

    x0t, x1t, x2t = tokens(x0_nchw), tokens(x1_nchw), tokens(x2_nchw)

    # --- SE scales: global spatial means (exact pre-upsample), hoisted so the
    #     means stay global under row tiling ---------------------------------
    m0 = jnp.mean(jnp.clip(x0t @ p['cw0'] + p['cb0'], 0.0, 6.0), axis=1)
    m1 = jnp.mean(jnp.clip(x1t @ p['cw1'] + p['cb1'], 0.0, 6.0), axis=1)
    m2 = jnp.mean(x2t, axis=1)

    def se(m, i):
        return jax.nn.sigmoid(jnp.maximum(m @ p['se_w1'][i], 0.0) @ p['se_w2'][i])

    scat = jnp.concatenate([se(m0, 0), se(m1, 1), se(m2, 2)], axis=-1)  # (B,3ci)
    gate_w = jnp.asarray(_slab_expand_matrix(3, ci))[None] * scat[:, None, :]

    # --- block-diagonal weight_level weights (one fused 192->48 matmul) -----
    zcc = jnp.zeros((ci, cc), p['wl_w'].dtype)
    wl_bd = jnp.concatenate(
        [jnp.concatenate([p['wl_w'][k] if j == k else zcc for j in range(3)],
                         axis=1) for k in range(3)], axis=0)      # (3ci, 3cc)
    wl_b = p['wl_b'].reshape(1, 3 * cc)

    # --- row tiling + tile-local upsample selection matrices ----------------
    th = _pick_tile_rows(h2, w2, w0, w1)
    n_tiles = h2 // th
    t0, t1, tt = (th // 4) * w0, (th // 2) * w1, th * w2
    e0 = jnp.asarray(_tile_upsample_matrix(th, w2, w0, 4), bf16)   # (tt, t0)
    e1 = jnp.asarray(_tile_upsample_matrix(th, w2, w1, 2), bf16)   # (tt, t1)

    const = lambda b, t: (0, 0)
    out = pl.pallas_call(
        _asff_row_tile_kernel,
        out_shape=jax.ShapeDtypeStruct((B, hw, 3 * ci), jnp.float32),
        grid=(B, n_tiles),
        in_specs=[
            pl.BlockSpec((None, t0, c0), lambda b, t: (b, t, 0)),
            pl.BlockSpec((None, t1, c1), lambda b, t: (b, t, 0)),
            pl.BlockSpec((None, tt, ci), lambda b, t: (b, t, 0)),
            # TODO(synk): pipeline_mode=pl.Buffered(1) on the grid-invariant
            # operands below would single-buffer them and save a little VMEM.
            pl.BlockSpec((tt, t0), const),
            pl.BlockSpec((tt, t1), const),
            pl.BlockSpec((c0, ci), const),
            pl.BlockSpec((1, ci), const),
            pl.BlockSpec((c1, ci), const),
            pl.BlockSpec((1, ci), const),
            pl.BlockSpec((3 * ci, 3 * cc), const),
            pl.BlockSpec((1, 3 * cc), const),
            pl.BlockSpec((3 * cc, 3), const),
            pl.BlockSpec((1, 3), const),
            pl.BlockSpec((None, 3, 3 * ci), lambda b, t: (b, 0, 0)),
        ],
        out_specs=pl.BlockSpec((None, tt, 3 * ci), lambda b, t: (b, t, 0)),
        compiler_params=pltpu.CompilerParams(
            dimension_semantics=("parallel", "parallel"),
            vmem_limit_bytes=64 * 1024 * 1024),
    )(x0t.astype(bf16), x1t.astype(bf16), x2t.astype(bf16), e0, e1,
      p['cw0'].astype(bf16), p['cb0'].reshape(1, ci),
      p['cw1'].astype(bf16), p['cb1'].reshape(1, ci),
      wl_bd.astype(bf16), wl_b, p['wlv_w'], p['wlv_b'].reshape(1, 3),
      gate_w)

    out = out.reshape(B, h2, w2, 3 * ci)
    return jnp.transpose(out, (0, 3, 1, 2))                       # NCHW


# ---------------------------------------------------------------------------
# Pure-JAX reference (matches the PyTorch module semantics, f32)
# ---------------------------------------------------------------------------

def asff_level2_reference(x0_nchw, x1_nchw, x2_nchw, p):
    def nhwc(x):
        return jnp.transpose(x, (0, 2, 3, 1))

    def conv_bn_relu6(x, w, b):
        return jnp.clip(jnp.einsum('bhwc,cd->bhwd', x, w) + b, 0.0, 6.0)

    def up(x, f):
        return jnp.repeat(jnp.repeat(x, f, axis=1), f, axis=2)

    l0 = up(conv_bn_relu6(nhwc(x0_nchw), p['cw0'], p['cb0']), 4)
    l1 = up(conv_bn_relu6(nhwc(x1_nchw), p['cw1'], p['cb1']), 2)
    l2 = nhwc(x2_nchw)

    wv = [conv_bn_relu6(l, p['wl_w'][i], p['wl_b'][i])
          for i, l in enumerate((l0, l1, l2))]
    wcat = jnp.concatenate(wv, axis=-1)
    logits = jnp.einsum('bhwc,cd->bhwd', wcat, p['wlv_w']) + p['wlv_b']
    lw = jax.nn.softmax(logits, axis=-1)

    def se(x, i):
        m = jnp.mean(x, axis=(1, 2))
        s = jax.nn.sigmoid(jnp.maximum(m @ p['se_w1'][i], 0.0) @ p['se_w2'][i])
        return s[:, None, None, :]

    out = jnp.concatenate([l0 * se(l0, 0) * lw[..., 0:1],
                           l1 * se(l1, 1) * lw[..., 1:2],
                           l2 * se(l2, 2) * lw[..., 2:3]], axis=-1)
    return jnp.transpose(out, (0, 3, 1, 2))


# ---------------------------------------------------------------------------
# Deterministic parameter init (BN folded into the 1x1 convs, inference mode)
# ---------------------------------------------------------------------------

def init_conv_bn(key, cin, cout):
    k = jax.random.split(key, 5)
    w = jax.random.normal(k[0], (cout, cin), jnp.float32) / math.sqrt(cin)
    gamma = 1.0 + 0.1 * jax.random.normal(k[1], (cout,), jnp.float32)
    beta = 0.1 * jax.random.normal(k[2], (cout,), jnp.float32)
    mean = 0.1 * jax.random.normal(k[3], (cout,), jnp.float32)
    var = 1.0 + 0.1 * jnp.abs(jax.random.normal(k[4], (cout,), jnp.float32))
    scale = gamma / jnp.sqrt(var + 1e-5)
    w_eff = (w * scale[:, None]).T            # (cin, cout), BN folded
    b_eff = beta - mean * scale               # (cout,)
    return w_eff, b_eff


if __name__ == "__main__":
    expansion = 1
    dim = [256 * expansion, 128 * expansion, 64 * expansion]
    inter_dim = dim[2]          # level = 2
    compress_c = 16             # rfb = False
    reduction = 16
    cr = inter_dim // reduction

    key = jax.random.PRNGKey(0)
    ks = jax.random.split(key, 20)

    cw0, cb0 = init_conv_bn(ks[0], dim[0], inter_dim)
    cw1, cb1 = init_conv_bn(ks[1], dim[1], inter_dim)
    wl = [init_conv_bn(ks[2 + i], inter_dim, compress_c) for i in range(3)]
    wl_w = jnp.stack([w for w, _ in wl])              # (3, 64, 16)
    wl_b = jnp.stack([b for _, b in wl])              # (3, 16)
    wlv_w = jax.random.normal(ks[5], (compress_c * 3, 3),
                              jnp.float32) / math.sqrt(compress_c * 3)
    wlv_b = 0.1 * jax.random.normal(ks[6], (3,), jnp.float32)
    se_w1 = jnp.stack([jax.random.normal(ks[7 + i], (inter_dim, cr),
                                         jnp.float32) / math.sqrt(inter_dim)
                       for i in range(3)])            # (3, 64, 4)
    se_w2 = jnp.stack([jax.random.normal(ks[10 + i], (cr, inter_dim),
                                         jnp.float32) / math.sqrt(cr)
                       for i in range(3)])            # (3, 4, 64)

    params = dict(cw0=cw0, cb0=cb0, cw1=cw1, cb1=cb1,
                  wl_w=wl_w, wl_b=wl_b, wlv_w=wlv_w, wlv_b=wlv_b,
                  se_w1=se_w1, se_w2=se_w2)

    B, H2, W2 = 2, 16, 16
    x_level_0 = jax.random.normal(ks[13], (B, dim[0], H2 // 4, W2 // 4), jnp.float32)
    x_level_1 = jax.random.normal(ks[14], (B, dim[1], H2 // 2, W2 // 2), jnp.float32)
    x_level_2 = jax.random.normal(ks[15], (B, dim[2], H2, W2), jnp.float32)

    fwd = jax.jit(asff_level2_forward)
    out = jax.block_until_ready(fwd(x_level_0, x_level_1, x_level_2, params))
    ref = jax.block_until_ready(
        asff_level2_reference(x_level_0, x_level_1, x_level_2, params))

    assert out.shape == (B, 3 * inter_dim, H2, W2), out.shape
    max_err = float(jnp.max(jnp.abs(out - ref)))
    # Tolerance accommodates bf16 MXU operands (f32 accumulation).
    assert jnp.allclose(out, ref, atol=3e-2, rtol=3e-2), max_err
    print("KERNEL_OK")
</pallas_src>

<mosaic_0001>
module attributes {stable_mosaic.version = 11 : i64} {
  func.func @_asff_row_tile_kernel(%arg0: i32, %arg1: i32, %arg2: memref<1x16x256xbf16, #tpu.memory_space<vmem>>, %arg3: memref<1x64x128xbf16, #tpu.memory_space<vmem>>, %arg4: memref<1x256x64xbf16, #tpu.memory_space<vmem>>, %arg5: memref<256x16xbf16, #tpu.memory_space<vmem>>, %arg6: memref<256x64xbf16, #tpu.memory_space<vmem>>, %arg7: memref<256x64xbf16, #tpu.memory_space<vmem>>, %arg8: memref<1x64xf32, #tpu.memory_space<vmem>>, %arg9: memref<128x64xbf16, #tpu.memory_space<vmem>>, %arg10: memref<1x64xf32, #tpu.memory_space<vmem>>, %arg11: memref<192x48xbf16, #tpu.memory_space<vmem>>, %arg12: memref<1x48xf32, #tpu.memory_space<vmem>>, %arg13: memref<48x3xf32, #tpu.memory_space<vmem>>, %arg14: memref<1x3xf32, #tpu.memory_space<vmem>>, %arg15: memref<1x3x192xf32, #tpu.memory_space<vmem>>, %arg16: memref<1x256x192xf32, #tpu.memory_space<vmem>>) attributes {dimension_semantics = [#tpu.dimension_semantics<parallel>, #tpu.dimension_semantics<parallel>], iteration_bounds = array<i64: 2, 1>, scalar_prefetch = 0 : i64, scratch_operands = 0 : i64, tpu.core_type = #tpu.core_type<tc>, window_params = [{transform_indices = @transform_0, window_bounds = array<i64: 1, 16, 256>}, {transform_indices = @transform_1, window_bounds = array<i64: 1, 64, 128>}, {transform_indices = @transform_2, window_bounds = array<i64: 1, 256, 64>}, {pipeline_mode = #tpu.pipeline_mode<synchronous>, transform_indices = @transform_3, window_bounds = array<i64: 256, 16>}, {pipeline_mode = #tpu.pipeline_mode<synchronous>, transform_indices = @transform_4, window_bounds = array<i64: 256, 64>}, {pipeline_mode = #tpu.pipeline_mode<synchronous>, transform_indices = @transform_5, window_bounds = array<i64: 256, 64>}, {pipeline_mode = #tpu.pipeline_mode<synchronous>, transform_indices = @transform_6, window_bounds = array<i64: 1, 64>}, {pipeline_mode = #tpu.pipeline_mode<synchronous>, transform_indices = @transform_7, window_bounds = array<i64: 128, 64>}, {pipeline_mode = #tpu.pipeline_mode<synchronous>, transform_indices = @transform_8, window_bounds = array<i64: 1, 64>}, {pipeline_mode = #tpu.pipeline_mode<synchronous>, transform_indices = @transform_9, window_bounds = array<i64: 192, 48>}, {pipeline_mode = #tpu.pipeline_mode<synchronous>, transform_indices = @transform_10, window_bounds = array<i64: 1, 48>}, {pipeline_mode = #tpu.pipeline_mode<synchronous>, transform_indices = @transform_11, window_bounds = array<i64: 48, 3>}, {pipeline_mode = #tpu.pipeline_mode<synchronous>, transform_indices = @transform_12, window_bounds = array<i64: 1, 3>}, {transform_indices = @transform_13, window_bounds = array<i64: 1, 3, 192>}, {transform_indices = @transform_14, window_bounds = array<i64: 1, 256, 192>}]} {
    %c0 = arith.constant 0 : index
    %c0_0 = arith.constant 0 : index
    %c0_1 = arith.constant 0 : index
    %0 = vector.load %arg2[%c0, %c0_0, %c0_1] : memref<1x16x256xbf16, #tpu.memory_space<vmem>>, vector<1x16x256xbf16>
    %1 = vector.shape_cast %0 : vector<1x16x256xbf16> to vector<16x256xbf16>
    %c0_2 = arith.constant 0 : index
    %c0_3 = arith.constant 0 : index
    %2 = vector.load %arg7[%c0_2, %c0_3] : memref<256x64xbf16, #tpu.memory_space<vmem>>, vector<256x64xbf16>
    %cst = arith.constant dense<0.000000e+00> : vector<16x64xf32>
    %3 = tpu.matmul %1, %2, %cst {dimension_numbers = #tpu.dot_dimension_numbers<[1], [0], [0], [1], [0, 0, 1, 1], [], []>} : vector<16x256xbf16>, vector<256x64xbf16>, vector<16x64xf32> -> vector<16x64xf32>
    %c0_4 = arith.constant 0 : index
    %c0_5 = arith.constant 0 : index
    %4 = vector.load %arg8[%c0_4, %c0_5] : memref<1x64xf32, #tpu.memory_space<vmem>>, vector<1x64xf32>
    %5 = vector.broadcast %4 : vector<1x64xf32> to vector<16x64xf32>
    %6 = arith.addf %3, %5 : vector<16x64xf32>
    %cst_6 = arith.constant 0.000000e+00 : f32
    %cst_7 = arith.constant 6.000000e+00 : f32
    %7 = vector.broadcast %cst_6 : f32 to vector<16x64xf32>
    %8 = arith.maximumf %7, %6 : vector<16x64xf32>
    %9 = vector.broadcast %cst_7 : f32 to vector<16x64xf32>
    %10 = arith.minimumf %9, %8 : vector<16x64xf32>
    %c0_8 = arith.constant 0 : index
    %c0_9 = arith.constant 0 : index
    %c0_10 = arith.constant 0 : index
    %11 = vector.load %arg3[%c0_8, %c0_9, %c0_10] : memref<1x64x128xbf16, #tpu.memory_space<vmem>>, vector<1x64x128xbf16>
    %12 = vector.shape_cast %11 : vector<1x64x128xbf16> to vector<64x128xbf16>
    %c0_11 = arith.constant 0 : index
    %c0_12 = arith.constant 0 : index
    %13 = vector.load %arg9[%c0_11, %c0_12] : memref<128x64xbf16, #tpu.memory_space<vmem>>, vector<128x64xbf16>
    %cst_13 = arith.constant dense<0.000000e+00> : vector<64x64xf32>
    %14 = tpu.matmul %12, %13, %cst_13 {dimension_numbers = #tpu.dot_dimension_numbers<[1], [0], [0], [1], [0, 0, 1, 1], [], []>} : vector<64x128xbf16>, vector<128x64xbf16>, vector<64x64xf32> -> vector<64x64xf32>
    %c0_14 = arith.constant 0 : index
    %c0_15 = arith.constant 0 : index
    %15 = vector.load %arg10[%c0_14, %c0_15] : memref<1x64xf32, #tpu.memory_space<vmem>>, vector<1x64xf32>
    %16 = vector.broadcast %15 : vector<1x64xf32> to vector<64x64xf32>
    %17 = arith.addf %14, %16 : vector<64x64xf32>
    %cst_16 = arith.constant 0.000000e+00 : f32
    %cst_17 = arith.constant 6.000000e+00 : f32
    %18 = vector.broadcast %cst_16 : f32 to vector<64x64xf32>
    %19 = arith.maximumf %18, %17 : vector<64x64xf32>
    %20 = vector.broadcast %cst_17 : f32 to vector<64x64xf32>
    %21 = arith.minimumf %20, %19 : vector<64x64xf32>
    %c0_18 = arith.constant 0 : index
    %c0_19 = arith.constant 0 : index
    %22 = vector.load %arg5[%c0_18, %c0_19] : memref<256x16xbf16, #tpu.memory_space<vmem>>, vector<256x16xbf16>
    %23 = arith.truncf %10 : vector<16x64xf32> to vector<16x64xbf16>
    %cst_20 = arith.constant dense<0.000000e+00> : vector<256x64xf32>
    %24 = tpu.matmul %22, %23, %cst_20 {dimension_numbers = #tpu.dot_dimension_numbers<[1], [0], [0], [1], [0, 0, 1, 1], [], []>} : vector<256x16xbf16>, vector<16x64xbf16>, vector<256x64xf32> -> vector<256x64xf32>
    %c0_21 = arith.constant 0 : index
    %c0_22 = arith.constant 0 : index
    %25 = vector.load %arg6[%c0_21, %c0_22] : memref<256x64xbf16, #tpu.memory_space<vmem>>, vector<256x64xbf16>
    %26 = arith.truncf %21 : vector<64x64xf32> to vector<64x64xbf16>
    %cst_23 = arith.constant dense<0.000000e+00> : vector<256x64xf32>
    %27 = tpu.matmul %25, %26, %cst_23 {dimension_numbers = #tpu.dot_dimension_numbers<[1], [0], [0], [1], [0, 0, 1, 1], [], []>} : vector<256x64xbf16>, vector<64x64xbf16>, vector<256x64xf32> -> vector<256x64xf32>
    %c0_24 = arith.constant 0 : index
    %c0_25 = arith.constant 0 : index
    %c0_26 = arith.constant 0 : index
    %28 = vector.load %arg4[%c0_24, %c0_25, %c0_26] : memref<1x256x64xbf16, #tpu.memory_space<vmem>>, vector<1x256x64xbf16>
    %29 = vector.shape_cast %28 : vector<1x256x64xbf16> to vector<256x64xbf16>
    %30 = arith.extf %29 : vector<256x64xbf16> to vector<256x64xf32>
    %31 = tpu.concatenate %24, %27, %30 in 1 : vector<256x64xf32>, vector<256x64xf32>, vector<256x64xf32> -> vector<256x192xf32>
    %32 = arith.truncf %31 : vector<256x192xf32> to vector<256x192xbf16>
    %c0_27 = arith.constant 0 : index
    %c0_28 = arith.constant 0 : index
    %33 = vector.load %arg11[%c0_27, %c0_28] : memref<192x48xbf16, #tpu.memory_space<vmem>>, vector<192x48xbf16>
    %cst_29 = arith.constant dense<0.000000e+00> : vector<256x48xf32>
    %34 = tpu.matmul %32, %33, %cst_29 {dimension_numbers = #tpu.dot_dimension_numbers<[1], [0], [0], [1], [0, 0, 1, 1], [], []>} : vector<256x192xbf16>, vector<192x48xbf16>, vector<256x48xf32> -> vector<256x48xf32>
    %c0_30 = arith.constant 0 : index
    %c0_31 = arith.constant 0 : index
    %35 = vector.load %arg12[%c0_30, %c0_31] : memref<1x48xf32, #tpu.memory_space<vmem>>, vector<1x48xf32>
    %36 = vector.broadcast %35 : vector<1x48xf32> to vector<256x48xf32>
    %37 = arith.addf %34, %36 : vector<256x48xf32>
    %cst_32 = arith.constant 0.000000e+00 : f32
    %cst_33 = arith.constant 6.000000e+00 : f32
    %38 = vector.broadcast %cst_32 : f32 to vector<256x48xf32>
    %39 = arith.maximumf %38, %37 : vector<256x48xf32>
    %40 = vector.broadcast %cst_33 : f32 to vector<256x48xf32>
    %41 = arith.minimumf %40, %39 : vector<256x48xf32>
    %c0_34 = arith.constant 0 : index
    %c0_35 = arith.constant 0 : index
    %42 = vector.load %arg13[%c0_34, %c0_35] : memref<48x3xf32, #tpu.memory_space<vmem>>, vector<48x3xf32>
    %cst_36 = arith.constant dense<0.000000e+00> : vector<256x3xf32>
    %43 = tpu.matmul %41, %42, %cst_36 {dimension_numbers = #tpu.dot_dimension_numbers<[1], [0], [0], [1], [0, 0, 1, 1], [], []>} : vector<256x48xf32>, vector<48x3xf32>, vector<256x3xf32> -> vector<256x3xf32>
    %c0_37 = arith.constant 0 : index
    %c0_38 = arith.constant 0 : index
    %44 = vector.load %arg14[%c0_37, %c0_38] : memref<1x3xf32, #tpu.memory_space<vmem>>, vector<1x3xf32>
    %45 = vector.broadcast %44 : vector<1x3xf32> to vector<256x3xf32>
    %46 = arith.addf %43, %45 : vector<256x3xf32>
    %cst_39 = arith.constant dense<0xFF800000> : vector<256xf32>
    %47 = vector.multi_reduction <maximumf>, %46, %cst_39 [1] : vector<256x3xf32> to vector<256xf32>
    %48 = vector.shape_cast %47 : vector<256xf32> to vector<256x1xf32>
    %49 = vector.broadcast %48 : vector<256x1xf32> to vector<256x3xf32>
    %50 = arith.subf %46, %49 : vector<256x3xf32>
    %51 = math.exp %50 : vector<256x3xf32>
    %cst_40 = arith.constant dense<0.000000e+00> : vector<256xf32>
    %52 = vector.multi_reduction <add>, %51, %cst_40 [1] : vector<256x3xf32> to vector<256xf32>
    %53 = vector.shape_cast %52 : vector<256xf32> to vector<256x1xf32>
    %54 = vector.broadcast %53 : vector<256x1xf32> to vector<256x3xf32>
    %55 = arith.divf %51, %54 : vector<256x3xf32>
    %c0_41 = arith.constant 0 : index
    %c0_42 = arith.constant 0 : index
    %c0_43 = arith.constant 0 : index
    %56 = vector.load %arg15[%c0_41, %c0_42, %c0_43] : memref<1x3x192xf32, #tpu.memory_space<vmem>>, vector<1x3x192xf32>
    %57 = vector.shape_cast %56 : vector<1x3x192xf32> to vector<3x192xf32>
    %cst_44 = arith.constant dense<0.000000e+00> : vector<256x192xf32>
    %58 = tpu.matmul %55, %57, %cst_44 {dimension_numbers = #tpu.dot_dimension_numbers<[1], [0], [0], [1], [0, 0, 1, 1], [], []>} : vector<256x3xf32>, vector<3x192xf32>, vector<256x192xf32> -> vector<256x192xf32>
    %59 = arith.mulf %31, %58 : vector<256x192xf32>
    %c0_45 = arith.constant 0 : index
    %c0_46 = arith.constant 0 : index
    %c0_47 = arith.constant 0 : index
    %60 = vector.load %arg16[%c0_45, %c0_46, %c0_47] : memref<1x256x192xf32, #tpu.memory_space<vmem>>, vector<1x256x192xf32>
    %61 = vector.shape_cast %60 : vector<1x256x192xf32> to vector<256x192xf32>
    %62 = vector.shape_cast %59 : vector<256x192xf32> to vector<1x256x192xf32>
    tpu.vector_store %arg16[%c0_45, %c0_46, %c0_47], %62 {strides = array<i32>} : memref<1x256x192xf32, #tpu.memory_space<vmem>>, vector<1x256x192xf32>,
    return
  }
  func.func @transform_0(%arg0: i32, %arg1: i32) -> (i32, i32, i32) {
    %c0_i32 = arith.constant 0 : i32
    %c0_i32_0 = arith.constant 0 : i32
    return %arg0, %arg1, %c0_i32 : i32, i32, i32
  }
  func.func @transform_1(%arg0: i32, %arg1: i32) -> (i32, i32, i32) {
    %c0_i32 = arith.constant 0 : i32
    %c0_i32_0 = arith.constant 0 : i32
    return %arg0, %arg1, %c0_i32 : i32, i32, i32
  }
  func.func @transform_2(%arg0: i32, %arg1: i32) -> (i32, i32, i32) {
    %c0_i32 = arith.constant 0 : i32
    %c0_i32_0 = arith.constant 0 : i32
    return %arg0, %arg1, %c0_i32 : i32, i32, i32
  }
  func.func @transform_3(%arg0: i32, %arg1: i32) -> (i32, i32) {
    %c0_i32 = arith.constant 0 : i32
    %c0_i32_0 = arith.constant 0 : i32
    %c0_i32_1 = arith.constant 0 : i32
    return %c0_i32, %c0_i32_0 : i32, i32
  }
  func.func @transform_4(%arg0: i32, %arg1: i32) -> (i32, i32) {
    %c0_i32 = arith.constant 0 : i32
    %c0_i32_0 = arith.constant 0 : i32
    %c0_i32_1 = arith.constant 0 : i32
    return %c0_i32, %c0_i32_0 : i32, i32
  }
  func.func @transform_5(%arg0: i32, %arg1: i32) -> (i32, i32) {
    %c0_i32 = arith.constant 0 : i32
    %c0_i32_0 = arith.constant 0 : i32
    %c0_i32_1 = arith.constant 0 : i32
    return %c0_i32, %c0_i32_0 : i32, i32
  }
  func.func @transform_6(%arg0: i32, %arg1: i32) -> (i32, i32) {
    %c0_i32 = arith.constant 0 : i32
    %c0_i32_0 = arith.constant 0 : i32
    %c0_i32_1 = arith.constant 0 : i32
    return %c0_i32, %c0_i32_0 : i32, i32
  }
  func.func @transform_7(%arg0: i32, %arg1: i32) -> (i32, i32) {
    %c0_i32 = arith.constant 0 : i32
    %c0_i32_0 = arith.constant 0 : i32
    %c0_i32_1 = arith.constant 0 : i32
    return %c0_i32, %c0_i32_0 : i32, i32
  }
  func.func @transform_8(%arg0: i32, %arg1: i32) -> (i32, i32) {
    %c0_i32 = arith.constant 0 : i32
    %c0_i32_0 = arith.constant 0 : i32
    %c0_i32_1 = arith.constant 0 : i32
    return %c0_i32, %c0_i32_0 : i32, i32
  }
  func.func @transform_9(%arg0: i32, %arg1: i32) -> (i32, i32) {
    %c0_i32 = arith.constant 0 : i32
    %c0_i32_0 = arith.constant 0 : i32
    %c0_i32_1 = arith.constant 0 : i32
    return %c0_i32, %c0_i32_0 : i32, i32
  }
  func.func @transform_10(%arg0: i32, %arg1: i32) -> (i32, i32) {
    %c0_i32 = arith.constant 0 : i32
    %c0_i32_0 = arith.constant 0 : i32
    %c0_i32_1 = arith.constant 0 : i32
    return %c0_i32, %c0_i32_0 : i32, i32
  }
  func.func @transform_11(%arg0: i32, %arg1: i32) -> (i32, i32) {
    %c0_i32 = arith.constant 0 : i32
    %c0_i32_0 = arith.constant 0 : i32
    %c0_i32_1 = arith.constant 0 : i32
    return %c0_i32, %c0_i32_0 : i32, i32
  }
  func.func @transform_12(%arg0: i32, %arg1: i32) -> (i32, i32) {
    %c0_i32 = arith.constant 0 : i32
    %c0_i32_0 = arith.constant 0 : i32
    %c0_i32_1 = arith.constant 0 : i32
    return %c0_i32, %c0_i32_0 : i32, i32
  }
  func.func @transform_13(%arg0: i32, %arg1: i32) -> (i32, i32, i32) {
    %c0_i32 = arith.constant 0 : i32
    %c0_i32_0 = arith.constant 0 : i32
    %c0_i32_1 = arith.constant 0 : i32
    return %arg0, %c0_i32, %c0_i32_0 : i32, i32, i32
  }
  func.func @transform_14(%arg0: i32, %arg1: i32) -> (i32, i32, i32) {
    %c0_i32 = arith.constant 0 : i32
    %c0_i32_0 = arith.constant 0 : i32
    return %arg0, %arg1, %c0_i32 : i32, i32, i32
  }
}

</mosaic_0001>

<llo_original>
// kernel: asff_level2_forward.1
$region0: #{asff_level2_forward.1}
  #allocation0 [shape = 'u32[]', space=smem, size = 0x4, offset = 0x4, fixed_abs, tag = 'smem constant byte address 0x4 - core index']
  #allocation1 [shape = 'u32[144,128]{1,0:T(1,128)}', space=vmem, size = 0x12000, scoped, tag = 'internal scratch']
  %s0 = inlined_call_operand.hbm [shape: bf16[2,16,256], index: 0, kind: input, shape index: {}]
  %s1 = inlined_call_operand.hbm [shape: bf16[2,64,128], index: 1, kind: input, shape index: {}]
  %s2 = inlined_call_operand.hbm [shape: bf16[2,256,64], index: 2, kind: input, shape index: {}]
  %s3 = inlined_call_operand.hbm [shape: bf16[256,16], index: 3, kind: input, shape index: {}]
  %s4 = inlined_call_operand.hbm [shape: bf16[256,64], index: 4, kind: input, shape index: {}]
  %s5 = inlined_call_operand.hbm [shape: bf16[256,64], index: 5, kind: input, shape index: {}]
  %s6 = inlined_call_operand.hbm [shape: f32[1,64], index: 6, kind: input, shape index: {}]
  %s7 = inlined_call_operand.hbm [shape: bf16[128,64], index: 7, kind: input, shape index: {}]
  %s8 = inlined_call_operand.hbm [shape: f32[1,64], index: 8, kind: input, shape index: {}]
  %s9 = inlined_call_operand.hbm [shape: bf16[192,48], index: 9, kind: input, shape index: {}]
  %s10 = inlined_call_operand.hbm [shape: f32[1,48], index: 10, kind: input, shape index: {}]
  %s11 = inlined_call_operand.hbm [shape: f32[48,3], index: 11, kind: input, shape index: {}]
  %s12 = inlined_call_operand.hbm [shape: f32[1,3], index: 12, kind: input, shape index: {}]
  %s13 = inlined_call_operand.hbm [shape: f32[2,3,192], index: 13, kind: input, shape index: {}]
  %s14 = inlined_call_operand.hbm [shape: f32[2,256,192], index: 14, kind: output, shape index: {}]
  %s15 = sld [smem:[#allocation0]]
  $region145: #{asff_level2_forward.1} parent=0
    _
  %s17 = ssub.s32 1, %s15
  %s18 = scalar_select 0, %s17, %s15
  $region1: #{asff_level2_forward.1} parent=0
    #allocation2 [shape = 'u8[16384]{0}', space=vmem, size = 0x4000, scoped, tag = 'input window, operand 0']
    #allocation3 [shape = 's32[2]{0}', space=sflag, size = 0x8, scoped, tag = 'scoped memory for asff_level2_forward.1']
    #allocation4 [shape = 's32[2]{0}', space=sflag, size = 0x8, scoped, tag = 'scoped memory for asff_level2_forward.1']
    #allocation5 [shape = 'u8[32768]{0}', space=vmem, size = 0x8000, scoped, tag = 'input window, operand 1']
    #allocation6 [shape = 's32[2]{0}', space=sflag, size = 0x8, scoped, tag = 'scoped memory for asff_level2_forward.1']
    #allocation7 [shape = 'u8[131072]{0}', space=vmem, size = 0x20000, scoped, tag = 'input window, operand 2']
    #allocation8 [shape = 'u8[65536]{0}', space=vmem, size = 0x10000, scoped, tag = 'input window, operand 3, single buffered']
    #allocation9 [shape = 's32[1]{0}', space=sflag, size = 0x4, scoped, tag = 'scoped memory for asff_level2_forward.1']
    #allocation10 [shape = 'u8[65536]{0}', space=vmem, size = 0x10000, scoped, tag = 'input window, operand 4, single buffered']
    #allocation11 [shape = 'u8[65536]{0}', space=vmem, size = 0x10000, scoped, tag = 'input window, operand 5, single buffered']
    #allocation12 [shape = 's32[1]{0}', space=sflag, size = 0x4, scoped, tag = 'scoped memory for asff_level2_forward.1']
    #allocation13 [shape = 'u8[512]{0}', space=vmem, size = 0x400, scoped, tag = 'input window, operand 6, single buffered']
    #allocation14 [shape = 'u8[32768]{0}', space=vmem, size = 0x8000, scoped, tag = 'input window, operand 7, single buffered']
    #allocation15 [shape = 's32[1]{0}', space=sflag, size = 0x4, scoped, tag = 'scoped memory for asff_level2_forward.1']
    #allocation16 [shape = 'u8[512]{0}', space=vmem, size = 0x400, scoped, tag = 'input window, operand 8, single buffered']
    #allocation17 [shape = 'u8[49152]{0}', space=vmem, size = 0xc000, scoped, tag = 'input window, operand 9, single buffered']
    #allocation18 [shape = 's32[1]{0}', space=sflag, size = 0x4, scoped, tag = 'scoped memory for asff_level2_forward.1']
    #allocation19 [shape = 'u8[512]{0}', space=vmem, size = 0x400, scoped, tag = 'input window, operand 10, single buffered']
    #allocation20 [shape = 'u8[24576]{0}', space=vmem, size = 0x6000, scoped, tag = 'input window, operand 11, single buffered']
    #allocation21 [shape = 's32[1]{0}', space=sflag, size = 0x4, scoped, tag = 'scoped memory for asff_level2_forward.1']
    #allocation22 [shape = 'u8[512]{0}', space=vmem, size = 0x400, scoped, tag = 'input window, operand 12, single buffered']
    #allocation23 [shape = 'u8[8192]{0}', space=vmem, size = 0x2000, scoped, tag = 'input window, operand 13']
    #allocation24 [shape = 's32[2]{0}', space=sflag, size = 0x8, scoped, tag = 'scoped memory for asff_level2_forward.1']
    #allocation25 [shape = 'u8[524288]{0}', space=vmem, size = 0x80000, scoped, tag = 'output window, operand 0']
    %19 = vsyncpa [#allocation3], 0
    %s20 = scalar_lea.sflag [#allocation3], 1
    %21 = vsyncpa %s20, 0
    %22 = vsyncpa [#allocation6], 0
    %s23 = scalar_lea.sflag [#allocation6], 1
    %24 = vsyncpa %s23, 0
    %25 = vsyncpa [#allocation9], 0
    %26 = vsyncpa [#allocation12], 0
    %27 = vsyncpa [#allocation15], 0
    %28 = vsyncpa [#allocation18], 0
    %29 = vsyncpa [#allocation21], 0
    %30 = vsyncpa [#allocation24], 0
    %s31 = scalar_lea.sflag [#allocation24], 1
    %32 = vsyncpa %s31, 0
    %33 = vsyncpa [#allocation4], 0
    %s34 = scalar_lea.sflag [#allocation4], 1
    %35 = vsyncpa %s34, 0
    loop: start=0, step=1, limit=4
    $region2: #{asff_level2_forward.1} parent=1 // loop_pre_header
      _
    $region3: #{asff_level2_forward.1} parent=1 // loop_header
      %s37 = sphi 0, %s41
      %p38 = scmp.ge.s32.totalorder %s37, 4
      %s44 = sphi 0, %s56
      %s45 = sphi 0, %s52
      %s46 = sphi 0, %s44
      %s47 = sphi 0, %s45
      %s48 = sphi 0, %s46
      %s49 = sphi 0, %s47
      %s61 = sphi 0, %s63
      %s64 = sphi 0, %s61
      %s65 = sphi 0, %s64
      %s81 = sphi 0, %s65
      %s89 = sphi 0, %s91
      %s92 = sphi 0, %s89
      %s93 = sphi 0, %s92
      %s109 = sphi 0, %s93
      %s117 = sphi 0, %s119
      %s120 = sphi 0, %s117
      %s121 = sphi 0, %s120
      %s137 = sphi 0, %s121
      %s141 = sphi 0, %s141
      %s143 = sphi 0, %s141
      %s144 = sphi 0, %s143
      %s158 = sphi 0, %s144
      %s162 = sphi 0, %s162
      %s164 = sphi 0, %s162
      %s165 = sphi 0, %s164
      %s179 = sphi 0, %s165
      %s183 = sphi 0, %s183
      %s185 = sphi 0, %s183
      %s186 = sphi 0, %s185
      %s200 = sphi 0, %s186
      %s204 = sphi 0, %s204
      %s206 = sphi 0, %s204
      %s207 = sphi 0, %s206
      %s221 = sphi 0, %s207
      %s225 = sphi 0, %s225
      %s227 = sphi 0, %s225
      %s228 = sphi 0, %s227
      %s242 = sphi 0, %s228
      %s246 = sphi 0, %s246
      %s248 = sphi 0, %s246
      %s249 = sphi 0, %s248
      %s263 = sphi 0, %s249
      %s267 = sphi 0, %s267
      %s269 = sphi 0, %s267
      %s270 = sphi 0, %s269
      %s284 = sphi 0, %s270
      %s288 = sphi 0, %s288
      %s290 = sphi 0, %s288
      %s291 = sphi 0, %s290
      %s305 = sphi 0, %s291
      %s309 = sphi 0, %s309
      %s311 = sphi 0, %s309
      %s312 = sphi 0, %s311
      %s326 = sphi 0, %s312
      %s330 = sphi 0, %s330
      %s332 = sphi 0, %s330
      %s333 = sphi 0, %s332
      %s347 = sphi 0, %s333
      %s353 = sphi 0, %s355
      %s356 = sphi 0, %s353
      %s357 = sphi 0, %s356
      %s373 = sphi 0, %s357
      %s381 = sphi 0, %s383
      %s384 = sphi 0, %s381
      %s385 = sphi 0, %s384
      %s401 = sphi 0, %s385
    $region4: #{asff_level2_forward.1} parent=1 // loop_header_branch
      %40 = sbr.rel (%p38) target = $region8
    $region5: #{asff_level2_forward.1} parent=1 // loop_body
      %s42 = ssub.s32 %s37, 1
      %s43 = ssub.s32 %s37, 2
      %s50 = sadd.s32 1, %s45
      %p51 = scmp.ge.s32.totalorder %s50, 1
      %s52 = scalar_select %p51, 0, %s50
      %s53 = sadd.s32 1, %s44
      %s54 = scalar_select %p51, %s53, %s44
      %p55 = scmp.ge.s32.totalorder %s54, 2
      %s56 = scalar_select %p55, 0, %s54
      %s57 = ssub.s32 %s44, %s56
      %s58 = ssub.s32 %s45, %s52
      %s59 = sor.u32 %s57, %s58
      %p60 = scmp.eq.s32.totalorder %s59, 0
      %s62 = sadd.s32 %s61, 1
      %s63 = scalar_select %p60, %s61, %s62
      %p66 = pneg %p60
      %p67 = scmp.eq.s32.totalorder %s37, 1
      %p68 = por %p66, %p67
      %p69 = scmp.ne.s32.totalorder %s61, %s64
      %p70 = scmp.eq.s32.totalorder %s37, 0
      %p71 = por %p69, %p70
      %p72 = scmp.ne.s32.totalorder %s61, %s64
      %p73 = scmp.eq.s32.totalorder %s42, 1
      %p74 = por %p72, %p73
      %p75 = scmp.ne.s32.totalorder %s64, %s65
      %p76 = scmp.eq.s32.totalorder %s42, 0
      %p77 = por %p75, %p76
      %p78 = scmp.ne.s32.totalorder %s64, %s65
      %p79 = scmp.eq.s32.totalorder %s43, 1
      %p80 = por %p78, %p79
      %p82 = scmp.ne.s32.totalorder %s65, %s81
      %p83 = scmp.eq.s32.totalorder %s43, 0
      %p84 = por %p82, %p83
      %s85 = ssub.s32 %s44, %s56
      %s86 = ssub.s32 %s45, %s52
      %s87 = sor.u32 %s85, %s86
      %p88 = scmp.eq.s32.totalorder %s87, 0
      %s90 = sadd.s32 %s89, 1
      %s91 = scalar_select %p88, %s89, %s90
      %p94 = pneg %p88
      %p95 = scmp.eq.s32.totalorder %s37, 1
      %p96 = por %p94, %p95
      %p97 = scmp.ne.s32.totalorder %s89, %s92
      %p98 = scmp.eq.s32.totalorder %s37, 0
      %p99 = por %p97, %p98
      %p100 = scmp.ne.s32.totalorder %s89, %s92
      %p101 = scmp.eq.s32.totalorder %s42, 1
      %p102 = por %p100, %p101
      %p103 = scmp.ne.s32.totalorder %s92, %s93
      %p104 = scmp.eq.s32.totalorder %s42, 0
      %p105 = por %p103, %p104
      %p106 = scmp.ne.s32.totalorder %s92, %s93
      %p107 = scmp.eq.s32.totalorder %s43, 1
      %p108 = por %p106, %p107
      %p110 = scmp.ne.s32.totalorder %s93, %s109
      %p111 = scmp.eq.s32.totalorder %s43, 0
      %p112 = por %p110, %p111
      %s113 = ssub.s32 %s44, %s56
      %s114 = ssub.s32 %s45, %s52
      %s115 = sor.u32 %s113, %s114
      %p116 = scmp.eq.s32.totalorder %s115, 0
      %s118 = sadd.s32 %s117, 1
      %s119 = scalar_select %p116, %s117, %s118
      %p122 = pneg %p116
      %p123 = scmp.eq.s32.totalorder %s37, 1
      %p124 = por %p122, %p123
      %p125 = scmp.ne.s32.totalorder %s117, %s120
      %p126 = scmp.eq.s32.totalorder %s37, 0
      %p127 = por %p125, %p126
      %p128 = scmp.ne.s32.totalorder %s117, %s120
      %p129 = scmp.eq.s32.totalorder %s42, 1
      %p130 = por %p128, %p129
      %p131 = scmp.ne.s32.totalorder %s120, %s121
      %p132 = scmp.eq.s32.totalorder %s42, 0
      %p133 = por %p131, %p132
      %p134 = scmp.ne.s32.totalorder %s120, %s121
      %p135 = scmp.eq.s32.totalorder %s43, 1
      %p136 = por %p134, %p135
      %p138 = scmp.ne.s32.totalorder %s121, %s137
      %p139 = scmp.eq.s32.totalorder %s43, 0
      %p140 = por %p138, %p139
      %s142 = sadd.s32 %s141, 1
      %p145 = scmp.eq.s32.totalorder %s37, 1
      %p146 = scmp.ne.s32.totalorder %s141, %s143
      %p147 = scmp.eq.s32.totalorder %s37, 0
      %p148 = por %p146, %p147
      %p149 = scmp.ne.s32.totalorder %s141, %s143
      %p150 = scmp.eq.s32.totalorder %s42, 1
      %p151 = por %p149, %p150
      %p152 = scmp.ne.s32.totalorder %s143, %s144
      %p153 = scmp.eq.s32.totalorder %s42, 0
      %p154 = por %p152, %p153
      %p155 = scmp.ne.s32.totalorder %s143, %s144
      %p156 = scmp.eq.s32.totalorder %s43, 1
      %p157 = por %p155, %p156
      %p159 = scmp.ne.s32.totalorder %s144, %s158
      %p160 = scmp.eq.s32.totalorder %s43, 0
      %p161 = por %p159, %p160
      %s163 = sadd.s32 %s162, 1
      %p166 = scmp.eq.s32.totalorder %s37, 1
      %p167 = scmp.ne.s32.totalorder %s162, %s164
      %p168 = scmp.eq.s32.totalorder %s37, 0
      %p169 = por %p167, %p168
      %p170 = scmp.ne.s32.totalorder %s162, %s164
      %p171 = scmp.eq.s32.totalorder %s42, 1
      %p172 = por %p170, %p171
      %p173 = scmp.ne.s32.totalorder %s164, %s165
      %p174 = scmp.eq.s32.totalorder %s42, 0
      %p175 = por %p173, %p174
      %p176 = scmp.ne.s32.totalorder %s164, %s165
      %p177 = scmp.eq.s32.totalorder %s43, 1
      %p178 = por %p176, %p177
      %p180 = scmp.ne.s32.totalorder %s165, %s179
      %p181 = scmp.eq.s32.totalorder %s43, 0
      %p182 = por %p180, %p181
      %s184 = sadd.s32 %s183, 1
      %p187 = scmp.eq.s32.totalorder %s37, 1
      %p188 = scmp.ne.s32.totalorder %s183, %s185
      %p189 = scmp.eq.s32.totalorder %s37, 0
      %p190 = por %p188, %p189
      %p191 = scmp.ne.s32.totalorder %s183, %s185
      %p192 = scmp.eq.s32.totalorder %s42, 1
      %p193 = por %p191, %p192
      %p194 = scmp.ne.s32.totalorder %s185, %s186
      %p195 = scmp.eq.s32.totalorder %s42, 0
      %p196 = por %p194, %p195
      %p197 = scmp.ne.s32.totalorder %s185, %s186
      %p198 = scmp.eq.s32.totalorder %s43, 1
      %p199 = por %p197, %p198
      %p201 = scmp.ne.s32.totalorder %s186, %s200
      %p202 = scmp.eq.s32.totalorder %s43, 0
      %p203 = por %p201, %p202
      %s205 = sadd.s32 %s204, 1
      %p208 = scmp.eq.s32.totalorder %s37, 1
      %p209 = scmp.ne.s32.totalorder %s204, %s206
      %p210 = scmp.eq.s32.totalorder %s37, 0
      %p211 = por %p209, %p210
      %p212 = scmp.ne.s32.totalorder %s204, %s206
      %p213 = scmp.eq.s32.totalorder %s42, 1
      %p214 = por %p212, %p213
      %p215 = scmp.ne.s32.totalorder %s206, %s207
      %p216 = scmp.eq.s32.totalorder %s42, 0
      %p217 = por %p215, %p216
      %p218 = scmp.ne.s32.totalorder %s206, %s207
      %p219 = scmp.eq.s32.totalorder %s43, 1
      %p220 = por %p218, %p219
      %p222 = scmp.ne.s32.totalorder %s207, %s221
      %p223 = scmp.eq.s32.totalorder %s43, 0
      %p224 = por %p222, %p223
      %s226 = sadd.s32 %s225, 1
      %p229 = scmp.eq.s32.totalorder %s37, 1
      %p230 = scmp.ne.s32.totalorder %s225, %s227
      %p231 = scmp.eq.s32.totalorder %s37, 0
      %p232 = por %p230, %p231
      %p233 = scmp.ne.s32.totalorder %s225, %s227
      %p234 = scmp.eq.s32.totalorder %s42, 1
      %p235 = por %p233, %p234
      %p236 = scmp.ne.s32.totalorder %s227, %s228
      %p237 = scmp.eq.s32.totalorder %s42, 0
      %p238 = por %p236, %p237
      %p239 = scmp.ne.s32.totalorder %s227, %s228
      %p240 = scmp.eq.s32.totalorder %s43, 1
      %p241 = por %p239, %p240
      %p243 = scmp.ne.s32.totalorder %s228, %s242
      %p244 = scmp.eq.s32.totalorder %s43, 0
      %p245 = por %p243, %p244
      %s247 = sadd.s32 %s246, 1
      %p250 = scmp.eq.s32.totalorder %s37, 1
      %p251 = scmp.ne.s32.totalorder %s246, %s248
      %p252 = scmp.eq.s32.totalorder %s37, 0
      %p253 = por %p251, %p252
      %p254 = scmp.ne.s32.totalorder %s246, %s248
      %p255 = scmp.eq.s32.totalorder %s42, 1
      %p256 = por %p254, %p255
      %p257 = scmp.ne.s32.totalorder %s248, %s249
      %p258 = scmp.eq.s32.totalorder %s42, 0
      %p259 = por %p257, %p258
      %p260 = scmp.ne.s32.totalorder %s248, %s249
      %p261 = scmp.eq.s32.totalorder %s43, 1
      %p262 = por %p260, %p261
      %p264 = scmp.ne.s32.totalorder %s249, %s263
      %p265 = scmp.eq.s32.totalorder %s43, 0
      %p266 = por %p264, %p265
      %s268 = sadd.s32 %s267, 1
      %p271 = scmp.eq.s32.totalorder %s37, 1
      %p272 = scmp.ne.s32.totalorder %s267, %s269
      %p273 = scmp.eq.s32.totalorder %s37, 0
      %p274 = por %p272, %p273
      %p275 = scmp.ne.s32.totalorder %s267, %s269
      %p276 = scmp.eq.s32.totalorder %s42, 1
      %p277 = por %p275, %p276
      %p278 = scmp.ne.s32.totalorder %s269, %s270
      %p279 = scmp.eq.s32.totalorder %s42, 0
      %p280 = por %p278, %p279
      %p281 = scmp.ne.s32.totalorder %s269, %s270
      %p282 = scmp.eq.s32.totalorder %s43, 1
      %p283 = por %p281, %p282
      %p285 = scmp.ne.s32.totalorder %s270, %s284
      %p286 = scmp.eq.s32.totalorder %s43, 0
      %p287 = por %p285, %p286
      %s289 = sadd.s32 %s288, 1
      %p292 = scmp.eq.s32.totalorder %s37, 1
      %p293 = scmp.ne.s32.totalorder %s288, %s290
      %p294 = scmp.eq.s32.totalorder %s37, 0
      %p295 = por %p293, %p294
      %p296 = scmp.ne.s32.totalorder %s288, %s290
      %p297 = scmp.eq.s32.totalorder %s42, 1
      %p298 = por %p296, %p297
      %p299 = scmp.ne.s32.totalorder %s290, %s291
      %p300 = scmp.eq.s32.totalorder %s42, 0
      %p301 = por %p299, %p300
      %p302 = scmp.ne.s32.totalorder %s290, %s291
      %p303 = scmp.eq.s32.totalorder %s43, 1
      %p304 = por %p302, %p303
      %p306 = scmp.ne.s32.totalorder %s291, %s305
      %p307 = scmp.eq.s32.totalorder %s43, 0
      %p308 = por %p306, %p307
      %s310 = sadd.s32 %s309, 1
      %p313 = scmp.eq.s32.totalorder %s37, 1
      %p314 = scmp.ne.s32.totalorder %s309, %s311
      %p315 = scmp.eq.s32.totalorder %s37, 0
      %p316 = por %p314, %p315
      %p317 = scmp.ne.s32.totalorder %s309, %s311
      %p318 = scmp.eq.s32.totalorder %s42, 1
      %p319 = por %p317, %p318
      %p320 = scmp.ne.s32.totalorder %s311, %s312
      %p321 = scmp.eq.s32.totalorder %s42, 0
      %p322 = por %p320, %p321
      %p323 = scmp.ne.s32.totalorder %s311, %s312
      %p324 = scmp.eq.s32.totalorder %s43, 1
      %p325 = por %p323, %p324
      %p327 = scmp.ne.s32.totalorder %s312, %s326
      %p328 = scmp.eq.s32.totalorder %s43, 0
      %p329 = por %p327, %p328
      %s331 = sadd.s32 %s330, 1
      %p334 = scmp.eq.s32.totalorder %s37, 1
      %p335 = scmp.ne.s32.totalorder %s330, %s332
      %p336 = scmp.eq.s32.totalorder %s37, 0
      %p337 = por %p335, %p336
      %p338 = scmp.ne.s32.totalorder %s330, %s332
      %p339 = scmp.eq.s32.totalorder %s42, 1
      %p340 = por %p338, %p339
      %p341 = scmp.ne.s32.totalorder %s332, %s333
      %p342 = scmp.eq.s32.totalorder %s42, 0
      %p343 = por %p341, %p342
      %p344 = scmp.ne.s32.totalorder %s332, %s333
      %p345 = scmp.eq.s32.totalorder %s43, 1
      %p346 = por %p344, %p345
      %p348 = scmp.ne.s32.totalorder %s333, %s347
      %p349 = scmp.eq.s32.totalorder %s43, 0
      %p350 = por %p348, %p349
      %s351 = ssub.s32 %s44, %s56
      %p352 = scmp.eq.s32.totalorder %s351, 0
      %s354 = sadd.s32 %s353, 1
      %s355 = scalar_select %p352, %s353, %s354
      %p358 = pneg %p352
      %p359 = scmp.eq.s32.totalorder %s37, 1
      %p360 = por %p358, %p359
      %p361 = scmp.ne.s32.totalorder %s353, %s356
      %p362 = scmp.eq.s32.totalorder %s37, 0
      %p363 = por %p361, %p362
      %p364 = scmp.ne.s32.totalorder %s353, %s356
      %p365 = scmp.eq.s32.totalorder %s42, 1
      %p366 = por %p364, %p365
      %p367 = scmp.ne.s32.totalorder %s356, %s357
      %p368 = scmp.eq.s32.totalorder %s42, 0
      %p369 = por %p367, %p368
      %p370 = scmp.ne.s32.totalorder %s356, %s357
      %p371 = scmp.eq.s32.totalorder %s43, 1
      %p372 = por %p370, %p371
      %p374 = scmp.ne.s32.totalorder %s357, %s373
      %p375 = scmp.eq.s32.totalorder %s43, 0
      %p376 = por %p374, %p375
      %s377 = ssub.s32 %s44, %s56
      %s378 = ssub.s32 %s45, %s52
      %s379 = sor.u32 %s377, %s378
      %p380 = scmp.eq.s32.totalorder %s379, 0
      %s382 = sadd.s32 %s381, 1
      %s383 = scalar_select %p380, %s381, %s382
      %p386 = pneg %p380
      %p387 = scmp.eq.s32.totalorder %s37, 1
      %p388 = por %p386, %p387
      %p389 = scmp.ne.s32.totalorder %s381, %s384
      %p390 = scmp.eq.s32.totalorder %s37, 0
      %p391 = por %p389, %p390
      %p392 = scmp.ne.s32.totalorder %s381, %s384
      %p393 = scmp.eq.s32.totalorder %s42, 1
      %p394 = por %p392, %p393
      %p395 = scmp.ne.s32.totalorder %s384, %s385
      %p396 = scmp.eq.s32.totalorder %s42, 0
      %p397 = por %p395, %p396
      %p398 = scmp.ne.s32.totalorder %s384, %s385
      %p399 = scmp.eq.s32.totalorder %s43, 1
      %p400 = por %p398, %p399
      %p402 = scmp.ne.s32.totalorder %s385, %s401
      %p403 = scmp.eq.s32.totalorder %s43, 0
      %p404 = por %p402, %p403
      %p405 = scmp.le.s32.totalorder 1, %s37
      %p406 = scmp.lt.s32.totalorder %s37, 3
      %p407 = pnand %p405, %p406
      %p408 = pneg %p407
      // Predicated region
      $region9: #{asff_level2_forward.1} parent=5 // pred_check
        _
      $region10: #{asff_level2_forward.1} parent=5 // pred_check_branch
        %410 = sbr.rel (%p407) target = $region12
      $region11: #{asff_level2_forward.1} parent=5 // pred_region
        %s411 = ssub.s32 %s37, 1
        // Predicated region
        $region13: #{asff_level2_forward.1} parent=11 // pred_check
          %p412 = pneg %p154
        $region14: #{asff_level2_forward.1} parent=11 // pred_check_branch
          %414 = sbr.rel (%p412) target = $region16
        $region15: #{asff_level2_forward.1} parent=11 // pred_region
          %s416 = ssub.s32 2048, 2048
          %417 = vsyncadd [#allocation9], %s416
          %s418 = sshll.u32 [#allocation8], 4
          %s419 = int_to_ptr.vmem [resolvable:$true] %s418
          %424 = dma.hbm_to_vmem [thread:$0]  %s3, 2048, %s419, [#allocation9], 64, 64, 4
        $region16: #{asff_level2_forward.1} parent=11 // pred_fallthru
          _
        // Predicated region
        $region17: #{asff_level2_forward.1} parent=11 // pred_check
          %p425 = pneg %p175
        $region18: #{asff_level2_forward.1} parent=11 // pred_check_branch
          %427 = sbr.rel (%p425) target = $region20
        $region19: #{asff_level2_forward.1} parent=11 // pred_region
          %s429 = ssub.s32 2048, 2048
          %430 = vsyncadd [#allocation9], %s429
          %s431 = sshll.u32 [#allocation10], 4
          %s432 = int_to_ptr.vmem [resolvable:$true] %s431
          %437 = dma.hbm_to_vmem [thread:$0]  %s4, 2048, %s432, [#allocation9], 64, 64, 4
        $region20: #{asff_level2_forward.1} parent=11 // pred_fallthru
          _
        // Predicated region
        $region21: #{asff_level2_forward.1} parent=11 // pred_check
          %p438 = pneg %p196
        $region22: #{asff_level2_forward.1} parent=11 // pred_check_branch
          %440 = sbr.rel (%p438) target = $region24
        $region23: #{asff_level2_forward.1} parent=11 // pred_region
          %s442 = ssub.s32 2048, 2048
          %443 = vsyncadd [#allocation12], %s442
          %s444 = sshll.u32 [#allocation11], 4
          %s445 = int_to_ptr.vmem [resolvable:$true] %s444
          %450 = dma.hbm_to_vmem [thread:$0]  %s5, 2048, %s445, [#allocation12], 64, 64, 4
        $region24: #{asff_level2_forward.1} parent=11 // pred_fallthru
          _
        // Predicated region
        $region25: #{asff_level2_forward.1} parent=11 // pred_check
          %p451 = pneg %p217
        $region26: #{asff_level2_forward.1} parent=11 // pred_check_branch
          %453 = sbr.rel (%p451) target = $region28
        $region27: #{asff_level2_forward.1} parent=11 // pred_region
          %s455 = ssub.s32 16, 16
          %456 = vsyncadd [#allocation12], %s455
          %s458 = sshll.u32 [#allocation13], 4
          %s459 = int_to_ptr.vmem [resolvable:$true] %s458
          %461 = dma.hbm_to_vmem [thread:$0]  %s6, 16, %s459, [#allocation12]
        $region28: #{asff_level2_forward.1} parent=11 // pred_fallthru
          _
        // Predicated region
        $region29: #{asff_level2_forward.1} parent=11 // pred_check
          %p462 = pneg %p238
        $region30: #{asff_level2_forward.1} parent=11 // pred_check_branch
          %464 = sbr.rel (%p462) target = $region32
        $region31: #{asff_level2_forward.1} parent=11 // pred_region
          %s466 = ssub.s32 1024, 1024
          %467 = vsyncadd [#allocation15], %s466
          %s468 = sshll.u32 [#allocation14], 4
          %s469 = int_to_ptr.vmem [resolvable:$true] %s468
          %474 = dma.hbm_to_vmem [thread:$0]  %s7, 1024, %s469, [#allocation15], 64, 64, 4
        $region32: #{asff_level2_forward.1} parent=11 // pred_fallthru
          _
        // Predicated region
        $region33: #{asff_level2_forward.1} parent=11 // pred_check
          %p475 = pneg %p259
        $region34: #{asff_level2_forward.1} parent=11 // pred_check_branch
          %477 = sbr.rel (%p475) target = $region36
        $region35: #{asff_level2_forward.1} parent=11 // pred_region
          %s479 = ssub.s32 16, 16
          %480 = vsyncadd [#allocation15], %s479
          %s482 = sshll.u32 [#allocation16], 4
          %s483 = int_to_ptr.vmem [resolvable:$true] %s482
          %485 = dma.hbm_to_vmem [thread:$0]  %s8, 16, %s483, [#allocation15]
        $region36: #{asff_level2_forward.1} parent=11 // pred_fallthru
          _
        // Predicated region
        $region37: #{asff_level2_forward.1} parent=11 // pred_check
          %p486 = pneg %p280
        $region38: #{asff_level2_forward.1} parent=11 // pred_check_branch
          %488 = sbr.rel (%p486) target = $region40
        $region39: #{asff_level2_forward.1} parent=11 // pred_region
          %s490 = ssub.s32 1536, 1536
          %491 = vsyncadd [#allocation18], %s490
          %s492 = sshll.u32 [#allocation17], 4
          %s493 = int_to_ptr.vmem [resolvable:$true] %s492
          %498 = dma.hbm_to_vmem [thread:$0]  %s9, 1536, %s493, [#allocation18], 64, 64, 4
        $region40: #{asff_level2_forward.1} parent=11 // pred_fallthru
          _
        // Predicated region
        $region41: #{asff_level2_forward.1} parent=11 // pred_check
          %p499 = pneg %p301
        $region42: #{asff_level2_forward.1} parent=11 // pred_check_branch
          %501 = sbr.rel (%p499) target = $region44
        $region43: #{asff_level2_forward.1} parent=11 // pred_region
          %s503 = ssub.s32 16, 16
          %504 = vsyncadd [#allocation18], %s503
          %s506 = sshll.u32 [#allocation19], 4
          %s507 = int_to_ptr.vmem [resolvable:$true] %s506
          %509 = dma.hbm_to_vmem [thread:$0]  %s10, 16, %s507, [#allocation18]
        $region44: #{asff_level2_forward.1} parent=11 // pred_fallthru
          _
        // Predicated region
        $region45: #{asff_level2_forward.1} parent=11 // pred_check
          %p510 = pneg %p322
        $region46: #{asff_level2_forward.1} parent=11 // pred_check_branch
          %512 = sbr.rel (%p510) target = $region48
        $region47: #{asff_level2_forward.1} parent=11 // pred_region
          %s514 = ssub.s32 768, 768
          %515 = vsyncadd [#allocation21], %s514
          %s516 = sshll.u32 [#allocation20], 4
          %s517 = int_to_ptr.vmem [resolvable:$true] %s516
          %522 = dma.hbm_to_vmem [thread:$0]  %s11, 768, %s517, [#allocation21], 128, 128, 8
        $region48: #{asff_level2_forward.1} parent=11 // pred_fallthru
          _
        // Predicated region
        $region49: #{asff_level2_forward.1} parent=11 // pred_check
          %p523 = pneg %p343
        $region50: #{asff_level2_forward.1} parent=11 // pred_check_branch
          %525 = sbr.rel (%p523) target = $region52
        $region51: #{asff_level2_forward.1} parent=11 // pred_region
          %s527 = ssub.s32 16, 16
          %528 = vsyncadd [#allocation21], %s527
          %s530 = sshll.u32 [#allocation22], 4
          %s531 = int_to_ptr.vmem [resolvable:$true] %s530
          %533 = dma.hbm_to_vmem [thread:$0]  %s12, 16, %s531, [#allocation21]
        $region52: #{asff_level2_forward.1} parent=11 // pred_fallthru
          _
      $region12: #{asff_level2_forward.1} parent=5 // pred_fallthru
        _
      %p534 = scmp.lt.s32.totalorder %s37, 2
      // Predicated region
      $region53: #{asff_level2_forward.1} parent=5 // pred_check
        %p535 = pneg %p534
      $region54: #{asff_level2_forward.1} parent=5 // pred_check_branch
        %537 = sbr.rel (%p535) target = $region56
      $region55: #{asff_level2_forward.1} parent=5 // pred_region
        // Predicated region
        $region57: #{asff_level2_forward.1} parent=55 // pred_check
          %p538 = pneg %p71
        $region58: #{asff_level2_forward.1} parent=55 // pred_check_branch
          %540 = sbr.rel (%p538) target = $region60
        $region59: #{asff_level2_forward.1} parent=55 // pred_region
          %s541 = sand.u32 %s61, 1
          %s542 = scalar_lea.sflag [#allocation3], %s541
          %s543 = sand.u32 %s61, 1
          %s544 = smul.addr %s543, 16
          %s545 = scalar_lea.vmem [#allocation2], %s544
          %s546 = smul.u32 2, %s45
          %s548 = ssub.s32 256, 256
          %549 = vsyncadd %s542, %s548
          %s550 = smul.addr %s546, 2
          %s551 = smul.addr %s44, 4
          %s552 = sadd.s32 %s550, %s551
          %s553 = smul.addr %s552, 64
          %s554 = scalar_lea.hbm %s0, %s553
          %s555 = sshll.u32 %s545, 4
          %s556 = int_to_ptr.vmem [resolvable:$true] %s555
          %561 = dma.hbm_to_vmem [thread:$0]  %s554, 256, %s556, %s542, 128, 128, 8
        $region60: #{asff_level2_forward.1} parent=55 // pred_fallthru
          _
        // Predicated region
        $region61: #{asff_level2_forward.1} parent=55 // pred_check
          %p562 = pneg %p99
        $region62: #{asff_level2_forward.1} parent=55 // pred_check_branch
          %564 = sbr.rel (%p562) target = $region64
        $region63: #{asff_level2_forward.1} parent=55 // pred_region
          %s565 = sand.u32 %s37, 1
          %s566 = scalar_lea.sflag [#allocation6], %s565
          %s567 = sand.u32 %s89, 1
          %s568 = smul.addr %s567, 32
          %s569 = scalar_lea.vmem [#allocation5], %s568
          %s570 = smul.u32 8, %s45
          %s572 = ssub.s32 512, 512
          %573 = vsyncadd %s566, %s572
          %s574 = smul.addr %s44, 8
          %s575 = sadd.s32 %s570, %s574
          %s576 = smul.addr %s575, 64
          %s577 = scalar_lea.hbm %s1, %s576
          %s578 = sshll.u32 %s569, 4
          %s579 = int_to_ptr.vmem [resolvable:$true] %s578
          %584 = dma.hbm_to_vmem [thread:$0]  %s577, 512, %s579, %s566, 64, 64, 4
        $region64: #{asff_level2_forward.1} parent=55 // pred_fallthru
          _
        // Predicated region
        $region65: #{asff_level2_forward.1} parent=55 // pred_check
          %p585 = pneg %p127
        $region66: #{asff_level2_forward.1} parent=55 // pred_check_branch
          %587 = sbr.rel (%p585) target = $region68
        $region67: #{asff_level2_forward.1} parent=55 // pred_region
          %s588 = sand.u32 %s37, 1
          %s589 = scalar_lea.sflag [#allocation6], %s588
          %s590 = sand.u32 %s117, 1
          %s591 = smul.addr %s590, 128
          %s592 = scalar_lea.vmem [#allocation7], %s591
          %s593 = smul.u32 32, %s45
          %s595 = ssub.s32 2048, 2048
          %596 = vsyncadd %s589, %s595
          %s597 = smul.addr %s44, 32
          %s598 = sadd.s32 %s593, %s597
          %s599 = smul.addr %s598, 64
          %s600 = scalar_lea.hbm %s2, %s599
          %s601 = sshll.u32 %s592, 4
          %s602 = int_to_ptr.vmem [resolvable:$true] %s601
          %607 = dma.hbm_to_vmem [thread:$0]  %s600, 2048, %s602, %s589, 64, 64, 4
        $region68: #{asff_level2_forward.1} parent=55 // pred_fallthru
          _
        // Predicated region
        $region69: #{asff_level2_forward.1} parent=55 // pred_check
          %p608 = pneg %p363
        $region70: #{asff_level2_forward.1} parent=55 // pred_check_branch
          %610 = sbr.rel (%p608) target = $region72
        $region71: #{asff_level2_forward.1} parent=55 // pred_region
          %s611 = sand.u32 %s353, 1
          %s612 = scalar_lea.sflag [#allocation24], %s611
          %s613 = sand.u32 %s353, 1
          %s614 = smul.addr %s613, 8
          %s615 = scalar_lea.vmem [#allocation23], %s614
          %s617 = ssub.s32 128, 128
          %618 = vsyncadd %s612, %s617
          %s619 = smul.addr %s44, 2
          %s620 = smul.addr %s619, 64
          %s621 = scalar_lea.hbm %s13, %s620
          %s623 = sshll.u32 %s615, 4
          %s624 = int_to_ptr.vmem [resolvable:$true] %s623
          %626 = dma.hbm_to_vmem [thread:$0]  %s621, 128, %s624, %s612
        $region72: #{asff_level2_forward.1} parent=55 // pred_fallthru
          _
      $region56: #{asff_level2_forward.1} parent=5 // pred_fallthru
        _
      %p627 = scmp.le.s32.totalorder 1, %s37
      %p628 = scmp.lt.s32.totalorder %s37, 3
      %p629 = pnand %p627, %p628
      %p630 = pneg %p629
      // Predicated region
      $region73: #{asff_level2_forward.1} parent=5 // pred_check
        _
      $region74: #{asff_level2_forward.1} parent=5 // pred_check_branch
        %632 = sbr.rel (%p629) target = $region76
      $region75: #{asff_level2_forward.1} parent=5 // pred_region
        %s633 = ssub.s32 %s37, 1
        %s634 = sand.u32 %s64, 1
        %s635 = scalar_lea.sflag [#allocation3], %s634
        %s636 = sand.u32 %s64, 1
        %s637 = smul.addr %s636, 16
        %s638 = scalar_lea.vmem [#allocation2], %s637
        // Predicated region
        $region77: #{asff_level2_forward.1} parent=75 // pred_check
          %p639 = pneg %p77
        $region78: #{asff_level2_forward.1} parent=75 // pred_check_branch
          %641 = sbr.rel (%p639) target = $region80
        $region79: #{asff_level2_forward.1} parent=75 // pred_region
          %642 = dma.done %s635, 256
        $region80: #{asff_level2_forward.1} parent=75 // pred_fallthru
          _
        %s643 = sand.u32 %s42, 1
        %s644 = scalar_lea.sflag [#allocation6], %s643
        %s645 = sand.u32 %s92, 1
        %s646 = smul.addr %s645, 32
        %s647 = scalar_lea.vmem [#allocation5], %s646
        // Predicated region
        $region81: #{asff_level2_forward.1} parent=75 // pred_check
          %p648 = pneg %p105
        $region82: #{asff_level2_forward.1} parent=75 // pred_check_branch
          %650 = sbr.rel (%p648) target = $region84
        $region83: #{asff_level2_forward.1} parent=75 // pred_region
          %651 = dma.done %s644, 512
        $region84: #{asff_level2_forward.1} parent=75 // pred_fallthru
          _
        %s652 = sand.u32 %s42, 1
        %s653 = scalar_lea.sflag [#allocation6], %s652
        %s654 = sand.u32 %s120, 1
        %s655 = smul.addr %s654, 128
        %s656 = scalar_lea.vmem [#allocation7], %s655
        // Predicated region
        $region85: #{asff_level2_forward.1} parent=75 // pred_check
          %p657 = pneg %p133
        $region86: #{asff_level2_forward.1} parent=75 // pred_check_branch
          %659 = sbr.rel (%p657) target = $region88
        $region87: #{asff_level2_forward.1} parent=75 // pred_region
          %660 = dma.done %s653, 2048
        $region88: #{asff_level2_forward.1} parent=75 // pred_fallthru
          _
        // Predicated region
        $region89: #{asff_level2_forward.1} parent=75 // pred_check
          %p661 = pneg %p154
        $region90: #{asff_level2_forward.1} parent=75 // pred_check_branch
          %663 = sbr.rel (%p661) target = $region92
        $region91: #{asff_level2_forward.1} parent=75 // pred_region
          %664 = dma.done [#allocation9], 2048
        $region92: #{asff_level2_forward.1} parent=75 // pred_fallthru
          _
        // Predicated region
        $region93: #{asff_level2_forward.1} parent=75 // pred_check
          %p665 = pneg %p175
        $region94: #{asff_level2_forward.1} parent=75 // pred_check_branch
          %667 = sbr.rel (%p665) target = $region96
        $region95: #{asff_level2_forward.1} parent=75 // pred_region
          %668 = dma.done [#allocation9], 2048
        $region96: #{asff_level2_forward.1} parent=75 // pred_fallthru
          _
        // Predicated region
        $region97: #{asff_level2_forward.1} parent=75 // pred_check
          %p669 = pneg %p196
        $region98: #{asff_level2_forward.1} parent=75 // pred_check_branch
          %671 = sbr.rel (%p669) target = $region100
        $region99: #{asff_level2_forward.1} parent=75 // pred_region
          %672 = dma.done [#allocation12], 2048
        $region100: #{asff_level2_forward.1} parent=75 // pred_fallthru
          _
        // Predicated region
        $region101: #{asff_level2_forward.1} parent=75 // pred_check
          %p673 = pneg %p217
        $region102: #{asff_level2_forward.1} parent=75 // pred_check_branch
          %675 = sbr.rel (%p673) target = $region104
        $region103: #{asff_level2_forward.1} parent=75 // pred_region
          %676 = dma.done [#allocation12], 16
        $region104: #{asff_level2_forward.1} parent=75 // pred_fallthru
          _
        // Predicated region
        $region105: #{asff_level2_forward.1} parent=75 // pred_check
          %p677 = pneg %p238
        $region106: #{asff_level2_forward.1} parent=75 // pred_check_branch
          %679 = sbr.rel (%p677) target = $region108
        $region107: #{asff_level2_forward.1} parent=75 // pred_region
          %680 = dma.done [#allocation15], 1024
        $region108: #{asff_level2_forward.1} parent=75 // pred_fallthru
          _
        // Predicated region
        $region109: #{asff_level2_forward.1} parent=75 // pred_check
          %p681 = pneg %p259
        $region110: #{asff_level2_forward.1} parent=75 // pred_check_branch
          %683 = sbr.rel (%p681) target = $region112
        $region111: #{asff_level2_forward.1} parent=75 // pred_region
          %684 = dma.done [#allocation15], 16
        $region112: #{asff_level2_forward.1} parent=75 // pred_fallthru
          _
        // Predicated region
        $region113: #{asff_level2_forward.1} parent=75 // pred_check
          %p685 = pneg %p280
        $region114: #{asff_level2_forward.1} parent=75 // pred_check_branch
          %687 = sbr.rel (%p685) target = $region116
        $region115: #{asff_level2_forward.1} parent=75 // pred_region
          %688 = dma.done [#allocation18], 1536
        $region116: #{asff_level2_forward.1} parent=75 // pred_fallthru
          _
        // Predicated region
        $region117: #{asff_level2_forward.1} parent=75 // pred_check
          %p689 = pneg %p301
        $region118: #{asff_level2_forward.1} parent=75 // pred_check_branch
          %691 = sbr.rel (%p689) target = $region120
        $region119: #{asff_level2_forward.1} parent=75 // pred_region
          %692 = dma.done [#allocation18], 16
        $region120: #{asff_level2_forward.1} parent=75 // pred_fallthru
          _
        // Predicated region
        $region121: #{asff_level2_forward.1} parent=75 // pred_check
          %p693 = pneg %p322
        $region122: #{asff_level2_forward.1} parent=75 // pred_check_branch
          %695 = sbr.rel (%p693) target = $region124
        $region123: #{asff_level2_forward.1} parent=75 // pred_region
          %696 = dma.done [#allocation21], 768
        $region124: #{asff_level2_forward.1} parent=75 // pred_fallthru
          _
        // Predicated region
        $region125: #{asff_level2_forward.1} parent=75 // pred_check
          %p697 = pneg %p343
        $region126: #{asff_level2_forward.1} parent=75 // pred_check_branch
          %699 = sbr.rel (%p697) target = $region128
        $region127: #{asff_level2_forward.1} parent=75 // pred_region
          %700 = dma.done [#allocation21], 16
        $region128: #{asff_level2_forward.1} parent=75 // pred_fallthru
          _
        %s701 = sand.u32 %s356, 1
        %s702 = scalar_lea.sflag [#allocation24], %s701
        %s703 = sand.u32 %s356, 1
        %s704 = smul.addr %s703, 8
        %s705 = scalar_lea.vmem [#allocation23], %s704
        // Predicated region
        $region129: #{asff_level2_forward.1} parent=75 // pred_check
          %p706 = pneg %p369
        $region130: #{asff_level2_forward.1} parent=75 // pred_check_branch
          %708 = sbr.rel (%p706) target = $region132
        $region131: #{asff_level2_forward.1} parent=75 // pred_region
          %709 = dma.done %s702, 128
        $region132: #{asff_level2_forward.1} parent=75 // pred_fallthru
          _
        %s710 = sand.u32 %s64, 1
        %s711 = scalar_lea.sflag [#allocation3], %s710
        %s712 = sand.u32 %s64, 1
        %s713 = smul.addr %s712, 16
        %s714 = scalar_lea.vmem [#allocation2], %s713
        %p715 = pneg %p77
        %p716 = pneg %p74
        %s717 = sand.u32 %s42, 1
        %s718 = scalar_lea.sflag [#allocation6], %s717
        %s719 = sand.u32 %s92, 1
        %s720 = smul.addr %s719, 32
        %s721 = scalar_lea.vmem [#allocation5], %s720
        %p722 = pneg %p105
        %p723 = pneg %p102
        %s724 = sand.u32 %s42, 1
        %s725 = scalar_lea.sflag [#allocation6], %s724
        %s726 = sand.u32 %s120, 1
        %s727 = smul.addr %s726, 128
        %s728 = scalar_lea.vmem [#allocation7], %s727
        %p729 = pneg %p133
        %p730 = pneg %p130
        %p731 = pneg %p154
        %p732 = pneg %p151
        %p733 = pneg %p175
        %p734 = pneg %p172
        %p735 = pneg %p196
        %p736 = pneg %p193
        %p737 = pneg %p217
        %p738 = pneg %p214
        %p739 = pneg %p238
        %p740 = pneg %p235
        %p741 = pneg %p259
        %p742 = pneg %p256
        %p743 = pneg %p280
        %p744 = pneg %p277
        %p745 = pneg %p301
        %p746 = pneg %p298
        %p747 = pneg %p322
        %p748 = pneg %p319
        %p749 = pneg %p343
        %p750 = pneg %p340
        %s751 = sand.u32 %s356, 1
        %s752 = scalar_lea.sflag [#allocation24], %s751
        %s753 = sand.u32 %s356, 1
        %s754 = smul.addr %s753, 8
        %s755 = scalar_lea.vmem [#allocation23], %s754
        %p756 = pneg %p369
        %p757 = pneg %p366
        %p758 = pneg %p397
        %p759 = pneg %p394
        %s760 = sand.u32 %s384, 1
        %s761 = scalar_lea.sflag [#allocation4], %s760
        %s762 = sand.u32 %s384, 1
        %s763 = smul.addr %s762, 512
        %s764 = scalar_lea.vmem [#allocation25], %s763
        %s765 = smul.u32 2, %s47
        %s766 = smul.u32 8, %s47
        %s767 = smul.u32 32, %s47
        %s768 = smul.u32 32, %s47
        %v770 = vld [vmem:[%s638] sm:$0xff]
        %v771 = vld [vmem:[%s638 + $0x8] sm:$0xff]
        %v772 = vld [vmem:[#allocation11] sm:$0xf]
        %v773 = vld [vmem:[#allocation11 + $0x4] sm:$0xf]
        %v774 = vld [vmem:[#allocation11 + $0x8] sm:$0xf]
        %v775 = vld [vmem:[#allocation11 + $0xc] sm:$0xf]
        %v776 = vld [vmem:[#allocation11 + $0x10] sm:$0xf]
        %v777 = vld [vmem:[#allocation11 + $0x14] sm:$0xf]
        %v778 = vld [vmem:[#allocation11 + $0x18] sm:$0xf]
        %v779 = vld [vmem:[#allocation11 + $0x1c] sm:$0xf]
        %v780 = vld [vmem:[#allocation11 + $0x20] sm:$0xf]
        %v781 = vld [vmem:[#allocation11 + $0x24] sm:$0xf]
        %v782 = vld [vmem:[#allocation11 + $0x28] sm:$0xf]
        %v783 = vld [vmem:[#allocation11 + $0x2c] sm:$0xf]
        %v784 = vld [vmem:[#allocation11 + $0x30] sm:$0xf]
        %v785 = vld [vmem:[#allocation11 + $0x34] sm:$0xf]
        %v786 = vld [vmem:[#allocation11 + $0x38] sm:$0xf]
        %v787 = vld [vmem:[#allocation11 + $0x3c] sm:$0xf]
        %v788 = vld [vmem:[#allocation11 + $0x40] sm:$0xf]
        %v789 = vld [vmem:[#allocation11 + $0x44] sm:$0xf]
        %v790 = vld [vmem:[#allocation11 + $0x48] sm:$0xf]
        %v791 = vld [vmem:[#allocation11 + $0x4c] sm:$0xf]
        %v792 = vld [vmem:[#allocation11 + $0x50] sm:$0xf]
        %v793 = vld [vmem:[#allocation11 + $0x54] sm:$0xf]
        %v794 = vld [vmem:[#allocation11 + $0x58] sm:$0xf]
        %v795 = vld [vmem:[#allocation11 + $0x5c] sm:$0xf]
        %v796 = vld [vmem:[#allocation11 + $0x60] sm:$0xf]
        %v797 = vld [vmem:[#allocation11 + $0x64] sm:$0xf]
        %v798 = vld [vmem:[#allocation11 + $0x68] sm:$0xf]
        %v799 = vld [vmem:[#allocation11 + $0x6c] sm:$0xf]
        %v800 = vld [vmem:[#allocation11 + $0x70] sm:$0xf]
        %v801 = vld [vmem:[#allocation11 + $0x74] sm:$0xf]
        %v802 = vld [vmem:[#allocation11 + $0x78] sm:$0xf]
        %v803 = vld [vmem:[#allocation11 + $0x7c] sm:$0xf]
        %v804 = vld [vmem:[#allocation13] sm:$0x1]
        %v806 = vlaneseq
        %v807 = vshrl.u32 %v806, 7
        %v808 = vsub.s32 0, %v807
        %v809 = vrot.slane %v804, %v808
        %v813 = vunpack.c.l.b16 %v770
        %v814 = vunpack.c.h.b16 %v770
        %v815 = vunpack.c.l.b16 %v771
        %v816 = vunpack.c.h.b16 %v771
        %v817 = vpack.c.b16 %v815, %v813
        %v818 = vpack.c.b16 %v816, %v814
        %v853 = vunpack.c.l.b16 %v772
        %v854 = vunpack.c.l.b16 %v773
        %v855 = vunpack.c.l.b16 %v774
        %v856 = vunpack.c.l.b16 %v775
        %v857 = vunpack.c.l.b16 %v776
        %v858 = vunpack.c.l.b16 %v777
        %v859 = vunpack.c.l.b16 %v778
        %v860 = vunpack.c.l.b16 %v779
        %v861 = vunpack.c.l.b16 %v780
        %v862 = vunpack.c.l.b16 %v781
        %v863 = vunpack.c.l.b16 %v782
        %v864 = vunpack.c.l.b16 %v783
        %v865 = vunpack.c.l.b16 %v784
        %v866 = vunpack.c.l.b16 %v785
        %v867 = vunpack.c.l.b16 %v786
        %v868 = vunpack.c.l.b16 %v787
        %v869 = vunpack.c.l.b16 %v788
        %v870 = vunpack.c.l.b16 %v789
        %v871 = vunpack.c.l.b16 %v790
        %v872 = vunpack.c.l.b16 %v791
        %v873 = vunpack.c.l.b16 %v792
        %v874 = vunpack.c.l.b16 %v793
        %v875 = vunpack.c.l.b16 %v794
        %v876 = vunpack.c.l.b16 %v795
        %v877 = vunpack.c.l.b16 %v796
        %v878 = vunpack.c.l.b16 %v797
        %v879 = vunpack.c.l.b16 %v798
        %v880 = vunpack.c.l.b16 %v799
        %v881 = vunpack.c.l.b16 %v800
        %v882 = vunpack.c.l.b16 %v801
        %v883 = vunpack.c.l.b16 %v802
        %v884 = vunpack.c.l.b16 %v803
        %v885 = vpack.c.b16 %v854, %v853
        %v886 = vpack.c.b16 %v856, %v855
        %v887 = vpack.c.b16 %v858, %v857
        %v888 = vpack.c.b16 %v860, %v859
        %v889 = vpack.c.b16 %v862, %v861
        %v890 = vpack.c.b16 %v864, %v863
        %v891 = vpack.c.b16 %v866, %v865
        %v892 = vpack.c.b16 %v868, %v867
        %v893 = vpack.c.b16 %v870, %v869
        %v894 = vpack.c.b16 %v872, %v871
        %v895 = vpack.c.b16 %v874, %v873
        %v896 = vpack.c.b16 %v876, %v875
        %v897 = vpack.c.b16 %v878, %v877
        %v898 = vpack.c.b16 %v880, %v879
        %v899 = vpack.c.b16 %v882, %v881
        %v900 = vpack.c.b16 %v884, %v883
        %917 = vmatprep.subr.bf16.mxu0 0
        %918 = vmatpush1.bf16.msra.mxu0 %v885
        %919 = vmatprep.subr.bf16.mxu0 0
        %920 = vmatpush1.bf16.msra.mxu0 %v886
        %921 = vmatprep.subr.bf16.mxu0 0
        %922 = vmatpush1.bf16.msra.mxu0 %v887
        %923 = vmatprep.subr.bf16.mxu0 0
        %924 = vmatpush1.bf16.msra.mxu0 %v888
        %925 = vmatprep.subr.bf16.mxu0 0
        %926 = vmatpush1.bf16.msra.mxu0 %v889
        %927 = vmatprep.subr.bf16.mxu0 0
        %928 = vmatpush1.bf16.msra.mxu0 %v890
        %929 = vmatprep.subr.bf16.mxu0 0
        %930 = vmatpush1.bf16.msra.mxu0 %v891
        %931 = vmatprep.subr.bf16.mxu0 0
        %932 = vmatpush1.bf16.msra.mxu0 %v892
        %933 = vmatprep.subr.bf16.mxu0 0
        %934 = vmatpush1.bf16.msra.mxu0 %v893
        %935 = vmatprep.subr.bf16.mxu0 0
        %936 = vmatpush1.bf16.msra.mxu0 %v894
        %937 = vmatprep.subr.bf16.mxu0 0
        %938 = vmatpush1.bf16.msra.mxu0 %v895
        %939 = vmatprep.subr.bf16.mxu0 0
        %940 = vmatpush1.bf16.msra.mxu0 %v896
        %941 = vmatprep.subr.bf16.mxu0 0
        %942 = vmatpush1.bf16.msra.mxu0 %v897
        %943 = vmatprep.subr.bf16.mxu0 0
        %944 = vmatpush1.bf16.msra.mxu0 %v898
        %945 = vmatprep.subr.bf16.mxu0 0
        %946 = vmatpush1.bf16.msra.mxu0 %v899
        %947 = vmatprep.subr.bf16.mxu0 0
        %948 = vmatpush1.bf16.msra.mxu0 %v900
        %949 = vmatprep.mubr.bf16.mxu0 %v818
        %950 = vmatmul.mubr.bf16.gmra.mrb[0].mxu0 %v817
        %v951 = vpop.f32.mrb[0].mxu0
        %v952 = vadd.f32 %v809, %v951
        %v953 = vpop.f32.mrb[0].mxu0
        %v954 = vpop.f32.mrb[0].mxu0
        %v955 = vadd.f32 %v809, %v954
        %v956 = vpop.f32.mrb[0].mxu0
        %957 = vdwg.mxu0
        %v958 = vmax.f32 %v952, 0.0
        %v959 = vmax.f32 %v955, 0.0
        %v960 = vmin.f32 %v958, 6.0
        %v961 = vmin.f32 %v959, 6.0
        %v962 = vld [vmem:[%s647] sm:$0xf]
        %v963 = vld [vmem:[%s647 + $0x4] sm:$0xf]
        %v964 = vld [vmem:[%s647 + $0x8] sm:$0xf]
        %v965 = vld [vmem:[%s647 + $0xc] sm:$0xf]
        %v966 = vld [vmem:[%s647 + $0x10] sm:$0xf]
        %v967 = vld [vmem:[%s647 + $0x14] sm:$0xf]
        %v968 = vld [vmem:[%s647 + $0x18] sm:$0xf]
        %v969 = vld [vmem:[%s647 + $0x1c] sm:$0xf]
        %v970 = vld [vmem:[#allocation14] sm:$0xf]
        %v971 = vld [vmem:[#allocation14 + $0x4] sm:$0xf]
        %v972 = vld [vmem:[#allocation14 + $0x8] sm:$0xf]
        %v973 = vld [vmem:[#allocation14 + $0xc] sm:$0xf]
        %v974 = vld [vmem:[#allocation14 + $0x10] sm:$0xf]
        %v975 = vld [vmem:[#allocation14 + $0x14] sm:$0xf]
        %v976 = vld [vmem:[#allocation14 + $0x18] sm:$0xf]
        %v977 = vld [vmem:[#allocation14 + $0x1c] sm:$0xf]
        %v978 = vld [vmem:[#allocation14 + $0x20] sm:$0xf]
        %v979 = vld [vmem:[#allocation14 + $0x24] sm:$0xf]
        %v980 = vld [vmem:[#allocation14 + $0x28] sm:$0xf]
        %v981 = vld [vmem:[#allocation14 + $0x2c] sm:$0xf]
        %v982 = vld [vmem:[#allocation14 + $0x30] sm:$0xf]
        %v983 = vld [vmem:[#allocation14 + $0x34] sm:$0xf]
        %v984 = vld [vmem:[#allocation14 + $0x38] sm:$0xf]
        %v985 = vld [vmem:[#allocation14 + $0x3c] sm:$0xf]
        %v986 = vld [vmem:[#allocation16] sm:$0x1]
        %v988 = vlaneseq
        %v989 = vshrl.u32 %v988, 7
        %v990 = vsub.s32 0, %v989
        %v991 = vrot.slane %v986, %v990
        %v1001 = vunpack.c.l.b16 %v962
        %v1002 = vunpack.c.l.b16 %v963
        %v1003 = vunpack.c.l.b16 %v964
        %v1004 = vunpack.c.l.b16 %v965
        %v1005 = vunpack.c.l.b16 %v966
        %v1006 = vunpack.c.l.b16 %v967
        %v1007 = vunpack.c.l.b16 %v968
        %v1008 = vunpack.c.l.b16 %v969
        %v1009 = vpack.c.b16 %v1002, %v1001
        %v1010 = vpack.c.b16 %v1004, %v1003
        %v1011 = vpack.c.b16 %v1006, %v1005
        %v1012 = vpack.c.b16 %v1008, %v1007
        %v1033 = vunpack.c.l.b16 %v970
        %v1034 = vunpack.c.l.b16 %v971
        %v1035 = vunpack.c.l.b16 %v972
        %v1036 = vunpack.c.l.b16 %v973
        %v1037 = vunpack.c.l.b16 %v974
        %v1038 = vunpack.c.l.b16 %v975
        %v1039 = vunpack.c.l.b16 %v976
        %v1040 = vunpack.c.l.b16 %v977
        %v1041 = vunpack.c.l.b16 %v978
        %v1042 = vunpack.c.l.b16 %v979
        %v1043 = vunpack.c.l.b16 %v980
        %v1044 = vunpack.c.l.b16 %v981
        %v1045 = vunpack.c.l.b16 %v982
        %v1046 = vunpack.c.l.b16 %v983
        %v1047 = vunpack.c.l.b16 %v984
        %v1048 = vunpack.c.l.b16 %v985
        %v1049 = vpack.c.b16 %v1034, %v1033
        %v1050 = vpack.c.b16 %v1036, %v1035
        %v1051 = vpack.c.b16 %v1038, %v1037
        %v1052 = vpack.c.b16 %v1040, %v1039
        %v1053 = vpack.c.b16 %v1042, %v1041
        %v1054 = vpack.c.b16 %v1044, %v1043
        %v1055 = vpack.c.b16 %v1046, %v1045
        %v1056 = vpack.c.b16 %v1048, %v1047
        %1065 = vmatprep.subr.bf16.mxu0 0
        %1066 = vmatpush1.bf16.msra.mxu0 %v1049
        %1067 = vmatprep.subr.bf16.mxu0 0
        %1068 = vmatpush1.bf16.msra.mxu0 %v1050
        %1069 = vmatprep.subr.bf16.mxu0 0
        %1070 = vmatpush1.bf16.msra.mxu0 %v1051
        %1071 = vmatprep.subr.bf16.mxu0 0
        %1072 = vmatpush1.bf16.msra.mxu0 %v1052
        %1073 = vmatprep.subr.bf16.mxu0 0
        %1074 = vmatpush1.bf16.msra.mxu0 %v1053
        %1075 = vmatprep.subr.bf16.mxu0 0
        %1076 = vmatpush1.bf16.msra.mxu0 %v1054
        %1077 = vmatprep.subr.bf16.mxu0 0
        %1078 = vmatpush1.bf16.msra.mxu0 %v1055
        %1079 = vmatprep.subr.bf16.mxu0 0
        %1080 = vmatpush1.bf16.msra.mxu0 %v1056
        %1081 = vmatprep.subr.bf16.mxu0 0
        %1082 = vmatpush1.bf16.msra.mxu0 0
        %1083 = vmatprep.subr.bf16.mxu0 0
        %1084 = vmatpush1.bf16.msra.mxu0 0
        %1085 = vmatprep.subr.bf16.mxu0 0
        %1086 = vmatpush1.bf16.msra.mxu0 0
        %1087 = vmatprep.subr.bf16.mxu0 0
        %1088 = vmatpush1.bf16.msra.mxu0 0
        %1089 = vmatprep.subr.bf16.mxu0 0
        %1090 = vmatpush1.bf16.msra.mxu0 0
        %1091 = vmatprep.subr.bf16.mxu0 0
        %1092 = vmatpush1.bf16.msra.mxu0 0
        %1093 = vmatprep.subr.bf16.mxu0 0
        %1094 = vmatpush1.bf16.msra.mxu0 0
        %1095 = vmatprep.subr.bf16.mxu0 0
        %1096 = vmatpush1.bf16.msra.mxu0 0
        %1097 = vmatprep.mubr.bf16.mxu0 0
        %1098 = vmatmul.mubr.bf16.gmra.mrb[0].mxu0 %v1009
        %v1099 = vpop.f32.mrb[0].mxu0
        %v1100 = vadd.f32 %v991, %v1099
        %v1101 = vpop.f32.mrb[0].mxu0
        %v1102 = vpop.f32.mrb[0].mxu0
        %v1103 = vadd.f32 %v991, %v1102
        %v1104 = vpop.f32.mrb[0].mxu0
        %1105 = vmatprep.mubr.bf16.mxu0 0
        %1106 = vmatmul.mubr.bf16.gmra.mrb[0].mxu0 %v1010
        %v1107 = vpop.f32.mrb[0].mxu0
        %v1108 = vadd.f32 %v991, %v1107
        %v1109 = vpop.f32.mrb[0].mxu0
        %v1110 = vpop.f32.mrb[0].mxu0
        %v1111 = vadd.f32 %v991, %v1110
        %v1112 = vpop.f32.mrb[0].mxu0
        %1113 = vmatprep.mubr.bf16.mxu0 0
        %1114 = vmatmul.mubr.bf16.gmra.mrb[0].mxu0 %v1011
        %v1115 = vpop.f32.mrb[0].mxu0
        %v1116 = vadd.f32 %v991, %v1115
        %v1117 = vpop.f32.mrb[0].mxu0
        %v1118 = vpop.f32.mrb[0].mxu0
        %v1119 = vadd.f32 %v991, %v1118
        %v1120 = vpop.f32.mrb[0].mxu0
        %1121 = vmatprep.mubr.bf16.mxu0 0
        %1122 = vmatmul.mubr.bf16.gmra.mrb[0].mxu0 %v1012
        %v1123 = vpop.f32.mrb[0].mxu0
        %v1124 = vadd.f32 %v991, %v1123
        %v1125 = vpop.f32.mrb[0].mxu0
        %v1126 = vpop.f32.mrb[0].mxu0
        %v1127 = vadd.f32 %v991, %v1126
        %v1128 = vpop.f32.mrb[0].mxu0
        %1129 = vdwg.mxu0
        %v1130 = vmax.f32 %v1100, 0.0
        %v1131 = vmax.f32 %v1103, 0.0
        %v1132 = vmax.f32 %v1108, 0.0
        %v1133 = vmax.f32 %v1111, 0.0
        %v1134 = vmax.f32 %v1116, 0.0
        %v1135 = vmax.f32 %v1119, 0.0
        %v1136 = vmax.f32 %v1124, 0.0
        %v1137 = vmax.f32 %v1127, 0.0
        %v1138 = vmin.f32 %v1130, 6.0
        %v1139 = vmin.f32 %v1131, 6.0
        %v1140 = vmin.f32 %v1132, 6.0
        %v1141 = vmin.f32 %v1133, 6.0
        %v1142 = vmin.f32 %v1134, 6.0
        %v1143 = vmin.f32 %v1135, 6.0
        %v1144 = vmin.f32 %v1136, 6.0
        %v1145 = vmin.f32 %v1137, 6.0
        %v1146 = vld [vmem:[#allocation8] sm:$0xf]
        %v1147 = vld [vmem:[#allocation8 + $0x4] sm:$0xf]
        %v1148 = vld [vmem:[#allocation8 + $0x8] sm:$0xf]
        %v1149 = vld [vmem:[#allocation8 + $0xc] sm:$0xf]
        %v1150 = vld [vmem:[#allocation8 + $0x10] sm:$0xf]
        %v1151 = vld [vmem:[#allocation8 + $0x14] sm:$0xf]
        %v1152 = vld [vmem:[#allocation8 + $0x18] sm:$0xf]
        %v1153 = vld [vmem:[#allocation8 + $0x1c] sm:$0xf]
        %v1154 = vld [vmem:[#allocation8 + $0x20] sm:$0xf]
        %v1155 = vld [vmem:[#allocation8 + $0x24] sm:$0xf]
        %v1156 = vld [vmem:[#allocation8 + $0x28] sm:$0xf]
        %v1157 = vld [vmem:[#allocation8 + $0x2c] sm:$0xf]
        %v1158 = vld [vmem:[#allocation8 + $0x30] sm:$0xf]
        %v1159 = vld [vmem:[#allocation8 + $0x34] sm:$0xf]
        %v1160 = vld [vmem:[#allocation8 + $0x38] sm:$0xf]
        %v1161 = vld [vmem:[#allocation8 + $0x3c] sm:$0xf]
        %v1162 = vld [vmem:[#allocation8 + $0x40] sm:$0xf]
        %v1163 = vld [vmem:[#allocation8 + $0x44] sm:$0xf]
        %v1164 = vld [vmem:[#allocation8 + $0x48] sm:$0xf]
        %v1165 = vld [vmem:[#allocation8 + $0x4c] sm:$0xf]
        %v1166 = vld [vmem:[#allocation8 + $0x50] sm:$0xf]
        %v1167 = vld [vmem:[#allocation8 + $0x54] sm:$0xf]
        %v1168 = vld [vmem:[#allocation8 + $0x58] sm:$0xf]
        %v1169 = vld [vmem:[#allocation8 + $0x5c] sm:$0xf]
        %v1170 = vld [vmem:[#allocation8 + $0x60] sm:$0xf]
        %v1171 = vld [vmem:[#allocation8 + $0x64] sm:$0xf]
        %v1172 = vld [vmem:[#allocation8 + $0x68] sm:$0xf]
        %v1173 = vld [vmem:[#allocation8 + $0x6c] sm:$0xf]
        %v1174 = vld [vmem:[#allocation8 + $0x70] sm:$0xf]
        %v1175 = vld [vmem:[#allocation8 + $0x74] sm:$0xf]
        %v1176 = vld [vmem:[#allocation8 + $0x78] sm:$0xf]
        %v1177 = vld [vmem:[#allocation8 + $0x7c] sm:$0xf]
        %v1178 = vpack.c.bf16 %v961, %v960
        %v1211 = vunpack.c.l.b16 %v1146
        %v1212 = vunpack.c.l.b16 %v1147
        %v1213 = vunpack.c.l.b16 %v1148
        %v1214 = vunpack.c.l.b16 %v1149
        %v1215 = vunpack.c.l.b16 %v1150
        %v1216 = vunpack.c.l.b16 %v1151
        %v1217 = vunpack.c.l.b16 %v1152
        %v1218 = vunpack.c.l.b16 %v1153
        %v1219 = vunpack.c.l.b16 %v1154
        %v1220 = vunpack.c.l.b16 %v1155
        %v1221 = vunpack.c.l.b16 %v1156
        %v1222 = vunpack.c.l.b16 %v1157
        %v1223 = vunpack.c.l.b16 %v1158
        %v1224 = vunpack.c.l.b16 %v1159
        %v1225 = vunpack.c.l.b16 %v1160
        %v1226 = vunpack.c.l.b16 %v1161
        %v1227 = vunpack.c.l.b16 %v1162
        %v1228 = vunpack.c.l.b16 %v1163
        %v1229 = vunpack.c.l.b16 %v1164
        %v1230 = vunpack.c.l.b16 %v1165
        %v1231 = vunpack.c.l.b16 %v1166
        %v1232 = vunpack.c.l.b16 %v1167
        %v1233 = vunpack.c.l.b16 %v1168
        %v1234 = vunpack.c.l.b16 %v1169
        %v1235 = vunpack.c.l.b16 %v1170
        %v1236 = vunpack.c.l.b16 %v1171
        %v1237 = vunpack.c.l.b16 %v1172
        %v1238 = vunpack.c.l.b16 %v1173
        %v1239 = vunpack.c.l.b16 %v1174
        %v1240 = vunpack.c.l.b16 %v1175
        %v1241 = vunpack.c.l.b16 %v1176
        %v1242 = vunpack.c.l.b16 %v1177
        %v1243 = vpack.c.b16 %v1212, %v1211
        %v1244 = vpack.c.b16 %v1214, %v1213
        %v1245 = vpack.c.b16 %v1216, %v1215
        %v1246 = vpack.c.b16 %v1218, %v1217
        %v1247 = vpack.c.b16 %v1220, %v1219
        %v1248 = vpack.c.b16 %v1222, %v1221
        %v1249 = vpack.c.b16 %v1224, %v1223
        %v1250 = vpack.c.b16 %v1226, %v1225
        %v1251 = vpack.c.b16 %v1228, %v1227
        %v1252 = vpack.c.b16 %v1230, %v1229
        %v1253 = vpack.c.b16 %v1232, %v1231
        %v1254 = vpack.c.b16 %v1234, %v1233
        %v1255 = vpack.c.b16 %v1236, %v1235
        %v1256 = vpack.c.b16 %v1238, %v1237
        %v1257 = vpack.c.b16 %v1240, %v1239
        %v1258 = vpack.c.b16 %v1242, %v1241
        %vm1259 = vcmask 130048
        %v1261 = vsel %vm1259, %v1243, 0
        %v1264 = vsel %vm1259, %v1244, 0
        %v1267 = vsel %vm1259, %v1245, 0
        %v1270 = vsel %vm1259, %v1246, 0
        %v1273 = vsel %vm1259, %v1247, 0
        %v1276 = vsel %vm1259, %v1248, 0
        %v1279 = vsel %vm1259, %v1249, 0
        %v1282 = vsel %vm1259, %v1250, 0
        %v1285 = vsel %vm1259, %v1251, 0
        %v1288 = vsel %vm1259, %v1252, 0
        %v1291 = vsel %vm1259, %v1253, 0
        %v1294 = vsel %vm1259, %v1254, 0
        %v1297 = vsel %vm1259, %v1255, 0
        %v1300 = vsel %vm1259, %v1256, 0
        %v1303 = vsel %vm1259, %v1257, 0
        %v1306 = vsel %vm1259, %v1258, 0
        %1308 = vmatprep.subr.bf16.mxu0 0
        %1309 = vmatpush1.bf16.msra.mxu0 %v1178
        %1310 = vmatprep.subr.bf16.mxu0 0
        %1311 = vmatpush1.bf16.msra.mxu0 0
        %1312 = vmatprep.subr.bf16.mxu0 0
        %1313 = vmatpush1.bf16.msra.mxu0 0
        %1314 = vmatprep.subr.bf16.mxu0 0
        %1315 = vmatpush1.bf16.msra.mxu0 0
        %1316 = vmatprep.subr.bf16.mxu0 0
        %1317 = vmatpush1.bf16.msra.mxu0 0
        %1318 = vmatprep.subr.bf16.mxu0 0
        %1319 = vmatpush1.bf16.msra.mxu0 0
        %1320 = vmatprep.subr.bf16.mxu0 0
        %1321 = vmatpush1.bf16.msra.mxu0 0
        %1322 = vmatprep.subr.bf16.mxu0 0
        %1323 = vmatpush1.bf16.msra.mxu0 0
        %1324 = vmatprep.subr.bf16.mxu0 0
        %1325 = vmatpush1.bf16.msra.mxu0 0
        %1326 = vmatprep.subr.bf16.mxu0 0
        %1327 = vmatpush1.bf16.msra.mxu0 0
        %1328 = vmatprep.subr.bf16.mxu0 0
        %1329 = vmatpush1.bf16.msra.mxu0 0
        %1330 = vmatprep.subr.bf16.mxu0 0
        %1331 = vmatpush1.bf16.msra.mxu0 0
        %1332 = vmatprep.subr.bf16.mxu0 0
        %1333 = vmatpush1.bf16.msra.mxu0 0
        %1334 = vmatprep.subr.bf16.mxu0 0
        %1335 = vmatpush1.bf16.msra.mxu0 0
        %1336 = vmatprep.subr.bf16.mxu0 0
        %1337 = vmatpush1.bf16.msra.mxu0 0
        %1338 = vmatprep.subr.bf16.mxu0 0
        %1339 = vmatpush1.bf16.msra.mxu0 0
        %1340 = vmatprep.mubr.bf16.mxu0 0
        %1341 = vmatmul.mubr.bf16.gmra.mrb[0].mxu0 %v1261
        %v1342 = vpop.f32.mrb[0].mxu0
        %v1343 = vadd.f32 0.0, %v1342
        %v1344 = vpop.f32.mrb[0].mxu0
        %v1345 = vpop.f32.mrb[0].mxu0
        %v1346 = vadd.f32 0.0, %v1345
        %v1347 = vpop.f32.mrb[0].mxu0
        %1348 = vmatprep.mubr.bf16.mxu0 0
        %1349 = vmatmul.mubr.bf16.gmra.mrb[0].mxu0 %v1264
        %v1350 = vpop.f32.mrb[0].mxu0
        %v1351 = vadd.f32 0.0, %v1350
        %v1352 = vpop.f32.mrb[0].mxu0
        %v1353 = vpop.f32.mrb[0].mxu0
        %v1354 = vadd.f32 0.0, %v1353
        %v1355 = vpop.f32.mrb[0].mxu0
        %1356 = vmatprep.mubr.bf16.mxu0 0
        %1357 = vmatmul.mubr.bf16.gmra.mrb[0].mxu0 %v1267
        %v1358 = vpop.f32.mrb[0].mxu0
        %v1359 = vadd.f32 0.0, %v1358
        %v1360 = vpop.f32.mrb[0].mxu0
        %v1361 = vpop.f32.mrb[0].mxu0
        %v1362 = vadd.f32 0.0, %v1361
        %v1363 = vpop.f32.mrb[0].mxu0
        %1364 = vmatprep.mubr.bf16.mxu0 0
        %1365 = vmatmul.mubr.bf16.gmra.mrb[0].mxu0 %v1270
        %v1366 = vpop.f32.mrb[0].mxu0
        %v1367 = vadd.f32 0.0, %v1366
        %v1368 = vpop.f32.mrb[0].mxu0
        %v1369 = vpop.f32.mrb[0].mxu0
        %v1370 = vadd.f32 0.0, %v1369
        %v1371 = vpop.f32.mrb[0].mxu0
        %1372 = vmatprep.mubr.bf16.mxu0 0
        %1373 = vmatmul.mubr.bf16.gmra.mrb[0].mxu0 %v1273
        %v1374 = vpop.f32.mrb[0].mxu0
        %v1375 = vadd.f32 0.0, %v1374
        %v1376 = vpop.f32.mrb[0].mxu0
        %v1377 = vpop.f32.mrb[0].mxu0
        %v1378 = vadd.f32 0.0, %v1377
        %v1379 = vpop.f32.mrb[0].mxu0
        %1380 = vmatprep.mubr.bf16.mxu0 0
        %1381 = vmatmul.mubr.bf16.gmra.mrb[0].mxu0 %v1276
        %v1382 = vpop.f32.mrb[0].mxu0
        %v1383 = vadd.f32 0.0, %v1382
        %v1384 = vpop.f32.mrb[0].mxu0
        %v1385 = vpop.f32.mrb[0].mxu0
        %v1386 = vadd.f32 0.0, %v1385
        %v1387 = vpop.f32.mrb[0].mxu0
        %1388 = vmatprep.mubr.bf16.mxu0 0
        %1389 = vmatmul.mubr.bf16.gmra.mrb[0].mxu0 %v1279
        %v1390 = vpop.f32.mrb[0].mxu0
        %v1391 = vadd.f32 0.0, %v1390
        %v1392 = vpop.f32.mrb[0].mxu0
        %v1393 = vpop.f32.mrb[0].mxu0
        %v1394 = vadd.f32 0.0, %v1393
        %v1395 = vpop.f32.mrb[0].mxu0
        %1396 = vmatprep.mubr.bf16.mxu0 0
        %1397 = vmatmul.mubr.bf16.gmra.mrb[0].mxu0 %v1282
        %v1398 = vpop.f32.mrb[0].mxu0
        %v1399 = vadd.f32 0.0, %v1398
        %v1400 = vpop.f32.mrb[0].mxu0
        %v1401 = vpop.f32.mrb[0].mxu0
        %v1402 = vadd.f32 0.0, %v1401
        %v1403 = vpop.f32.mrb[0].mxu0
        %1404 = vmatprep.mubr.bf16.mxu0 0
        %1405 = vmatmul.mubr.bf16.gmra.mrb[0].mxu0 %v1285
        %v1406 = vpop.f32.mrb[0].mxu0
        %v1407 = vadd.f32 0.0, %v1406
        %v1408 = vpop.f32.mrb[0].mxu0
        %v1409 = vpop.f32.mrb[0].mxu0
        %v1410 = vadd.f32 0.0, %v1409
        %v1411 = vpop.f32.mrb[0].mxu0
        %1412 = vmatprep.mubr.bf16.mxu0 0
        %1413 = vmatmul.mubr.bf16.gmra.mrb[0].mxu0 %v1288
        %v1414 = vpop.f32.mrb[0].mxu0
        %v1415 = vadd.f32 0.0, %v1414
        %v1416 = vpop.f32.mrb[0].mxu0
        %v1417 = vpop.f32.mrb[0].mxu0
        %v1418 = vadd.f32 0.0, %v1417
        %v1419 = vpop.f32.mrb[0].mxu0
        %1420 = vmatprep.mubr.bf16.mxu0 0
        %1421 = vmatmul.mubr.bf16.gmra.mrb[0].mxu0 %v1291
        %v1422 = vpop.f32.mrb[0].mxu0
        %v1423 = vadd.f32 0.0, %v1422
        %v1424 = vpop.f32.mrb[0].mxu0
        %v1425 = vpop.f32.mrb[0].mxu0
        %v1426 = vadd.f32 0.0, %v1425
        %v1427 = vpop.f32.mrb[0].mxu0
        %1428 = vmatprep.mubr.bf16.mxu0 0
        %1429 = vmatmul.mubr.bf16.gmra.mrb[0].mxu0 %v1294
        %v1430 = vpop.f32.mrb[0].mxu0
        %v1431 = vadd.f32 0.0, %v1430
        %v1432 = vpop.f32.mrb[0].mxu0
        %v1433 = vpop.f32.mrb[0].mxu0
        %v1434 = vadd.f32 0.0, %v1433
        %v1435 = vpop.f32.mrb[0].mxu0
        %1436 = vmatprep.mubr.bf16.mxu0 0
        %1437 = vmatmul.mubr.bf16.gmra.mrb[0].mxu0 %v1297
        %v1438 = vpop.f32.mrb[0].mxu0
        %v1439 = vadd.f32 0.0, %v1438
        %v1440 = vpop.f32.mrb[0].mxu0
        %v1441 = vpop.f32.mrb[0].mxu0
        %v1442 = vadd.f32 0.0, %v1441
        %v1443 = vpop.f32.mrb[0].mxu0
        %1444 = vmatprep.mubr.bf16.mxu0 0
        %1445 = vmatmul.mubr.bf16.gmra.mrb[0].mxu0 %v1300
        %v1446 = vpop.f32.mrb[0].mxu0
        %v1447 = vadd.f32 0.0, %v1446
        %v1448 = vpop.f32.mrb[0].mxu0
        %v1449 = vpop.f32.mrb[0].mxu0
        %v1450 = vadd.f32 0.0, %v1449
        %v1451 = vpop.f32.mrb[0].mxu0
        %1452 = vmatprep.mubr.bf16.mxu0 0
        %1453 = vmatmul.mubr.bf16.gmra.mrb[0].mxu0 %v1303
        %v1454 = vpop.f32.mrb[0].mxu0
        %v1455 = vadd.f32 0.0, %v1454
        %v1456 = vpop.f32.mrb[0].mxu0
        %v1457 = vpop.f32.mrb[0].mxu0
        %v1458 = vadd.f32 0.0, %v1457
        %v1459 = vpop.f32.mrb[0].mxu0
        %1460 = vmatprep.mubr.bf16.mxu0 0
        %1461 = vmatmul.mubr.bf16.gmra.mrb[0].mxu0 %v1306
        %v1462 = vpop.f32.mrb[0].mxu0
        %v1463 = vadd.f32 0.0, %v1462
        %v1464 = vpop.f32.mrb[0].mxu0
        %v1465 = vpop.f32.mrb[0].mxu0
        %v1466 = vadd.f32 0.0, %v1465
        %v1467 = vpop.f32.mrb[0].mxu0
        %1468 = vdwg.mxu0
        %v1469 = vld [vmem:[#allocation10] sm:$0xf]
        %v1470 = vld [vmem:[#allocation10 + $0x4] sm:$0xf]
        %v1471 = vld [vmem:[#allocation10 + $0x8] sm:$0xf]
        %v1472 = vld [vmem:[#allocation10 + $0xc] sm:$0xf]
        %v1473 = vld [vmem:[#allocation10 + $0x10] sm:$0xf]
        %v1474 = vld [vmem:[#allocation10 + $0x14] sm:$0xf]
        %v1475 = vld [vmem:[#allocation10 + $0x18] sm:$0xf]
        %v1476 = vld [vmem:[#allocation10 + $0x1c] sm:$0xf]
        %v1477 = vld [vmem:[#allocation10 + $0x20] sm:$0xf]
        %v1478 = vld [vmem:[#allocation10 + $0x24] sm:$0xf]
        %v1479 = vld [vmem:[#allocation10 + $0x28] sm:$0xf]
        %v1480 = vld [vmem:[#allocation10 + $0x2c] sm:$0xf]
        %v1481 = vld [vmem:[#allocation10 + $0x30] sm:$0xf]
        %v1482 = vld [vmem:[#allocation10 + $0x34] sm:$0xf]
        %v1483 = vld [vmem:[#allocation10 + $0x38] sm:$0xf]
        %v1484 = vld [vmem:[#allocation10 + $0x3c] sm:$0xf]
        %v1485 = vld [vmem:[#allocation10 + $0x40] sm:$0xf]
        %v1486 = vld [vmem:[#allocation10 + $0x44] sm:$0xf]
        %v1487 = vld [vmem:[#allocation10 + $0x48] sm:$0xf]
        %v1488 = vld [vmem:[#allocation10 + $0x4c] sm:$0xf]
        %v1489 = vld [vmem:[#allocation10 + $0x50] sm:$0xf]
        %v1490 = vld [vmem:[#allocation10 + $0x54] sm:$0xf]
        %v1491 = vld [vmem:[#allocation10 + $0x58] sm:$0xf]
        %v1492 = vld [vmem:[#allocation10 + $0x5c] sm:$0xf]
        %v1493 = vld [vmem:[#allocation10 + $0x60] sm:$0xf]
        %v1494 = vld [vmem:[#allocation10 + $0x64] sm:$0xf]
        %v1495 = vld [vmem:[#allocation10 + $0x68] sm:$0xf]
        %v1496 = vld [vmem:[#allocation10 + $0x6c] sm:$0xf]
        %v1497 = vld [vmem:[#allocation10 + $0x70] sm:$0xf]
        %v1498 = vld [vmem:[#allocation10 + $0x74] sm:$0xf]
        %v1499 = vld [vmem:[#allocation10 + $0x78] sm:$0xf]
        %v1500 = vld [vmem:[#allocation10 + $0x7c] sm:$0xf]
        %v1501 = vpack.c.bf16 %v1139, %v1138
        %v1502 = vpack.c.bf16 %v1141, %v1140
        %v1503 = vpack.c.bf16 %v1143, %v1142
        %v1504 = vpack.c.bf16 %v1145, %v1144
        %v1537 = vunpack.c.l.b16 %v1469
        %v1538 = vunpack.c.l.b16 %v1470
        %v1539 = vunpack.c.l.b16 %v1471
        %v1540 = vunpack.c.l.b16 %v1472
        %v1541 = vunpack.c.l.b16 %v1473
        %v1542 = vunpack.c.l.b16 %v1474
        %v1543 = vunpack.c.l.b16 %v1475
        %v1544 = vunpack.c.l.b16 %v1476
        %v1545 = vunpack.c.l.b16 %v1477
        %v1546 = vunpack.c.l.b16 %v1478
        %v1547 = vunpack.c.l.b16 %v1479
        %v1548 = vunpack.c.l.b16 %v1480
        %v1549 = vunpack.c.l.b16 %v1481
        %v1550 = vunpack.c.l.b16 %v1482
        %v1551 = vunpack.c.l.b16 %v1483
        %v1552 = vunpack.c.l.b16 %v1484
        %v1553 = vunpack.c.l.b16 %v1485
        %v1554 = vunpack.c.l.b16 %v1486
        %v1555 = vunpack.c.l.b16 %v1487
        %v1556 = vunpack.c.l.b16 %v1488
        %v1557 = vunpack.c.l.b16 %v1489
        %v1558 = vunpack.c.l.b16 %v1490
        %v1559 = vunpack.c.l.b16 %v1491
        %v1560 = vunpack.c.l.b16 %v1492
        %v1561 = vunpack.c.l.b16 %v1493
        %v1562 = vunpack.c.l.b16 %v1494
        %v1563 = vunpack.c.l.b16 %v1495
        %v1564 = vunpack.c.l.b16 %v1496
        %v1565 = vunpack.c.l.b16 %v1497
        %v1566 = vunpack.c.l.b16 %v1498
        %v1567 = vunpack.c.l.b16 %v1499
        %v1568 = vunpack.c.l.b16 %v1500
        %v1569 = vpack.c.b16 %v1538, %v1537
        %v1570 = vpack.c.b16 %v1540, %v1539
        %v1571 = vpack.c.b16 %v1542, %v1541
        %v1572 = vpack.c.b16 %v1544, %v1543
        %v1573 = vpack.c.b16 %v1546, %v1545
        %v1574 = vpack.c.b16 %v1548, %v1547
        %v1575 = vpack.c.b16 %v1550, %v1549
        %v1576 = vpack.c.b16 %v1552, %v1551
        %v1577 = vpack.c.b16 %v1554, %v1553
        %v1578 = vpack.c.b16 %v1556, %v1555
        %v1579 = vpack.c.b16 %v1558, %v1557
        %v1580 = vpack.c.b16 %v1560, %v1559
        %v1581 = vpack.c.b16 %v1562, %v1561
        %v1582 = vpack.c.b16 %v1564, %v1563
        %v1583 = vpack.c.b16 %v1566, %v1565
        %v1584 = vpack.c.b16 %v1568, %v1567
        %vm1585 = vcmask 523264
        %v1587 = vsel %vm1585, %v1569, 0
        %v1590 = vsel %vm1585, %v1570, 0
        %v1593 = vsel %vm1585, %v1571, 0
        %v1596 = vsel %vm1585, %v1572, 0
        %v1599 = vsel %vm1585, %v1573, 0
        %v1602 = vsel %vm1585, %v1574, 0
        %v1605 = vsel %vm1585, %v1575, 0
        %v1608 = vsel %vm1585, %v1576, 0
        %v1611 = vsel %vm1585, %v1577, 0
        %v1614 = vsel %vm1585, %v1578, 0
        %v1617 = vsel %vm1585, %v1579, 0
        %v1620 = vsel %vm1585, %v1580, 0
        %v1623 = vsel %vm1585, %v1581, 0
        %v1626 = vsel %vm1585, %v1582, 0
        %v1629 = vsel %vm1585, %v1583, 0
        %v1632 = vsel %vm1585, %v1584, 0
        %1634 = vmatprep.subr.bf16.mxu0 0
        %1635 = vmatpush1.bf16.msra.mxu0 %v1501
        %1636 = vmatprep.subr.bf16.mxu0 0
        %1637 = vmatpush1.bf16.msra.mxu0 %v1502
        %1638 = vmatprep.subr.bf16.mxu0 0
        %1639 = vmatpush1.bf16.msra.mxu0 %v1503
        %1640 = vmatprep.subr.bf16.mxu0 0
        %1641 = vmatpush1.bf16.msra.mxu0 %v1504
        %1642 = vmatprep.subr.bf16.mxu0 0
        %1643 = vmatpush1.bf16.msra.mxu0 0
        %1644 = vmatprep.subr.bf16.mxu0 0
        %1645 = vmatpush1.bf16.msra.mxu0 0
        %1646 = vmatprep.subr.bf16.mxu0 0
        %1647 = vmatpush1.bf16.msra.mxu0 0
        %1648 = vmatprep.subr.bf16.mxu0 0
        %1649 = vmatpush1.bf16.msra.mxu0 0
        %1650 = vmatprep.subr.bf16.mxu0 0
        %1651 = vmatpush1.bf16.msra.mxu0 0
        %1652 = vmatprep.subr.bf16.mxu0 0
        %1653 = vmatpush1.bf16.msra.mxu0 0
        %1654 = vmatprep.subr.bf16.mxu0 0
        %1655 = vmatpush1.bf16.msra.mxu0 0
        %1656 = vmatprep.subr.bf16.mxu0 0
        %1657 = vmatpush1.bf16.msra.mxu0 0
        %1658 = vmatprep.subr.bf16.mxu0 0
        %1659 = vmatpush1.bf16.msra.mxu0 0
        %1660 = vmatprep.subr.bf16.mxu0 0
        %1661 = vmatpush1.bf16.msra.mxu0 0
        %1662 = vmatprep.subr.bf16.mxu0 0
        %1663 = vmatpush1.bf16.msra.mxu0 0
        %1664 = vmatprep.subr.bf16.mxu0 0
        %1665 = vmatpush1.bf16.msra.mxu0 0
        %1666 = vmatprep.mubr.bf16.mxu0 0
        %1667 = vmatmul.mubr.bf16.gmra.mrb[0].mxu0 %v1587
        %v1668 = vpop.f32.mrb[0].mxu0
        %v1669 = vadd.f32 0.0, %v1668
        %v1670 = vpop.f32.mrb[0].mxu0
        %v1671 = vpop.f32.mrb[0].mxu0
        %v1672 = vadd.f32 0.0, %v1671
        %v1673 = vpop.f32.mrb[0].mxu0
        %1674 = vmatprep.mubr.bf16.mxu0 0
        %1675 = vmatmul.mubr.bf16.gmra.mrb[0].mxu0 %v1590
        %v1676 = vpop.f32.mrb[0].mxu0
        %v1677 = vadd.f32 0.0, %v1676
        %v1678 = vpop.f32.mrb[0].mxu0
        %v1679 = vpop.f32.mrb[0].mxu0
        %v1680 = vadd.f32 0.0, %v1679
        %v1681 = vpop.f32.mrb[0].mxu0
        %1682 = vmatprep.mubr.bf16.mxu0 0
        %1683 = vmatmul.mubr.bf16.gmra.mrb[0].mxu0 %v1593
        %v1684 = vpop.f32.mrb[0].mxu0
        %v1685 = vadd.f32 0.0, %v1684
        %v1686 = vpop.f32.mrb[0].mxu0
        %v1687 = vpop.f32.mrb[0].mxu0
        %v1688 = vadd.f32 0.0, %v1687
        %v1689 = vpop.f32.mrb[0].mxu0
        %1690 = vmatprep.mubr.bf16.mxu0 0
        %1691 = vmatmul.mubr.bf16.gmra.mrb[0].mxu0 %v1596
        %v1692 = vpop.f32.mrb[0].mxu0
        %v1693 = vadd.f32 0.0, %v1692
        %v1694 = vpop.f32.mrb[0].mxu0
        %v1695 = vpop.f32.mrb[0].mxu0
        %v1696 = vadd.f32 0.0, %v1695
        %v1697 = vpop.f32.mrb[0].mxu0
        %1698 = vmatprep.mubr.bf16.mxu0 0
        %1699 = vmatmul.mubr.bf16.gmra.mrb[0].mxu0 %v1599
        %v1700 = vpop.f32.mrb[0].mxu0
        %v1701 = vadd.f32 0.0, %v1700
        %v1702 = vpop.f32.mrb[0].mxu0
        %v1703 = vpop.f32.mrb[0].mxu0
        %v1704 = vadd.f32 0.0, %v1703
        %v1705 = vpop.f32.mrb[0].mxu0
        %1706 = vmatprep.mubr.bf16.mxu0 0
        %1707 = vmatmul.mubr.bf16.gmra.mrb[0].mxu0 %v1602
        %v1708 = vpop.f32.mrb[0].mxu0
        %v1709 = vadd.f32 0.0, %v1708
        %v1710 = vpop.f32.mrb[0].mxu0
        %v1711 = vpop.f32.mrb[0].mxu0
        %v1712 = vadd.f32 0.0, %v1711
        %v1713 = vpop.f32.mrb[0].mxu0
        %1714 = vmatprep.mubr.bf16.mxu0 0
        %1715 = vmatmul.mubr.bf16.gmra.mrb[0].mxu0 %v1605
        %v1716 = vpop.f32.mrb[0].mxu0
        %v1717 = vadd.f32 0.0, %v1716
        %v1718 = vpop.f32.mrb[0].mxu0
        %v1719 = vpop.f32.mrb[0].mxu0
        %v1720 = vadd.f32 0.0, %v1719
        %v1721 = vpop.f32.mrb[0].mxu0
        %1722 = vmatprep.mubr.bf16.mxu0 0
        %1723 = vmatmul.mubr.bf16.gmra.mrb[0].mxu0 %v1608
        %v1724 = vpop.f32.mrb[0].mxu0
        %v1725 = vadd.f32 0.0, %v1724
        %v1726 = vpop.f32.mrb[0].mxu0
        %v1727 = vpop.f32.mrb[0].mxu0
        %v1728 = vadd.f32 0.0, %v1727
        %v1729 = vpop.f32.mrb[0].mxu0
        %1730 = vmatprep.mubr.bf16.mxu0 0
        %1731 = vmatmul.mubr.bf16.gmra.mrb[0].mxu0 %v1611
        %v1732 = vpop.f32.mrb[0].mxu0
        %v1733 = vadd.f32 0.0, %v1732
        %v1734 = vpop.f32.mrb[0].mxu0
        %v1735 = vpop.f32.mrb[0].mxu0
        %v1736 = vadd.f32 0.0, %v1735
        %v1737 = vpop.f32.mrb[0].mxu0
        %1738 = vmatprep.mubr.bf16.mxu0 0
        %1739 = vmatmul.mubr.bf16.gmra.mrb[0].mxu0 %v1614
        %v1740 = vpop.f32.mrb[0].mxu0
        %v1741 = vadd.f32 0.0, %v1740
        %v1742 = vpop.f32.mrb[0].mxu0
        %v1743 = vpop.f32.mrb[0].mxu0
        %v1744 = vadd.f32 0.0, %v1743
        %v1745 = vpop.f32.mrb[0].mxu0
        %1746 = vmatprep.mubr.bf16.mxu0 0
        %1747 = vmatmul.mubr.bf16.gmra.mrb[0].mxu0 %v1617
        %v1748 = vpop.f32.mrb[0].mxu0
        %v1749 = vadd.f32 0.0, %v1748
        %v1750 = vpop.f32.mrb[0].mxu0
        %v1751 = vpop.f32.mrb[0].mxu0
        %v1752 = vadd.f32 0.0, %v1751
        %v1753 = vpop.f32.mrb[0].mxu0
        %1754 = vmatprep.mubr.bf16.mxu0 0
        %1755 = vmatmul.mubr.bf16.gmra.mrb[0].mxu0 %v1620
        %v1756 = vpop.f32.mrb[0].mxu0
        %v1757 = vadd.f32 0.0, %v1756
        %v1758 = vpop.f32.mrb[0].mxu0
        %v1759 = vpop.f32.mrb[0].mxu0
        %v1760 = vadd.f32 0.0, %v1759
        %v1761 = vpop.f32.mrb[0].mxu0
        %1762 = vmatprep.mubr.bf16.mxu0 0
        %1763 = vmatmul.mubr.bf16.gmra.mrb[0].mxu0 %v1623
        %v1764 = vpop.f32.mrb[0].mxu0
        %v1765 = vadd.f32 0.0, %v1764
        %v1766 = vpop.f32.mrb[0].mxu0
        %v1767 = vpop.f32.mrb[0].mxu0
        %v1768 = vadd.f32 0.0, %v1767
        %v1769 = vpop.f32.mrb[0].mxu0
        %1770 = vmatprep.mubr.bf16.mxu0 0
        %1771 = vmatmul.mubr.bf16.gmra.mrb[0].mxu0 %v1626
        %v1772 = vpop.f32.mrb[0].mxu0
        %v1773 = vadd.f32 0.0, %v1772
        %v1774 = vpop.f32.mrb[0].mxu0
        %v1775 = vpop.f32.mrb[0].mxu0
        %v1776 = vadd.f32 0.0, %v1775
        %v1777 = vpop.f32.mrb[0].mxu0
        %1778 = vmatprep.mubr.bf16.mxu0 0
        %1779 = vmatmul.mubr.bf16.gmra.mrb[0].mxu0 %v1629
        %v1780 = vpop.f32.mrb[0].mxu0
        %v1781 = vadd.f32 0.0, %v1780
        %v1782 = vpop.f32.mrb[0].mxu0
        %v1783 = vpop.f32.mrb[0].mxu0
        %v1784 = vadd.f32 0.0, %v1783
        %v1785 = vpop.f32.mrb[0].mxu0
        %1786 = vmatprep.mubr.bf16.mxu0 0
        %1787 = vmatmul.mubr.bf16.gmra.mrb[0].mxu0 %v1632
        %v1788 = vpop.f32.mrb[0].mxu0
        %v1789 = vadd.f32 0.0, %v1788
        %v1790 = vpop.f32.mrb[0].mxu0
        %v1791 = vpop.f32.mrb[0].mxu0
        %v1792 = vadd.f32 0.0, %v1791
        %v1793 = vpop.f32.mrb[0].mxu0
        %1794 = vdwg.mxu0
        %v1795 = vld [vmem:[%s656] sm:$0xf]
        %v1796 = vld [vmem:[%s656 + $0x4] sm:$0xf]
        %v1797 = vld [vmem:[%s656 + $0x8] sm:$0xf]
        %v1798 = vld [vmem:[%s656 + $0xc] sm:$0xf]
        %v1799 = vld [vmem:[%s656 + $0x10] sm:$0xf]
        %v1800 = vld [vmem:[%s656 + $0x14] sm:$0xf]
        %v1801 = vld [vmem:[%s656 + $0x18] sm:$0xf]
        %v1802 = vld [vmem:[%s656 + $0x1c] sm:$0xf]
        %v1803 = vld [vmem:[%s656 + $0x20] sm:$0xf]
        %v1804 = vld [vmem:[%s656 + $0x24] sm:$0xf]
        %v1805 = vld [vmem:[%s656 + $0x28] sm:$0xf]
        %v1806 = vld [vmem:[%s656 + $0x2c] sm:$0xf]
        %v1807 = vld [vmem:[%s656 + $0x30] sm:$0xf]
        %v1808 = vld [vmem:[%s656 + $0x34] sm:$0xf]
        %v1809 = vld [vmem:[%s656 + $0x38] sm:$0xf]
        %v1810 = vld [vmem:[%s656 + $0x3c] sm:$0xf]
        %v1811 = vld [vmem:[%s656 + $0x40] sm:$0xf]
        %v1812 = vld [vmem:[%s656 + $0x44] sm:$0xf]
        %v1813 = vld [vmem:[%s656 + $0x48] sm:$0xf]
        %v1814 = vld [vmem:[%s656 + $0x4c] sm:$0xf]
        %v1815 = vld [vmem:[%s656 + $0x50] sm:$0xf]
        %v1816 = vld [vmem:[%s656 + $0x54] sm:$0xf]
        %v1817 = vld [vmem:[%s656 + $0x58] sm:$0xf]
        %v1818 = vld [vmem:[%s656 + $0x5c] sm:$0xf]
        %v1819 = vld [vmem:[%s656 + $0x60] sm:$0xf]
        %v1820 = vld [vmem:[%s656 + $0x64] sm:$0xf]
        %v1821 = vld [vmem:[%s656 + $0x68] sm:$0xf]
        %v1822 = vld [vmem:[%s656 + $0x6c] sm:$0xf]
        %v1823 = vld [vmem:[%s656 + $0x70] sm:$0xf]
        %v1824 = vld [vmem:[%s656 + $0x74] sm:$0xf]
        %v1825 = vld [vmem:[%s656 + $0x78] sm:$0xf]
        %v1826 = vld [vmem:[%s656 + $0x7c] sm:$0xf]
        %v1827 = vunpack.c.l.bf16 %v1795
        %v1828 = vunpack.c.l.bf16 %v1796
        %v1829 = vunpack.c.l.bf16 %v1797
        %v1830 = vunpack.c.l.bf16 %v1798
        %v1831 = vunpack.c.l.bf16 %v1799
        %v1832 = vunpack.c.l.bf16 %v1800
        %v1833 = vunpack.c.l.bf16 %v1801
        %v1834 = vunpack.c.l.bf16 %v1802
        %v1835 = vunpack.c.l.bf16 %v1803
        %v1836 = vunpack.c.l.bf16 %v1804
        %v1837 = vunpack.c.l.bf16 %v1805
        %v1838 = vunpack.c.l.bf16 %v1806
        %v1839 = vunpack.c.l.bf16 %v1807
        %v1840 = vunpack.c.l.bf16 %v1808
        %v1841 = vunpack.c.l.bf16 %v1809
        %v1842 = vunpack.c.l.bf16 %v1810
        %v1843 = vunpack.c.l.bf16 %v1811
        %v1844 = vunpack.c.l.bf16 %v1812
        %v1845 = vunpack.c.l.bf16 %v1813
        %v1846 = vunpack.c.l.bf16 %v1814
        %v1847 = vunpack.c.l.bf16 %v1815
        %v1848 = vunpack.c.l.bf16 %v1816
        %v1849 = vunpack.c.l.bf16 %v1817
        %v1850 = vunpack.c.l.bf16 %v1818
        %v1851 = vunpack.c.l.bf16 %v1819
        %v1852 = vunpack.c.l.bf16 %v1820
        %v1853 = vunpack.c.l.bf16 %v1821
        %v1854 = vunpack.c.l.bf16 %v1822
        %v1855 = vunpack.c.l.bf16 %v1823
        %v1856 = vunpack.c.l.bf16 %v1824
        %v1857 = vunpack.c.l.bf16 %v1825
        %v1858 = vunpack.c.l.bf16 %v1826
        %1891 = vrot.lane.b32.xlu0 %v1669, 64
        %v1892 = vpop.permute.xlu0 %1891
        %1893 = vrot.lane.b32.xlu0 %v1672, 64
        %v1894 = vpop.permute.xlu0 %1893
        %1895 = vrot.lane.b32.xlu0 %v1677, 64
        %v1896 = vpop.permute.xlu0 %1895
        %1897 = vrot.lane.b32.xlu0 %v1680, 64
        %v1898 = vpop.permute.xlu0 %1897
        %1899 = vrot.lane.b32.xlu0 %v1685, 64
        %v1900 = vpop.permute.xlu0 %1899
        %1901 = vrot.lane.b32.xlu0 %v1688, 64
        %v1902 = vpop.permute.xlu0 %1901
        %1903 = vrot.lane.b32.xlu0 %v1693, 64
        %v1904 = vpop.permute.xlu0 %1903
        %1905 = vrot.lane.b32.xlu0 %v1696, 64
        %v1906 = vpop.permute.xlu0 %1905
        %1907 = vrot.lane.b32.xlu0 %v1701, 64
        %v1908 = vpop.permute.xlu0 %1907
        %1909 = vrot.lane.b32.xlu0 %v1704, 64
        %v1910 = vpop.permute.xlu0 %1909
        %1911 = vrot.lane.b32.xlu0 %v1709, 64
        %v1912 = vpop.permute.xlu0 %1911
        %1913 = vrot.lane.b32.xlu0 %v1712, 64
        %v1914 = vpop.permute.xlu0 %1913
        %1915 = vrot.lane.b32.xlu0 %v1717, 64
        %v1916 = vpop.permute.xlu0 %1915
        %1917 = vrot.lane.b32.xlu0 %v1720, 64
        %v1918 = vpop.permute.xlu0 %1917
        %1919 = vrot.lane.b32.xlu0 %v1725, 64
        %v1920 = vpop.permute.xlu0 %1919
        %1921 = vrot.lane.b32.xlu0 %v1728, 64
        %v1922 = vpop.permute.xlu0 %1921
        %1923 = vrot.lane.b32.xlu0 %v1733, 64
        %v1924 = vpop.permute.xlu0 %1923
        %1925 = vrot.lane.b32.xlu0 %v1736, 64
        %v1926 = vpop.permute.xlu0 %1925
        %1927 = vrot.lane.b32.xlu0 %v1741, 64
        %v1928 = vpop.permute.xlu0 %1927
        %1929 = vrot.lane.b32.xlu0 %v1744, 64
        %v1930 = vpop.permute.xlu0 %1929
        %1931 = vrot.lane.b32.xlu0 %v1749, 64
        %v1932 = vpop.permute.xlu0 %1931
        %1933 = vrot.lane.b32.xlu0 %v1752, 64
        %v1934 = vpop.permute.xlu0 %1933
        %1935 = vrot.lane.b32.xlu0 %v1757, 64
        %v1936 = vpop.permute.xlu0 %1935
        %1937 = vrot.lane.b32.xlu0 %v1760, 64
        %v1938 = vpop.permute.xlu0 %1937
        %1939 = vrot.lane.b32.xlu0 %v1765, 64
        %v1940 = vpop.permute.xlu0 %1939
        %1941 = vrot.lane.b32.xlu0 %v1768, 64
        %v1942 = vpop.permute.xlu0 %1941
        %1943 = vrot.lane.b32.xlu0 %v1773, 64
        %v1944 = vpop.permute.xlu0 %1943
        %1945 = vrot.lane.b32.xlu0 %v1776, 64
        %v1946 = vpop.permute.xlu0 %1945
        %1947 = vrot.lane.b32.xlu0 %v1781, 64
        %v1948 = vpop.permute.xlu0 %1947
        %1949 = vrot.lane.b32.xlu0 %v1784, 64
        %v1950 = vpop.permute.xlu0 %1949
        %1951 = vrot.lane.b32.xlu0 %v1789, 64
        %v1952 = vpop.permute.xlu0 %1951
        %1953 = vrot.lane.b32.xlu0 %v1792, 64
        %v1954 = vpop.permute.xlu0 %1953
        %v1987 = vsel %vm1585, %v1343, %v1892
        %v1988 = vsel %vm1585, %v1346, %v1894
        %v1989 = vsel %vm1585, %v1351, %v1896
        %v1990 = vsel %vm1585, %v1354, %v1898
        %v1991 = vsel %vm1585, %v1359, %v1900
        %v1992 = vsel %vm1585, %v1362, %v1902
        %v1993 = vsel %vm1585, %v1367, %v1904
        %v1994 = vsel %vm1585, %v1370, %v1906
        %v1995 = vsel %vm1585, %v1375, %v1908
        %v1996 = vsel %vm1585, %v1378, %v1910
        %v1997 = vsel %vm1585, %v1383, %v1912
        %v1998 = vsel %vm1585, %v1386, %v1914
        %v1999 = vsel %vm1585, %v1391, %v1916
        %v2000 = vsel %vm1585, %v1394, %v1918
        %v2001 = vsel %vm1585, %v1399, %v1920
        %v2002 = vsel %vm1585, %v1402, %v1922
        %v2003 = vsel %vm1585, %v1407, %v1924
        %v2004 = vsel %vm1585, %v1410, %v1926
        %v2005 = vsel %vm1585, %v1415, %v1928
        %v2006 = vsel %vm1585, %v1418, %v1930
        %v2007 = vsel %vm1585, %v1423, %v1932
        %v2008 = vsel %vm1585, %v1426, %v1934
        %v2009 = vsel %vm1585, %v1431, %v1936
        %v2010 = vsel %vm1585, %v1434, %v1938
        %v2011 = vsel %vm1585, %v1439, %v1940
        %v2012 = vsel %vm1585, %v1442, %v1942
        %v2013 = vsel %vm1585, %v1447, %v1944
        %v2014 = vsel %vm1585, %v1450, %v1946
        %v2015 = vsel %vm1585, %v1455, %v1948
        %v2016 = vsel %vm1585, %v1458, %v1950
        %v2017 = vsel %vm1585, %v1463, %v1952
        %v2018 = vsel %vm1585, %v1466, %v1954
        %v2019 = vpack.c.bf16 %v1988, %v1987
        %v2020 = vpack.c.bf16 %v1828, %v1827
        %v2021 = vpack.c.bf16 %v1990, %v1989
        %v2022 = vpack.c.bf16 %v1830, %v1829
        %v2023 = vpack.c.bf16 %v1992, %v1991
        %v2024 = vpack.c.bf16 %v1832, %v1831
        %v2025 = vpack.c.bf16 %v1994, %v1993
        %v2026 = vpack.c.bf16 %v1834, %v1833
        %v2027 = vpack.c.bf16 %v1996, %v1995
        %v2028 = vpack.c.bf16 %v1836, %v1835
        %v2029 = vpack.c.bf16 %v1998, %v1997
        %v2030 = vpack.c.bf16 %v1838, %v1837
        %v2031 = vpack.c.bf16 %v2000, %v1999
        %v2032 = vpack.c.bf16 %v1840, %v1839
        %v2033 = vpack.c.bf16 %v2002, %v2001
        %v2034 = vpack.c.bf16 %v1842, %v1841
        %v2035 = vpack.c.bf16 %v2004, %v2003
        %v2036 = vpack.c.bf16 %v1844, %v1843
        %v2037 = vpack.c.bf16 %v2006, %v2005
        %v2038 = vpack.c.bf16 %v1846, %v1845
        %v2039 = vpack.c.bf16 %v2008, %v2007
        %v2040 = vpack.c.bf16 %v1848, %v1847
        %v2041 = vpack.c.bf16 %v2010, %v2009
        %v2042 = vpack.c.bf16 %v1850, %v1849
        %v2043 = vpack.c.bf16 %v2012, %v2011
        %v2044 = vpack.c.bf16 %v1852, %v1851
        %v2045 = vpack.c.bf16 %v2014, %v2013
        %v2046 = vpack.c.bf16 %v1854, %v1853
        %v2047 = vpack.c.bf16 %v2016, %v2015
        %v2048 = vpack.c.bf16 %v1856, %v1855
        %v2049 = vpack.c.bf16 %v2018, %v2017
        %v2050 = vpack.c.bf16 %v1858, %v1857
        %v2051 = vld [vmem:[#allocation17] sm:$0xf]
        %v2052 = vld [vmem:[#allocation17 + $0x4] sm:$0xf]
        %v2053 = vld [vmem:[#allocation17 + $0x8] sm:$0xf]
        %v2054 = vld [vmem:[#allocation17 + $0xc] sm:$0xf]
        %v2055 = vld [vmem:[#allocation17 + $0x10] sm:$0xf]
        %v2056 = vld [vmem:[#allocation17 + $0x14] sm:$0xf]
        %v2057 = vld [vmem:[#allocation17 + $0x18] sm:$0xf]
        %v2058 = vld [vmem:[#allocation17 + $0x1c] sm:$0xf]
        %v2059 = vld [vmem:[#allocation17 + $0x20] sm:$0xf]
        %v2060 = vld [vmem:[#allocation17 + $0x24] sm:$0xf]
        %v2061 = vld [vmem:[#allocation17 + $0x28] sm:$0xf]
        %v2062 = vld [vmem:[#allocation17 + $0x2c] sm:$0xf]
        %v2063 = vld [vmem:[#allocation17 + $0x30] sm:$0xf]
        %v2064 = vld [vmem:[#allocation17 + $0x34] sm:$0xf]
        %v2065 = vld [vmem:[#allocation17 + $0x38] sm:$0xf]
        %v2066 = vld [vmem:[#allocation17 + $0x3c] sm:$0xf]
        %v2067 = vld [vmem:[#allocation17 + $0x40] sm:$0xf]
        %v2068 = vld [vmem:[#allocation17 + $0x44] sm:$0xf]
        %v2069 = vld [vmem:[#allocation17 + $0x48] sm:$0xf]
        %v2070 = vld [vmem:[#allocation17 + $0x4c] sm:$0xf]
        %v2071 = vld [vmem:[#allocation17 + $0x50] sm:$0xf]
        %v2072 = vld [vmem:[#allocation17 + $0x54] sm:$0xf]
        %v2073 = vld [vmem:[#allocation17 + $0x58] sm:$0xf]
        %v2074 = vld [vmem:[#allocation17 + $0x5c] sm:$0xf]
        %v2075 = vld [vmem:[#allocation19] sm:$0x1]
        %v2077 = vlaneseq
        %v2078 = vshrl.u32 %v2077, 7
        %v2079 = vsub.s32 0, %v2078
        %v2080 = vrot.slane %v2075, %v2079
        %v2106 = vunpack.c.l.b16 %v2051
        %v2107 = vunpack.c.l.b16 %v2052
        %v2108 = vunpack.c.l.b16 %v2053
        %v2109 = vunpack.c.l.b16 %v2054
        %v2110 = vunpack.c.l.b16 %v2055
        %v2111 = vunpack.c.l.b16 %v2056
        %v2112 = vunpack.c.l.b16 %v2057
        %v2113 = vunpack.c.l.b16 %v2058
        %v2114 = vunpack.c.l.b16 %v2059
        %v2115 = vunpack.c.l.b16 %v2060
        %v2116 = vunpack.c.l.b16 %v2061
        %v2117 = vunpack.c.l.b16 %v2062
        %v2118 = vunpack.c.l.b16 %v2063
        %v2119 = vunpack.c.l.b16 %v2064
        %v2120 = vunpack.c.l.b16 %v2065
        %v2121 = vunpack.c.l.b16 %v2066
        %v2122 = vunpack.c.l.b16 %v2067
        %v2123 = vunpack.c.l.b16 %v2068
        %v2124 = vunpack.c.l.b16 %v2069
        %v2125 = vunpack.c.l.b16 %v2070
        %v2126 = vunpack.c.l.b16 %v2071
        %v2127 = vunpack.c.l.b16 %v2072
        %v2128 = vunpack.c.l.b16 %v2073
        %v2129 = vunpack.c.l.b16 %v2074
        %v2130 = vpack.c.b16 %v2107, %v2106
        %v2131 = vpack.c.b16 %v2109, %v2108
        %v2132 = vpack.c.b16 %v2111, %v2110
        %v2133 = vpack.c.b16 %v2113, %v2112
        %v2134 = vpack.c.b16 %v2115, %v2114
        %v2135 = vpack.c.b16 %v2117, %v2116
        %v2136 = vpack.c.b16 %v2119, %v2118
        %v2137 = vpack.c.b16 %v2121, %v2120
        %v2138 = vpack.c.b16 %v2123, %v2122
        %v2139 = vpack.c.b16 %v2125, %v2124
        %v2140 = vpack.c.b16 %v2127, %v2126
        %v2141 = vpack.c.b16 %v2129, %v2128
        %v2155 = vsel %vm1585, %v2020, 0
        %v2158 = vsel %vm1585, %v2022, 0
        %v2161 = vsel %vm1585, %v2024, 0
        %v2164 = vsel %vm1585, %v2026, 0
        %v2167 = vsel %vm1585, %v2028, 0
        %v2170 = vsel %vm1585, %v2030, 0
        %v2173 = vsel %vm1585, %v2032, 0
        %v2176 = vsel %vm1585, %v2034, 0
        %v2179 = vsel %vm1585, %v2036, 0
        %v2182 = vsel %vm1585, %v2038, 0
        %v2185 = vsel %vm1585, %v2040, 0
        %v2188 = vsel %vm1585, %v2042, 0
        %v2191 = vsel %vm1585, %v2044, 0
        %v2194 = vsel %vm1585, %v2046, 0
        %v2197 = vsel %vm1585, %v2048, 0
        %v2200 = vsel %vm1585, %v2050, 0
        %2202 = vmatprep.subr.bf16.mxu0 0
        %2203 = vmatpush1.bf16.msra.mxu0 %v2130
        %2204 = vmatprep.subr.bf16.mxu0 0
        %2205 = vmatpush1.bf16.msra.mxu0 %v2131
        %2206 = vmatprep.subr.bf16.mxu0 0
        %2207 = vmatpush1.bf16.msra.mxu0 %v2132
        %2208 = vmatprep.subr.bf16.mxu0 0
        %2209 = vmatpush1.bf16.msra.mxu0 %v2133
        %2210 = vmatprep.subr.bf16.mxu0 0
        %2211 = vmatpush1.bf16.msra.mxu0 %v2134
        %2212 = vmatprep.subr.bf16.mxu0 0
        %2213 = vmatpush1.bf16.msra.mxu0 %v2135
        %2214 = vmatprep.subr.bf16.mxu0 0
        %2215 = vmatpush1.bf16.msra.mxu0 %v2136
        %2216 = vmatprep.subr.bf16.mxu0 0
        %2217 = vmatpush1.bf16.msra.mxu0 %v2137
        %2218 = vmatprep.subr.bf16.mxu0 0
        %2219 = vmatpush1.bf16.msra.mxu0 %v2138
        %2220 = vmatprep.subr.bf16.mxu0 0
        %2221 = vmatpush1.bf16.msra.mxu0 %v2139
        %2222 = vmatprep.subr.bf16.mxu0 0
        %2223 = vmatpush1.bf16.msra.mxu0 %v2140
        %2224 = vmatprep.subr.bf16.mxu0 0
        %2225 = vmatpush1.bf16.msra.mxu0 %v2141
        %2226 = vmatprep.subr.bf16.mxu0 0
        %2227 = vmatpush1.bf16.msra.mxu0 0
        %2228 = vmatprep.subr.bf16.mxu0 0
        %2229 = vmatpush1.bf16.msra.mxu0 0
        %2230 = vmatprep.subr.bf16.mxu0 0
        %2231 = vmatpush1.bf16.msra.mxu0 0
        %2232 = vmatprep.subr.bf16.mxu0 0
        %2233 = vmatpush1.bf16.msra.mxu0 0
        %2234 = vmatprep.mubr.bf16.mxu0 %v2155
        %2235 = vmatmul.mubr.bf16.gmra.mrb[0].mxu0 %v2019
        %v2236 = vpop.f32.mrb[0].mxu0
        %v2237 = vadd.f32 %v2080, %v2236
        %v2238 = vpop.f32.mrb[0].mxu0
        %v2239 = vpop.f32.mrb[0].mxu0
        %v2240 = vadd.f32 %v2080, %v2239
        %v2241 = vpop.f32.mrb[0].mxu0
        %2242 = vmatprep.mubr.bf16.mxu0 %v2158
        %2243 = vmatmul.mubr.bf16.gmra.mrb[0].mxu0 %v2021
        %v2244 = vpop.f32.mrb[0].mxu0
        %v2245 = vadd.f32 %v2080, %v2244
        %v2246 = vpop.f32.mrb[0].mxu0
        %v2247 = vpop.f32.mrb[0].mxu0
        %v2248 = vadd.f32 %v2080, %v2247
        %v2249 = vpop.f32.mrb[0].mxu0
        %2250 = vmatprep.mubr.bf16.mxu0 %v2161
        %2251 = vmatmul.mubr.bf16.gmra.mrb[0].mxu0 %v2023
        %v2252 = vpop.f32.mrb[0].mxu0
        %v2253 = vadd.f32 %v2080, %v2252
        %v2254 = vpop.f32.mrb[0].mxu0
        %v2255 = vpop.f32.mrb[0].mxu0
        %v2256 = vadd.f32 %v2080, %v2255
        %v2257 = vpop.f32.mrb[0].mxu0
        %2258 = vmatprep.mubr.bf16.mxu0 %v2164
        %2259 = vmatmul.mubr.bf16.gmra.mrb[0].mxu0 %v2025
        %v2260 = vpop.f32.mrb[0].mxu0
        %v2261 = vadd.f32 %v2080, %v2260
        %v2262 = vpop.f32.mrb[0].mxu0
        %v2263 = vpop.f32.mrb[0].mxu0
        %v2264 = vadd.f32 %v2080, %v2263
        %v2265 = vpop.f32.mrb[0].mxu0
        %2266 = vmatprep.mubr.bf16.mxu0 %v2167
        %2267 = vmatmul.mubr.bf16.gmra.mrb[0].mxu0 %v2027
        %v2268 = vpop.f32.mrb[0].mxu0
        %v2269 = vadd.f32 %v2080, %v2268
        %v2270 = vpop.f32.mrb[0].mxu0
        %v2271 = vpop.f32.mrb[0].mxu0
        %v2272 = vadd.f32 %v2080, %v2271
        %v2273 = vpop.f32.mrb[0].mxu0
        %2274 = vmatprep.mubr.bf16.mxu0 %v2170
        %2275 = vmatmul.mubr.bf16.gmra.mrb[0].mxu0 %v2029
        %v2276 = vpop.f32.mrb[0].mxu0
        %v2277 = vadd.f32 %v2080, %v2276
        %v2278 = vpop.f32.mrb[0].mxu0
        %v2279 = vpop.f32.mrb[0].mxu0
        %v2280 = vadd.f32 %v2080, %v2279
        %v2281 = vpop.f32.mrb[0].mxu0
        %2282 = vmatprep.mubr.bf16.mxu0 %v2173
        %2283 = vmatmul.mubr.bf16.gmra.mrb[0].mxu0 %v2031
        %v2284 = vpop.f32.mrb[0].mxu0
        %v2285 = vadd.f32 %v2080, %v2284
        %v2286 = vpop.f32.mrb[0].mxu0
        %v2287 = vpop.f32.mrb[0].mxu0
        %v2288 = vadd.f32 %v2080, %v2287
        %v2289 = vpop.f32.mrb[0].mxu0
        %2290 = vmatprep.mubr.bf16.mxu0 %v2176
        %2291 = vmatmul.mubr.bf16.gmra.mrb[0].mxu0 %v2033
        %v2292 = vpop.f32.mrb[0].mxu0
        %v2293 = vadd.f32 %v2080, %v2292
        %v2294 = vpop.f32.mrb[0].mxu0
        %v2295 = vpop.f32.mrb[0].mxu0
        %v2296 = vadd.f32 %v2080, %v2295
        %v2297 = vpop.f32.mrb[0].mxu0
        %2298 = vmatprep.mubr.bf16.mxu0 %v2179
        %2299 = vmatmul.mubr.bf16.gmra.mrb[0].mxu0 %v2035
        %v2300 = vpop.f32.mrb[0].mxu0
        %v2301 = vadd.f32 %v2080, %v2300
        %v2302 = vpop.f32.mrb[0].mxu0
        %v2303 = vpop.f32.mrb[0].mxu0
        %v2304 = vadd.f32 %v2080, %v2303
        %v2305 = vpop.f32.mrb[0].mxu0
        %2306 = vmatprep.mubr.bf16.mxu0 %v2182
        %2307 = vmatmul.mubr.bf16.gmra.mrb[0].mxu0 %v2037
        %v2308 = vpop.f32.mrb[0].mxu0
        %v2309 = vadd.f32 %v2080, %v2308
        %v2310 = vpop.f32.mrb[0].mxu0
        %v2311 = vpop.f32.mrb[0].mxu0
        %v2312 = vadd.f32 %v2080, %v2311
        %v2313 = vpop.f32.mrb[0].mxu0
        %2314 = vmatprep.mubr.bf16.mxu0 %v2185
        %2315 = vmatmul.mubr.bf16.gmra.mrb[0].mxu0 %v2039
        %v2316 = vpop.f32.mrb[0].mxu0
        %v2317 = vadd.f32 %v2080, %v2316
        %v2318 = vpop.f32.mrb[0].mxu0
        %v2319 = vpop.f32.mrb[0].mxu0
        %v2320 = vadd.f32 %v2080, %v2319
        %v2321 = vpop.f32.mrb[0].mxu0
        %2322 = vmatprep.mubr.bf16.mxu0 %v2188
        %2323 = vmatmul.mubr.bf16.gmra.mrb[0].mxu0 %v2041
        %v2324 = vpop.f32.mrb[0].mxu0
        %v2325 = vadd.f32 %v2080, %v2324
        %v2326 = vpop.f32.mrb[0].mxu0
        %v2327 = vpop.f32.mrb[0].mxu0
        %v2328 = vadd.f32 %v2080, %v2327
        %v2329 = vpop.f32.mrb[0].mxu0
        %2330 = vmatprep.mubr.bf16.mxu0 %v2191
        %2331 = vmatmul.mubr.bf16.gmra.mrb[0].mxu0 %v2043
        %v2332 = vpop.f32.mrb[0].mxu0
        %v2333 = vadd.f32 %v2080, %v2332
        %v2334 = vpop.f32.mrb[0].mxu0
        %v2335 = vpop.f32.mrb[0].mxu0
        %v2336 = vadd.f32 %v2080, %v2335
        %v2337 = vpop.f32.mrb[0].mxu0
        %2338 = vmatprep.mubr.bf16.mxu0 %v2194
        %2339 = vmatmul.mubr.bf16.gmra.mrb[0].mxu0 %v2045
        %v2340 = vpop.f32.mrb[0].mxu0
        %v2341 = vadd.f32 %v2080, %v2340
        %v2342 = vpop.f32.mrb[0].mxu0
        %v2343 = vpop.f32.mrb[0].mxu0
        %v2344 = vadd.f32 %v2080, %v2343
        %v2345 = vpop.f32.mrb[0].mxu0
        %2346 = vmatprep.mubr.bf16.mxu0 %v2197
        %2347 = vmatmul.mubr.bf16.gmra.mrb[0].mxu0 %v2047
        %v2348 = vpop.f32.mrb[0].mxu0
        %v2349 = vadd.f32 %v2080, %v2348
        %v2350 = vpop.f32.mrb[0].mxu0
        %v2351 = vpop.f32.mrb[0].mxu0
        %v2352 = vadd.f32 %v2080, %v2351
        %v2353 = vpop.f32.mrb[0].mxu0
        %2354 = vmatprep.mubr.bf16.mxu0 %v2200
        %2355 = vmatmul.mubr.bf16.gmra.mrb[0].mxu0 %v2049
        %v2356 = vpop.f32.mrb[0].mxu0
        %v2357 = vadd.f32 %v2080, %v2356
        %v2358 = vpop.f32.mrb[0].mxu0
        %v2359 = vpop.f32.mrb[0].mxu0
        %v2360 = vadd.f32 %v2080, %v2359
        %v2361 = vpop.f32.mrb[0].mxu0
        %2362 = vdwg.mxu0
        %v2363 = vmax.f32 %v2237, 0.0
        %v2364 = vmax.f32 %v2240, 0.0
        %v2365 = vmax.f32 %v2245, 0.0
        %v2366 = vmax.f32 %v2248, 0.0
        %v2367 = vmax.f32 %v2253, 0.0
        %v2368 = vmax.f32 %v2256, 0.0
        %v2369 = vmax.f32 %v2261, 0.0
        %v2370 = vmax.f32 %v2264, 0.0
        %v2371 = vmax.f32 %v2269, 0.0
        %v2372 = vmax.f32 %v2272, 0.0
        %v2373 = vmax.f32 %v2277, 0.0
        %v2374 = vmax.f32 %v2280, 0.0
        %v2375 = vmax.f32 %v2285, 0.0
        %v2376 = vmax.f32 %v2288, 0.0
        %v2377 = vmax.f32 %v2293, 0.0
        %v2378 = vmax.f32 %v2296, 0.0
        %v2379 = vmax.f32 %v2301, 0.0
        %v2380 = vmax.f32 %v2304, 0.0
        %v2381 = vmax.f32 %v2309, 0.0
        %v2382 = vmax.f32 %v2312, 0.0
        %v2383 = vmax.f32 %v2317, 0.0
        %v2384 = vmax.f32 %v2320, 0.0
        %v2385 = vmax.f32 %v2325, 0.0
        %v2386 = vmax.f32 %v2328, 0.0
        %v2387 = vmax.f32 %v2333, 0.0
        %v2388 = vmax.f32 %v2336, 0.0
        %v2389 = vmax.f32 %v2341, 0.0
        %v2390 = vmax.f32 %v2344, 0.0
        %v2391 = vmax.f32 %v2349, 0.0
        %v2392 = vmax.f32 %v2352, 0.0
        %v2393 = vmax.f32 %v2357, 0.0
        %v2394 = vmax.f32 %v2360, 0.0
        %v2395 = vmin.f32 %v2363, 6.0
        %v2396 = vmin.f32 %v2364, 6.0
        %v2397 = vmin.f32 %v2365, 6.0
        %v2398 = vmin.f32 %v2366, 6.0
        %v2399 = vmin.f32 %v2367, 6.0
        %v2400 = vmin.f32 %v2368, 6.0
        %v2401 = vmin.f32 %v2369, 6.0
        %v2402 = vmin.f32 %v2370, 6.0
        %v2403 = vmin.f32 %v2371, 6.0
        %v2404 = vmin.f32 %v2372, 6.0
        %v2405 = vmin.f32 %v2373, 6.0
        %v2406 = vmin.f32 %v2374, 6.0
        %v2407 = vmin.f32 %v2375, 6.0
        %v2408 = vmin.f32 %v2376, 6.0
        %v2409 = vmin.f32 %v2377, 6.0
        %v2410 = vmin.f32 %v2378, 6.0
        %v2411 = vmin.f32 %v2379, 6.0
        %v2412 = vmin.f32 %v2380, 6.0
        %v2413 = vmin.f32 %v2381, 6.0
        %v2414 = vmin.f32 %v2382, 6.0
        %v2415 = vmin.f32 %v2383, 6.0
        %v2416 = vmin.f32 %v2384, 6.0
        %v2417 = vmin.f32 %v2385, 6.0
        %v2418 = vmin.f32 %v2386, 6.0
        %v2419 = vmin.f32 %v2387, 6.0
        %v2420 = vmin.f32 %v2388, 6.0
        %v2421 = vmin.f32 %v2389, 6.0
        %v2422 = vmin.f32 %v2390, 6.0
        %v2423 = vmin.f32 %v2391, 6.0
        %v2424 = vmin.f32 %v2392, 6.0
        %v2425 = vmin.f32 %v2393, 6.0
        %v2426 = vmin.f32 %v2394, 6.0
        %v2427 = vld [vmem:[#allocation20] sm:$0xff]
        %v2428 = vld [vmem:[#allocation20 + $0x8] sm:$0xff]
        %v2429 = vld [vmem:[#allocation20 + $0x10] sm:$0xff]
        %v2430 = vld [vmem:[#allocation20 + $0x18] sm:$0xff]
        %v2431 = vld [vmem:[#allocation20 + $0x20] sm:$0xff]
        %v2432 = vld [vmem:[#allocation20 + $0x28] sm:$0xff]
        %v2433 = vld [vmem:[#allocation22] sm:$0x1]
        %v2435 = vlaneseq
        %v2436 = vshrl.u32 %v2435, 7
        %v2437 = vsub.s32 0, %v2436
        %v2438 = vrot.slane %v2433, %v2437
        %vm2440 = vcmask 392192
        %v2442 = vsel %vm2440, %v2395, 0
        %v2445 = vsel %vm2440, %v2396, 0
        %v2448 = vsel %vm2440, %v2397, 0
        %v2451 = vsel %vm2440, %v2398, 0
        %v2454 = vsel %vm2440, %v2399, 0
        %v2457 = vsel %vm2440, %v2400, 0
        %v2460 = vsel %vm2440, %v2401, 0
        %v2463 = vsel %vm2440, %v2402, 0
        %v2466 = vsel %vm2440, %v2403, 0
        %v2469 = vsel %vm2440, %v2404, 0
        %v2472 = vsel %vm2440, %v2405, 0
        %v2475 = vsel %vm2440, %v2406, 0
        %v2478 = vsel %vm2440, %v2407, 0
        %v2481 = vsel %vm2440, %v2408, 0
        %v2484 = vsel %vm2440, %v2409, 0
        %v2487 = vsel %vm2440, %v2410, 0
        %v2490 = vsel %vm2440, %v2411, 0
        %v2493 = vsel %vm2440, %v2412, 0
        %v2496 = vsel %vm2440, %v2413, 0
        %v2499 = vsel %vm2440, %v2414, 0
        %v2502 = vsel %vm2440, %v2415, 0
        %v2505 = vsel %vm2440, %v2416, 0
        %v2508 = vsel %vm2440, %v2417, 0
        %v2511 = vsel %vm2440, %v2418, 0
        %v2514 = vsel %vm2440, %v2419, 0
        %v2517 = vsel %vm2440, %v2420, 0
        %v2520 = vsel %vm2440, %v2421, 0
        %v2523 = vsel %vm2440, %v2422, 0
        %v2526 = vsel %vm2440, %v2423, 0
        %v2529 = vsel %vm2440, %v2424, 0
        %v2532 = vsel %vm2440, %v2425, 0
        %v2535 = vsel %vm2440, %v2426, 0
        %2537 = vmatprep.subr.mxu0 0.0
        %2538 = vmatpush1.msra.mxu0 %v2427
        %2539 = vmatprep.subr.mxu0 0.0
        %2540 = vmatpush1.msra.mxu0 %v2428
        %2541 = vmatprep.subr.mxu0 0.0
        %2542 = vmatpush1.msra.mxu0 %v2429
        %2543 = vmatprep.subr.mxu0 0.0
        %2544 = vmatpush1.msra.mxu0 %v2430
        %2545 = vmatprep.subr.mxu0 0.0
        %2546 = vmatpush1.msra.mxu0 %v2431
        %2547 = vmatprep.subr.mxu0 0.0
        %2548 = vmatpush1.msra.mxu0 %v2432
        %2549 = vmatprep.subr.mxu0 0.0
        %2550 = vmatpush1.msra.mxu0 0.0
        %2551 = vmatprep.subr.mxu0 0.0
        %2552 = vmatpush1.msra.mxu0 0.0
        %2553 = vmatprep.subr.mxu0 0.0
        %2554 = vmatpush1.msra.mxu0 0.0
        %2555 = vmatprep.subr.mxu0 0.0
        %2556 = vmatpush1.msra.mxu0 0.0
        %2557 = vmatprep.subr.mxu0 0.0
        %2558 = vmatpush1.msra.mxu0 0.0
        %2559 = vmatprep.subr.mxu0 0.0
        %2560 = vmatpush1.msra.mxu0 0.0
        %2561 = vmatprep.subr.mxu0 0.0
        %2562 = vmatpush1.msra.mxu0 0.0
        %2563 = vmatprep.subr.mxu0 0.0
        %2564 = vmatpush1.msra.mxu0 0.0
        %2565 = vmatprep.subr.mxu0 0.0
        %2566 = vmatpush1.msra.mxu0 0.0
        %2567 = vmatprep.subr.mxu0 0.0
        %2568 = vmatpush1.msra.mxu0 0.0
        %2569 = vmatprep.subr.mxu0 0.0
        %2570 = vmatpush1.msra.mxu0 0.0
        %2571 = vmatprep.subr.mxu0 0.0
        %2572 = vmatpush1.msra.mxu0 0.0
        %2573 = vmatprep.subr.mxu0 0.0
        %2574 = vmatpush1.msra.mxu0 0.0
        %2575 = vmatprep.subr.mxu0 0.0
        %2576 = vmatpush1.msra.mxu0 0.0
        %2577 = vmatprep.subr.mxu0 0.0
        %2578 = vmatpush1.msra.mxu0 0.0
        %2579 = vmatprep.subr.mxu0 0.0
        %2580 = vmatpush1.msra.mxu0 0.0
        %2581 = vmatprep.subr.mxu0 0.0
        %2582 = vmatpush1.msra.mxu0 0.0
        %2583 = vmatprep.subr.mxu0 0.0
        %2584 = vmatpush1.msra.mxu0 0.0
        %2585 = vmatprep.subr.mxu0 0.0
        %2586 = vmatpush1.msra.mxu0 0.0
        %2587 = vmatprep.subr.mxu0 0.0
        %2588 = vmatpush1.msra.mxu0 0.0
        %2589 = vmatprep.subr.mxu0 0.0
        %2590 = vmatpush1.msra.mxu0 0.0
        %2591 = vmatprep.subr.mxu0 0.0
        %2592 = vmatpush1.msra.mxu0 0.0
        %2593 = vmatprep.subr.mxu0 0.0
        %2594 = vmatpush1.msra.mxu0 0.0
        %2595 = vmatprep.subr.mxu0 0.0
        %2596 = vmatpush1.msra.mxu0 0.0
        %2597 = vmatprep.subr.mxu0 0.0
        %2598 = vmatpush1.msra.mxu0 0.0
        %2599 = vmatprep.subr.mxu0 0.0
        %2600 = vmatpush1.msra.mxu0 0.0
        %2601 = vmatprep.mubr.f32.mxu0 0.0
        %2602 = vmatmul.mubr.f32.gmra.mrb[0].mxu0 %v2442
        %v2603 = vpop.f32.mrb[0].mxu0
        %v2604 = vadd.f32 %v2438, %v2603
        %v2605 = vpop.f32.mrb[0].mxu0
        %2606 = vmatprep.mubr.f32.mxu0 0.0
        %2607 = vmatmul.mubr.f32.gmra.mrb[0].mxu0 %v2445
        %v2608 = vpop.f32.mrb[0].mxu0
        %v2609 = vadd.f32 %v2438, %v2608
        %v2610 = vpop.f32.mrb[0].mxu0
        %2611 = vmatprep.mubr.f32.mxu0 0.0
        %2612 = vmatmul.mubr.f32.gmra.mrb[0].mxu0 %v2448
        %v2613 = vpop.f32.mrb[0].mxu0
        %v2614 = vadd.f32 %v2438, %v2613
        %v2615 = vpop.f32.mrb[0].mxu0
        %2616 = vmatprep.mubr.f32.mxu0 0.0
        %2617 = vmatmul.mubr.f32.gmra.mrb[0].mxu0 %v2451
        %v2618 = vpop.f32.mrb[0].mxu0
        %v2619 = vadd.f32 %v2438, %v2618
        %v2620 = vpop.f32.mrb[0].mxu0
        %2621 = vmatprep.mubr.f32.mxu0 0.0
        %2622 = vmatmul.mubr.f32.gmra.mrb[0].mxu0 %v2454
        %v2623 = vpop.f32.mrb[0].mxu0
        %v2624 = vadd.f32 %v2438, %v2623
        %v2625 = vpop.f32.mrb[0].mxu0
        %2626 = vmatprep.mubr.f32.mxu0 0.0
        %2627 = vmatmul.mubr.f32.gmra.mrb[0].mxu0 %v2457
        %v2628 = vpop.f32.mrb[0].mxu0
        %v2629 = vadd.f32 %v2438, %v2628
        %v2630 = vpop.f32.mrb[0].mxu0
        %2631 = vmatprep.mubr.f32.mxu0 0.0
        %2632 = vmatmul.mubr.f32.gmra.mrb[0].mxu0 %v2460
        %v2633 = vpop.f32.mrb[0].mxu0
        %v2634 = vadd.f32 %v2438, %v2633
        %v2635 = vpop.f32.mrb[0].mxu0
        %2636 = vmatprep.mubr.f32.mxu0 0.0
        %2637 = vmatmul.mubr.f32.gmra.mrb[0].mxu0 %v2463
        %v2638 = vpop.f32.mrb[0].mxu0
        %v2639 = vadd.f32 %v2438, %v2638
        %v2640 = vpop.f32.mrb[0].mxu0
        %2641 = vmatprep.mubr.f32.mxu0 0.0
        %2642 = vmatmul.mubr.f32.gmra.mrb[0].mxu0 %v2466
        %v2643 = vpop.f32.mrb[0].mxu0
        %v2644 = vadd.f32 %v2438, %v2643
        %v2645 = vpop.f32.mrb[0].mxu0
        %2646 = vmatprep.mubr.f32.mxu0 0.0
        %2647 = vmatmul.mubr.f32.gmra.mrb[0].mxu0 %v2469
        %v2648 = vpop.f32.mrb[0].mxu0
        %v2649 = vadd.f32 %v2438, %v2648
        %v2650 = vpop.f32.mrb[0].mxu0
        %2651 = vmatprep.mubr.f32.mxu0 0.0
        %2652 = vmatmul.mubr.f32.gmra.mrb[0].mxu0 %v2472
        %v2653 = vpop.f32.mrb[0].mxu0
        %v2654 = vadd.f32 %v2438, %v2653
        %v2655 = vpop.f32.mrb[0].mxu0
        %2656 = vmatprep.mubr.f32.mxu0 0.0
        %2657 = vmatmul.mubr.f32.gmra.mrb[0].mxu0 %v2475
        %v2658 = vpop.f32.mrb[0].mxu0
        %v2659 = vadd.f32 %v2438, %v2658
        %v2660 = vpop.f32.mrb[0].mxu0
        %2661 = vmatprep.mubr.f32.mxu0 0.0
        %2662 = vmatmul.mubr.f32.gmra.mrb[0].mxu0 %v2478
        %v2663 = vpop.f32.mrb[0].mxu0
        %v2664 = vadd.f32 %v2438, %v2663
        %v2665 = vpop.f32.mrb[0].mxu0
        %2666 = vmatprep.mubr.f32.mxu0 0.0
        %2667 = vmatmul.mubr.f32.gmra.mrb[0].mxu0 %v2481
        %v2668 = vpop.f32.mrb[0].mxu0
        %v2669 = vadd.f32 %v2438, %v2668
        %v2670 = vpop.f32.mrb[0].mxu0
        %2671 = vmatprep.mubr.f32.mxu0 0.0
        %2672 = vmatmul.mubr.f32.gmra.mrb[0].mxu0 %v2484
        %v2673 = vpop.f32.mrb[0].mxu0
        %v2674 = vadd.f32 %v2438, %v2673
        %v2675 = vpop.f32.mrb[0].mxu0
        %2676 = vmatprep.mubr.f32.mxu0 0.0
        %2677 = vmatmul.mubr.f32.gmra.mrb[0].mxu0 %v2487
        %v2678 = vpop.f32.mrb[0].mxu0
        %v2679 = vadd.f32 %v2438, %v2678
        %v2680 = vpop.f32.mrb[0].mxu0
        %2681 = vmatprep.mubr.f32.mxu0 0.0
        %2682 = vmatmul.mubr.f32.gmra.mrb[0].mxu0 %v2490
        %v2683 = vpop.f32.mrb[0].mxu0
        %v2684 = vadd.f32 %v2438, %v2683
        %v2685 = vpop.f32.mrb[0].mxu0
        %2686 = vmatprep.mubr.f32.mxu0 0.0
        %2687 = vmatmul.mubr.f32.gmra.mrb[0].mxu0 %v2493
        %v2688 = vpop.f32.mrb[0].mxu0
        %v2689 = vadd.f32 %v2438, %v2688
        %v2690 = vpop.f32.mrb[0].mxu0
        %2691 = vmatprep.mubr.f32.mxu0 0.0
        %2692 = vmatmul.mubr.f32.gmra.mrb[0].mxu0 %v2496
        %v2693 = vpop.f32.mrb[0].mxu0
        %v2694 = vadd.f32 %v2438, %v2693
        %v2695 = vpop.f32.mrb[0].mxu0
        %2696 = vmatprep.mubr.f32.mxu0 0.0
        %2697 = vmatmul.mubr.f32.gmra.mrb[0].mxu0 %v2499
        %v2698 = vpop.f32.mrb[0].mxu0
        %v2699 = vadd.f32 %v2438, %v2698
        %v2700 = vpop.f32.mrb[0].mxu0
        %2701 = vmatprep.mubr.f32.mxu0 0.0
        %2702 = vmatmul.mubr.f32.gmra.mrb[0].mxu0 %v2502
        %v2703 = vpop.f32.mrb[0].mxu0
        %v2704 = vadd.f32 %v2438, %v2703
        %v2705 = vpop.f32.mrb[0].mxu0
        %2706 = vmatprep.mubr.f32.mxu0 0.0
        %2707 = vmatmul.mubr.f32.gmra.mrb[0].mxu0 %v2505
        %v2708 = vpop.f32.mrb[0].mxu0
        %v2709 = vadd.f32 %v2438, %v2708
        %v2710 = vpop.f32.mrb[0].mxu0
        %2711 = vmatprep.mubr.f32.mxu0 0.0
        %2712 = vmatmul.mubr.f32.gmra.mrb[0].mxu0 %v2508
        %v2713 = vpop.f32.mrb[0].mxu0
        %v2714 = vadd.f32 %v2438, %v2713
        %v2715 = vpop.f32.mrb[0].mxu0
        %2716 = vmatprep.mubr.f32.mxu0 0.0
        %2717 = vmatmul.mubr.f32.gmra.mrb[0].mxu0 %v2511
        %v2718 = vpop.f32.mrb[0].mxu0
        %v2719 = vadd.f32 %v2438, %v2718
        %v2720 = vpop.f32.mrb[0].mxu0
        %2721 = vmatprep.mubr.f32.mxu0 0.0
        %2722 = vmatmul.mubr.f32.gmra.mrb[0].mxu0 %v2514
        %v2723 = vpop.f32.mrb[0].mxu0
        %v2724 = vadd.f32 %v2438, %v2723
        %v2725 = vpop.f32.mrb[0].mxu0
        %2726 = vmatprep.mubr.f32.mxu0 0.0
        %2727 = vmatmul.mubr.f32.gmra.mrb[0].mxu0 %v2517
        %v2728 = vpop.f32.mrb[0].mxu0
        %v2729 = vadd.f32 %v2438, %v2728
        %v2730 = vpop.f32.mrb[0].mxu0
        %2731 = vmatprep.mubr.f32.mxu0 0.0
        %2732 = vmatmul.mubr.f32.gmra.mrb[0].mxu0 %v2520
        %v2733 = vpop.f32.mrb[0].mxu0
        %v2734 = vadd.f32 %v2438, %v2733
        %v2735 = vpop.f32.mrb[0].mxu0
        %2736 = vmatprep.mubr.f32.mxu0 0.0
        %2737 = vmatmul.mubr.f32.gmra.mrb[0].mxu0 %v2523
        %v2738 = vpop.f32.mrb[0].mxu0
        %v2739 = vadd.f32 %v2438, %v2738
        %v2740 = vpop.f32.mrb[0].mxu0
        %2741 = vmatprep.mubr.f32.mxu0 0.0
        %2742 = vmatmul.mubr.f32.gmra.mrb[0].mxu0 %v2526
        %v2743 = vpop.f32.mrb[0].mxu0
        %v2744 = vadd.f32 %v2438, %v2743
        %v2745 = vpop.f32.mrb[0].mxu0
        %2746 = vmatprep.mubr.f32.mxu0 0.0
        %2747 = vmatmul.mubr.f32.gmra.mrb[0].mxu0 %v2529
        %v2748 = vpop.f32.mrb[0].mxu0
        %v2749 = vadd.f32 %v2438, %v2748
        %v2750 = vpop.f32.mrb[0].mxu0
        %2751 = vmatprep.mubr.f32.mxu0 0.0
        %2752 = vmatmul.mubr.f32.gmra.mrb[0].mxu0 %v2532
        %v2753 = vpop.f32.mrb[0].mxu0
        %v2754 = vadd.f32 %v2438, %v2753
        %v2755 = vpop.f32.mrb[0].mxu0
        %2756 = vmatprep.mubr.f32.mxu0 0.0
        %2757 = vmatmul.mubr.f32.gmra.mrb[0].mxu0 %v2535
        %v2758 = vpop.f32.mrb[0].mxu0
        %v2759 = vadd.f32 %v2438, %v2758
        %v2760 = vpop.f32.mrb[0].mxu0
        %2761 = vdwg.mxu0
        %vm2762 = vcmask 23552
        %v2763 = vsel %vm2762, %v2604, -inf
        %2764 = vmax.xlane.f32.xlu0 %v2763
        %v2765 = vpop.xlane.xlu0 %2764
        %v2766 = vsel %vm2762, %v2609, -inf
        %2767 = vmax.xlane.f32.xlu0 %v2766
        %v2768 = vpop.xlane.xlu0 %2767
        %v2769 = vsel %vm2762, %v2614, -inf
        %2770 = vmax.xlane.f32.xlu0 %v2769
        %v2771 = vpop.xlane.xlu0 %2770
        %v2772 = vsel %vm2762, %v2619, -inf
        %2773 = vmax.xlane.f32.xlu0 %v2772
        %v2774 = vpop.xlane.xlu0 %2773
        %v2775 = vsel %vm2762, %v2624, -inf
        %2776 = vmax.xlane.f32.xlu0 %v2775
        %v2777 = vpop.xlane.xlu0 %2776
        %v2778 = vsel %vm2762, %v2629, -inf
        %2779 = vmax.xlane.f32.xlu0 %v2778
        %v2780 = vpop.xlane.xlu0 %2779
        %v2781 = vsel %vm2762, %v2634, -inf
        %2782 = vmax.xlane.f32.xlu0 %v2781
        %v2783 = vpop.xlane.xlu0 %2782
        %v2784 = vsel %vm2762, %v2639, -inf
        %2785 = vmax.xlane.f32.xlu0 %v2784
        %v2786 = vpop.xlane.xlu0 %2785
        %v2787 = vsel %vm2762, %v2644, -inf
        %2788 = vmax.xlane.f32.xlu0 %v2787
        %v2789 = vpop.xlane.xlu0 %2788
        %v2790 = vsel %vm2762, %v2649, -inf
        %2791 = vmax.xlane.f32.xlu0 %v2790
        %v2792 = vpop.xlane.xlu0 %2791
        %v2793 = vsel %vm2762, %v2654, -inf
        %2794 = vmax.xlane.f32.xlu0 %v2793
        %v2795 = vpop.xlane.xlu0 %2794
        %v2796 = vsel %vm2762, %v2659, -inf
        %2797 = vmax.xlane.f32.xlu0 %v2796
        %v2798 = vpop.xlane.xlu0 %2797
        %v2799 = vsel %vm2762, %v2664, -inf
        %2800 = vmax.xlane.f32.xlu0 %v2799
        %v2801 = vpop.xlane.xlu0 %2800
        %v2802 = vsel %vm2762, %v2669, -inf
        %2803 = vmax.xlane.f32.xlu0 %v2802
        %v2804 = vpop.xlane.xlu0 %2803
        %v2805 = vsel %vm2762, %v2674, -inf
        %2806 = vmax.xlane.f32.xlu0 %v2805
        %v2807 = vpop.xlane.xlu0 %2806
        %v2808 = vsel %vm2762, %v2679, -inf
        %2809 = vmax.xlane.f32.xlu0 %v2808
        %v2810 = vpop.xlane.xlu0 %2809
        %v2811 = vsel %vm2762, %v2684, -inf
        %2812 = vmax.xlane.f32.xlu0 %v2811
        %v2813 = vpop.xlane.xlu0 %2812
        %v2814 = vsel %vm2762, %v2689, -inf
        %2815 = vmax.xlane.f32.xlu0 %v2814
        %v2816 = vpop.xlane.xlu0 %2815
        %v2817 = vsel %vm2762, %v2694, -inf
        %2818 = vmax.xlane.f32.xlu0 %v2817
        %v2819 = vpop.xlane.xlu0 %2818
        %v2820 = vsel %vm2762, %v2699, -inf
        %2821 = vmax.xlane.f32.xlu0 %v2820
        %v2822 = vpop.xlane.xlu0 %2821
        %v2823 = vsel %vm2762, %v2704, -inf
        %2824 = vmax.xlane.f32.xlu0 %v2823
        %v2825 = vpop.xlane.xlu0 %2824
        %v2826 = vsel %vm2762, %v2709, -inf
        %2827 = vmax.xlane.f32.xlu0 %v2826
        %v2828 = vpop.xlane.xlu0 %2827
        %v2829 = vsel %vm2762, %v2714, -inf
        %2830 = vmax.xlane.f32.xlu0 %v2829
        %v2831 = vpop.xlane.xlu0 %2830
        %v2832 = vsel %vm2762, %v2719, -inf
        %2833 = vmax.xlane.f32.xlu0 %v2832
        %v2834 = vpop.xlane.xlu0 %2833
        %v2835 = vsel %vm2762, %v2724, -inf
        %2836 = vmax.xlane.f32.xlu0 %v2835
        %v2837 = vpop.xlane.xlu0 %2836
        %v2838 = vsel %vm2762, %v2729, -inf
        %2839 = vmax.xlane.f32.xlu0 %v2838
        %v2840 = vpop.xlane.xlu0 %2839
        %v2841 = vsel %vm2762, %v2734, -inf
        %2842 = vmax.xlane.f32.xlu0 %v2841
        %v2843 = vpop.xlane.xlu0 %2842
        %v2844 = vsel %vm2762, %v2739, -inf
        %2845 = vmax.xlane.f32.xlu0 %v2844
        %v2846 = vpop.xlane.xlu0 %2845
        %v2847 = vsel %vm2762, %v2744, -inf
        %2848 = vmax.xlane.f32.xlu0 %v2847
        %v2849 = vpop.xlane.xlu0 %2848
        %v2850 = vsel %vm2762, %v2749, -inf
        %2851 = vmax.xlane.f32.xlu0 %v2850
        %v2852 = vpop.xlane.xlu0 %2851
        %v2853 = vsel %vm2762, %v2754, -inf
        %2854 = vmax.xlane.f32.xlu0 %v2853
        %v2855 = vpop.xlane.xlu0 %2854
        %v2856 = vsel %vm2762, %v2759, -inf
        %2857 = vmax.xlane.f32.xlu0 %v2856
        %v2858 = vpop.xlane.xlu0 %2857
        %v2859 = vsub.f32 %v2604, %v2765
        %v2860 = vsub.f32 %v2609, %v2768
        %v2861 = vsub.f32 %v2614, %v2771
        %v2862 = vsub.f32 %v2619, %v2774
        %v2863 = vsub.f32 %v2624, %v2777
        %v2864 = vsub.f32 %v2629, %v2780
        %v2865 = vsub.f32 %v2634, %v2783
        %v2866 = vsub.f32 %v2639, %v2786
        %v2867 = vsub.f32 %v2644, %v2789
        %v2868 = vsub.f32 %v2649, %v2792
        %v2869 = vsub.f32 %v2654, %v2795
        %v2870 = vsub.f32 %v2659, %v2798
        %v2871 = vsub.f32 %v2664, %v2801
        %v2872 = vsub.f32 %v2669, %v2804
        %v2873 = vsub.f32 %v2674, %v2807
        %v2874 = vsub.f32 %v2679, %v2810
        %v2875 = vsub.f32 %v2684, %v2813
        %v2876 = vsub.f32 %v2689, %v2816
        %v2877 = vsub.f32 %v2694, %v2819
        %v2878 = vsub.f32 %v2699, %v2822
        %v2879 = vsub.f32 %v2704, %v2825
        %v2880 = vsub.f32 %v2709, %v2828
        %v2881 = vsub.f32 %v2714, %v2831
        %v2882 = vsub.f32 %v2719, %v2834
        %v2883 = vsub.f32 %v2724, %v2837
        %v2884 = vsub.f32 %v2729, %v2840
        %v2885 = vsub.f32 %v2734, %v2843
        %v2886 = vsub.f32 %v2739, %v2846
        %v2887 = vsub.f32 %v2744, %v2849
        %v2888 = vsub.f32 %v2749, %v2852
        %v2889 = vsub.f32 %v2754, %v2855
        %v2890 = vsub.f32 %v2759, %v2858
        %v2891 = vmul.f32 %v2859, 1.442695
        %v2892 = vpow.pop %v2891
        %v2893 = vmul.f32 %v2860, 1.442695
        %v2894 = vpow.pop %v2893
        %v2895 = vmul.f32 %v2861, 1.442695
        %v2896 = vpow.pop %v2895
        %v2897 = vmul.f32 %v2862, 1.442695
        %v2898 = vpow.pop %v2897
        %v2899 = vmul.f32 %v2863, 1.442695
        %v2900 = vpow.pop %v2899
        %v2901 = vmul.f32 %v2864, 1.442695
        %v2902 = vpow.pop %v2901
        %v2903 = vmul.f32 %v2865, 1.442695
        %v2904 = vpow.pop %v2903
        %v2905 = vmul.f32 %v2866, 1.442695
        %v2906 = vpow.pop %v2905
        %v2907 = vmul.f32 %v2867, 1.442695
        %v2908 = vpow.pop %v2907
        %v2909 = vmul.f32 %v2868, 1.442695
        %v2910 = vpow.pop %v2909
        %v2911 = vmul.f32 %v2869, 1.442695
        %v2912 = vpow.pop %v2911
        %v2913 = vmul.f32 %v2870, 1.442695
        %v2914 = vpow.pop %v2913
        %v2915 = vmul.f32 %v2871, 1.442695
        %v2916 = vpow.pop %v2915
        %v2917 = vmul.f32 %v2872, 1.442695
        %v2918 = vpow.pop %v2917
        %v2919 = vmul.f32 %v2873, 1.442695
        %v2920 = vpow.pop %v2919
        %v2921 = vmul.f32 %v2874, 1.442695
        %v2922 = vpow.pop %v2921
        %v2923 = vmul.f32 %v2875, 1.442695
        %v2924 = vpow.pop %v2923
        %v2925 = vmul.f32 %v2876, 1.442695
        %v2926 = vpow.pop %v2925
        %v2927 = vmul.f32 %v2877, 1.442695
        %v2928 = vpow.pop %v2927
        %v2929 = vmul.f32 %v2878, 1.442695
        %v2930 = vpow.pop %v2929
        %v2931 = vmul.f32 %v2879, 1.442695
        %v2932 = vpow.pop %v2931
        %v2933 = vmul.f32 %v2880, 1.442695
        %v2934 = vpow.pop %v2933
        %v2935 = vmul.f32 %v2881, 1.442695
        %v2936 = vpow.pop %v2935
        %v2937 = vmul.f32 %v2882, 1.442695
        %v2938 = vpow.pop %v2937
        %v2939 = vmul.f32 %v2883, 1.442695
        %v2940 = vpow.pop %v2939
        %v2941 = vmul.f32 %v2884, 1.442695
        %v2942 = vpow.pop %v2941
        %v2943 = vmul.f32 %v2885, 1.442695
        %v2944 = vpow.pop %v2943
        %v2945 = vmul.f32 %v2886, 1.442695
        %v2946 = vpow.pop %v2945
        %v2947 = vmul.f32 %v2887, 1.442695
        %v2948 = vpow.pop %v2947
        %v2949 = vmul.f32 %v2888, 1.442695
        %v2950 = vpow.pop %v2949
        %v2951 = vmul.f32 %v2889, 1.442695
        %v2952 = vpow.pop %v2951
        %v2953 = vmul.f32 %v2890, 1.442695
        %v2954 = vpow.pop %v2953
        %v2955 = vsel %vm2762, %v2892, 0.0
        %2956 = vadd.xlane.f32.xlu0 %v2955
        %v2957 = vpop.xlane.xlu0 %2956
        %v2958 = vsel %vm2762, %v2894, 0.0
        %2959 = vadd.xlane.f32.xlu0 %v2958
        %v2960 = vpop.xlane.xlu0 %2959
        %v2961 = vsel %vm2762, %v2896, 0.0
        %2962 = vadd.xlane.f32.xlu0 %v2961
        %v2963 = vpop.xlane.xlu0 %2962
        %v2964 = vsel %vm2762, %v2898, 0.0
        %2965 = vadd.xlane.f32.xlu0 %v2964
        %v2966 = vpop.xlane.xlu0 %2965
        %v2967 = vsel %vm2762, %v2900, 0.0
        %2968 = vadd.xlane.f32.xlu0 %v2967
        %v2969 = vpop.xlane.xlu0 %2968
        %v2970 = vsel %vm2762, %v2902, 0.0
        %2971 = vadd.xlane.f32.xlu0 %v2970
        %v2972 = vpop.xlane.xlu0 %2971
        %v2973 = vsel %vm2762, %v2904, 0.0
        %2974 = vadd.xlane.f32.xlu0 %v2973
        %v2975 = vpop.xlane.xlu0 %2974
        %v2976 = vsel %vm2762, %v2906, 0.0
        %2977 = vadd.xlane.f32.xlu0 %v2976
        %v2978 = vpop.xlane.xlu0 %2977
        %v2979 = vsel %vm2762, %v2908, 0.0
        %2980 = vadd.xlane.f32.xlu0 %v2979
        %v2981 = vpop.xlane.xlu0 %2980
        %v2982 = vsel %vm2762, %v2910, 0.0
        %2983 = vadd.xlane.f32.xlu0 %v2982
        %v2984 = vpop.xlane.xlu0 %2983
        %v2985 = vsel %vm2762, %v2912, 0.0
        %2986 = vadd.xlane.f32.xlu0 %v2985
        %v2987 = vpop.xlane.xlu0 %2986
        %v2988 = vsel %vm2762, %v2914, 0.0
        %2989 = vadd.xlane.f32.xlu0 %v2988
        %v2990 = vpop.xlane.xlu0 %2989
        %v2991 = vsel %vm2762, %v2916, 0.0
        %2992 = vadd.xlane.f32.xlu0 %v2991
        %v2993 = vpop.xlane.xlu0 %2992
        %v2994 = vsel %vm2762, %v2918, 0.0
        %2995 = vadd.xlane.f32.xlu0 %v2994
        %v2996 = vpop.xlane.xlu0 %2995
        %v2997 = vsel %vm2762, %v2920, 0.0
        %2998 = vadd.xlane.f32.xlu0 %v2997
        %v2999 = vpop.xlane.xlu0 %2998
        %v3000 = vsel %vm2762, %v2922, 0.0
        %3001 = vadd.xlane.f32.xlu0 %v3000
        %v3002 = vpop.xlane.xlu0 %3001
        %v3003 = vsel %vm2762, %v2924, 0.0
        %3004 = vadd.xlane.f32.xlu0 %v3003
        %v3005 = vpop.xlane.xlu0 %3004
        %v3006 = vsel %vm2762, %v2926, 0.0
        %3007 = vadd.xlane.f32.xlu0 %v3006
        %v3008 = vpop.xlane.xlu0 %3007
        %v3009 = vsel %vm2762, %v2928, 0.0
        %3010 = vadd.xlane.f32.xlu0 %v3009
        %v3011 = vpop.xlane.xlu0 %3010
        %v3012 = vsel %vm2762, %v2930, 0.0
        %3013 = vadd.xlane.f32.xlu0 %v3012
        %v3014 = vpop.xlane.xlu0 %3013
        %v3015 = vsel %vm2762, %v2932, 0.0
        %3016 = vadd.xlane.f32.xlu0 %v3015
        %v3017 = vpop.xlane.xlu0 %3016
        %v3018 = vsel %vm2762, %v2934, 0.0
        %3019 = vadd.xlane.f32.xlu0 %v3018
        %v3020 = vpop.xlane.xlu0 %3019
        %v3021 = vsel %vm2762, %v2936, 0.0
        %3022 = vadd.xlane.f32.xlu0 %v3021
        %v3023 = vpop.xlane.xlu0 %3022
        %v3024 = vsel %vm2762, %v2938, 0.0
        %3025 = vadd.xlane.f32.xlu0 %v3024
        %v3026 = vpop.xlane.xlu0 %3025
        %v3027 = vsel %vm2762, %v2940, 0.0
        %3028 = vadd.xlane.f32.xlu0 %v3027
        %v3029 = vpop.xlane.xlu0 %3028
        %v3030 = vsel %vm2762, %v2942, 0.0
        %3031 = vadd.xlane.f32.xlu0 %v3030
        %v3032 = vpop.xlane.xlu0 %3031
        %v3033 = vsel %vm2762, %v2944, 0.0
        %3034 = vadd.xlane.f32.xlu0 %v3033
        %v3035 = vpop.xlane.xlu0 %3034
        %v3036 = vsel %vm2762, %v2946, 0.0
        %3037 = vadd.xlane.f32.xlu0 %v3036
        %v3038 = vpop.xlane.xlu0 %3037
        %v3039 = vsel %vm2762, %v2948, 0.0
        %3040 = vadd.xlane.f32.xlu0 %v3039
        %v3041 = vpop.xlane.xlu0 %3040
        %v3042 = vsel %vm2762, %v2950, 0.0
        %3043 = vadd.xlane.f32.xlu0 %v3042
        %v3044 = vpop.xlane.xlu0 %3043
        %v3045 = vsel %vm2762, %v2952, 0.0
        %3046 = vadd.xlane.f32.xlu0 %v3045
        %v3047 = vpop.xlane.xlu0 %3046
        %v3048 = vsel %vm2762, %v2954, 0.0
        %3049 = vadd.xlane.f32.xlu0 %v3048
        %v3050 = vpop.xlane.xlu0 %3049
        %v3051 = vrcp.pop %v2957
        %v3052 = vmul.f32 %v2892, %v3051
        %v3053 = vrcp.pop %v2960
        %v3054 = vmul.f32 %v2894, %v3053
        %v3055 = vrcp.pop %v2963
        %v3056 = vmul.f32 %v2896, %v3055
        %v3057 = vrcp.pop %v2966
        %v3058 = vmul.f32 %v2898, %v3057
        %v3059 = vrcp.pop %v2969
        %v3060 = vmul.f32 %v2900, %v3059
        %v3061 = vrcp.pop %v2972
        %v3062 = vmul.f32 %v2902, %v3061
        %v3063 = vrcp.pop %v2975
        %v3064 = vmul.f32 %v2904, %v3063
        %v3065 = vrcp.pop %v2978
        %v3066 = vmul.f32 %v2906, %v3065
        %v3067 = vrcp.pop %v2981
        %v3068 = vmul.f32 %v2908, %v3067
        %v3069 = vrcp.pop %v2984
        %v3070 = vmul.f32 %v2910, %v3069
        %v3071 = vrcp.pop %v2987
        %v3072 = vmul.f32 %v2912, %v3071
        %v3073 = vrcp.pop %v2990
        %v3074 = vmul.f32 %v2914, %v3073
        %v3075 = vrcp.pop %v2993
        %v3076 = vmul.f32 %v2916, %v3075
        %v3077 = vrcp.pop %v2996
        %v3078 = vmul.f32 %v2918, %v3077
        %v3079 = vrcp.pop %v2999
        %v3080 = vmul.f32 %v2920, %v3079
        %v3081 = vrcp.pop %v3002
        %v3082 = vmul.f32 %v2922, %v3081
        %v3083 = vrcp.pop %v3005
        %v3084 = vmul.f32 %v2924, %v3083
        %v3085 = vrcp.pop %v3008
        %v3086 = vmul.f32 %v2926, %v3085
        %v3087 = vrcp.pop %v3011
        %v3088 = vmul.f32 %v2928, %v3087
        %v3089 = vrcp.pop %v3014
        %v3090 = vmul.f32 %v2930, %v3089
        %v3091 = vrcp.pop %v3017
        %v3092 = vmul.f32 %v2932, %v3091
        %v3093 = vrcp.pop %v3020
        %v3094 = vmul.f32 %v2934, %v3093
        %v3095 = vrcp.pop %v3023
        %v3096 = vmul.f32 %v2936, %v3095
        %v3097 = vrcp.pop %v3026
        %v3098 = vmul.f32 %v2938, %v3097
        %v3099 = vrcp.pop %v3029
        %v3100 = vmul.f32 %v2940, %v3099
        %v3101 = vrcp.pop %v3032
        %v3102 = vmul.f32 %v2942, %v3101
        %v3103 = vrcp.pop %v3035
        %v3104 = vmul.f32 %v2944, %v3103
        %v3105 = vrcp.pop %v3038
        %v3106 = vmul.f32 %v2946, %v3105
        %v3107 = vrcp.pop %v3041
        %v3108 = vmul.f32 %v2948, %v3107
        %v3109 = vrcp.pop %v3044
        %v3110 = vmul.f32 %v2950, %v3109
        %v3111 = vrcp.pop %v3047
        %v3112 = vmul.f32 %v2952, %v3111
        %v3113 = vrcp.pop %v3050
        %v3114 = vmul.f32 %v2954, %v3113
        %v3115 = vld [vmem:[%s705] sm:$0x77]
        %v3117 = vcombine.high %v3115, %v3115
        %v3119 = vsel %vm2762, %v3052, 0
        %v3122 = vsel %vm2762, %v3054, 0
        %v3125 = vsel %vm2762, %v3056, 0
        %v3128 = vsel %vm2762, %v3058, 0
        %v3131 = vsel %vm2762, %v3060, 0
        %v3134 = vsel %vm2762, %v3062, 0
        %v3137 = vsel %vm2762, %v3064, 0
        %v3140 = vsel %vm2762, %v3066, 0
        %v3143 = vsel %vm2762, %v3068, 0
        %v3146 = vsel %vm2762, %v3070, 0
        %v3149 = vsel %vm2762, %v3072, 0
        %v3152 = vsel %vm2762, %v3074, 0
        %v3155 = vsel %vm2762, %v3076, 0
        %v3158 = vsel %vm2762, %v3078, 0
        %v3161 = vsel %vm2762, %v3080, 0
        %v3164 = vsel %vm2762, %v3082, 0
        %v3167 = vsel %vm2762, %v3084, 0
        %v3170 = vsel %vm2762, %v3086, 0
        %v3173 = vsel %vm2762, %v3088, 0
        %v3176 = vsel %vm2762, %v3090, 0
        %v3179 = vsel %vm2762, %v3092, 0
        %v3182 = vsel %vm2762, %v3094, 0
        %v3185 = vsel %vm2762, %v3096, 0
        %v3188 = vsel %vm2762, %v3098, 0
        %v3191 = vsel %vm2762, %v3100, 0
        %v3194 = vsel %vm2762, %v3102, 0
        %v3197 = vsel %vm2762, %v3104, 0
        %v3200 = vsel %vm2762, %v3106, 0
        %v3203 = vsel %vm2762, %v3108, 0
        %v3206 = vsel %vm2762, %v3110, 0
        %v3209 = vsel %vm2762, %v3112, 0
        %v3212 = vsel %vm2762, %v3114, 0
        %vm3214 = vcmask 1042432
        %v3215 = vsel %vm3214, %v3115, 0
        %v3217 = vsel %vm3214, %v3117, 0
        %3219 = vmatprep.subr.mxu0 %v3217
        %3220 = vmatpush1.msra.mxu0 %v3215
        %3221 = vmatprep.subr.mxu0 0.0
        %3222 = vmatpush1.msra.mxu0 0.0
        %3223 = vmatprep.subr.mxu0 0.0
        %3224 = vmatpush1.msra.mxu0 0.0
        %3225 = vmatprep.subr.mxu0 0.0
        %3226 = vmatpush1.msra.mxu0 0.0
        %3227 = vmatprep.subr.mxu0 0.0
        %3228 = vmatpush1.msra.mxu0 0.0
        %3229 = vmatprep.subr.mxu0 0.0
        %3230 = vmatpush1.msra.mxu0 0.0
        %3231 = vmatprep.subr.mxu0 0.0
        %3232 = vmatpush1.msra.mxu0 0.0
        %3233 = vmatprep.subr.mxu0 0.0
        %3234 = vmatpush1.msra.mxu0 0.0
        %3235 = vmatprep.subr.mxu0 0.0
        %3236 = vmatpush1.msra.mxu0 0.0
        %3237 = vmatprep.subr.mxu0 0.0
        %3238 = vmatpush1.msra.mxu0 0.0
        %3239 = vmatprep.subr.mxu0 0.0
        %3240 = vmatpush1.msra.mxu0 0.0
        %3241 = vmatprep.subr.mxu0 0.0
        %3242 = vmatpush1.msra.mxu0 0.0
        %3243 = vmatprep.subr.mxu0 0.0
        %3244 = vmatpush1.msra.mxu0 0.0
        %3245 = vmatprep.subr.mxu0 0.0
        %3246 = vmatpush1.msra.mxu0 0.0
        %3247 = vmatprep.subr.mxu0 0.0
        %3248 = vmatpush1.msra.mxu0 0.0
        %3249 = vmatprep.subr.mxu0 0.0
        %3250 = vmatpush1.msra.mxu0 0.0
        %3251 = vmatprep.subr.mxu0 0.0
        %3252 = vmatpush1.msra.mxu0 0.0
        %3253 = vmatprep.subr.mxu0 0.0
        %3254 = vmatpush1.msra.mxu0 0.0
        %3255 = vmatprep.subr.mxu0 0.0
        %3256 = vmatpush1.msra.mxu0 0.0
        %3257 = vmatprep.subr.mxu0 0.0
        %3258 = vmatpush1.msra.mxu0 0.0
        %3259 = vmatprep.subr.mxu0 0.0
        %3260 = vmatpush1.msra.mxu0 0.0
        %3261 = vmatprep.subr.mxu0 0.0
        %3262 = vmatpush1.msra.mxu0 0.0
        %3263 = vmatprep.subr.mxu0 0.0
        %3264 = vmatpush1.msra.mxu0 0.0
        %3265 = vmatprep.subr.mxu0 0.0
        %3266 = vmatpush1.msra.mxu0 0.0
        %3267 = vmatprep.subr.mxu0 0.0
        %3268 = vmatpush1.msra.mxu0 0.0
        %3269 = vmatprep.subr.mxu0 0.0
        %3270 = vmatpush1.msra.mxu0 0.0
        %3271 = vmatprep.subr.mxu0 0.0
        %3272 = vmatpush1.msra.mxu0 0.0
        %3273 = vmatprep.subr.mxu0 0.0
        %3274 = vmatpush1.msra.mxu0 0.0
        %3275 = vmatprep.subr.mxu0 0.0
        %3276 = vmatpush1.msra.mxu0 0.0
        %3277 = vmatprep.subr.mxu0 0.0
        %3278 = vmatpush1.msra.mxu0 0.0
        %3279 = vmatprep.subr.mxu0 0.0
        %3280 = vmatpush1.msra.mxu0 0.0
        %3281 = vmatprep.subr.mxu0 0.0
        %3282 = vmatpush1.msra.mxu0 0.0
        %3283 = vmatprep.mubr.f32.mxu0 0.0
        %3284 = vmatmul.mubr.f32.gmra.mrb[0].mxu0 %v3119
        %v3285 = vpop.f32.mrb[0].mxu0
        %v3286 = vadd.f32 0.0, %v3285
        %v3287 = vpop.f32.mrb[0].mxu0
        %v3288 = vadd.f32 0.0, %v3287
        %3289 = vmatprep.mubr.f32.mxu0 0.0
        %3290 = vmatmul.mubr.f32.gmra.mrb[0].mxu0 %v3122
        %v3291 = vpop.f32.mrb[0].mxu0
        %v3292 = vadd.f32 0.0, %v3291
        %v3293 = vpop.f32.mrb[0].mxu0
        %v3294 = vadd.f32 0.0, %v3293
        %3295 = vmatprep.mubr.f32.mxu0 0.0
        %3296 = vmatmul.mubr.f32.gmra.mrb[0].mxu0 %v3125
        %v3297 = vpop.f32.mrb[0].mxu0
        %v3298 = vadd.f32 0.0, %v3297
        %v3299 = vpop.f32.mrb[0].mxu0
        %v3300 = vadd.f32 0.0, %v3299
        %3301 = vmatprep.mubr.f32.mxu0 0.0
        %3302 = vmatmul.mubr.f32.gmra.mrb[0].mxu0 %v3128
        %v3303 = vpop.f32.mrb[0].mxu0
        %v3304 = vadd.f32 0.0, %v3303
        %v3305 = vpop.f32.mrb[0].mxu0
        %v3306 = vadd.f32 0.0, %v3305
        %3307 = vmatprep.mubr.f32.mxu0 0.0
        %3308 = vmatmul.mubr.f32.gmra.mrb[0].mxu0 %v3131
        %v3309 = vpop.f32.mrb[0].mxu0
        %v3310 = vadd.f32 0.0, %v3309
        %v3311 = vpop.f32.mrb[0].mxu0
        %v3312 = vadd.f32 0.0, %v3311
        %3313 = vmatprep.mubr.f32.mxu0 0.0
        %3314 = vmatmul.mubr.f32.gmra.mrb[0].mxu0 %v3134
        %v3315 = vpop.f32.mrb[0].mxu0
        %v3316 = vadd.f32 0.0, %v3315
        %v3317 = vpop.f32.mrb[0].mxu0
        %v3318 = vadd.f32 0.0, %v3317
        %3319 = vmatprep.mubr.f32.mxu0 0.0
        %3320 = vmatmul.mubr.f32.gmra.mrb[0].mxu0 %v3137
        %v3321 = vpop.f32.mrb[0].mxu0
        %v3322 = vadd.f32 0.0, %v3321
        %v3323 = vpop.f32.mrb[0].mxu0
        %v3324 = vadd.f32 0.0, %v3323
        %3325 = vmatprep.mubr.f32.mxu0 0.0
        %3326 = vmatmul.mubr.f32.gmra.mrb[0].mxu0 %v3140
        %v3327 = vpop.f32.mrb[0].mxu0
        %v3328 = vadd.f32 0.0, %v3327
        %v3329 = vpop.f32.mrb[0].mxu0
        %v3330 = vadd.f32 0.0, %v3329
        %3331 = vmatprep.mubr.f32.mxu0 0.0
        %3332 = vmatmul.mubr.f32.gmra.mrb[0].mxu0 %v3143
        %v3333 = vpop.f32.mrb[0].mxu0
        %v3334 = vadd.f32 0.0, %v3333
        %v3335 = vpop.f32.mrb[0].mxu0
        %v3336 = vadd.f32 0.0, %v3335
        %3337 = vmatprep.mubr.f32.mxu0 0.0
        %3338 = vmatmul.mubr.f32.gmra.mrb[0].mxu0 %v3146
        %v3339 = vpop.f32.mrb[0].mxu0
        %v3340 = vadd.f32 0.0, %v3339
        %v3341 = vpop.f32.mrb[0].mxu0
        %v3342 = vadd.f32 0.0, %v3341
        %3343 = vmatprep.mubr.f32.mxu0 0.0
        %3344 = vmatmul.mubr.f32.gmra.mrb[0].mxu0 %v3149
        %v3345 = vpop.f32.mrb[0].mxu0
        %v3346 = vadd.f32 0.0, %v3345
        %v3347 = vpop.f32.mrb[0].mxu0
        %v3348 = vadd.f32 0.0, %v3347
        %3349 = vmatprep.mubr.f32.mxu0 0.0
        %3350 = vmatmul.mubr.f32.gmra.mrb[0].mxu0 %v3152
        %v3351 = vpop.f32.mrb[0].mxu0
        %v3352 = vadd.f32 0.0, %v3351
        %v3353 = vpop.f32.mrb[0].mxu0
        %v3354 = vadd.f32 0.0, %v3353
        %3355 = vmatprep.mubr.f32.mxu0 0.0
        %3356 = vmatmul.mubr.f32.gmra.mrb[0].mxu0 %v3155
        %v3357 = vpop.f32.mrb[0].mxu0
        %v3358 = vadd.f32 0.0, %v3357
        %v3359 = vpop.f32.mrb[0].mxu0
        %v3360 = vadd.f32 0.0, %v3359
        %3361 = vmatprep.mubr.f32.mxu0 0.0
        %3362 = vmatmul.mubr.f32.gmra.mrb[0].mxu0 %v3158
        %v3363 = vpop.f32.mrb[0].mxu0
        %v3364 = vadd.f32 0.0, %v3363
        %v3365 = vpop.f32.mrb[0].mxu0
        %v3366 = vadd.f32 0.0, %v3365
        %3367 = vmatprep.mubr.f32.mxu0 0.0
        %3368 = vmatmul.mubr.f32.gmra.mrb[0].mxu0 %v3161
        %v3369 = vpop.f32.mrb[0].mxu0
        %v3370 = vadd.f32 0.0, %v3369
        %v3371 = vpop.f32.mrb[0].mxu0
        %v3372 = vadd.f32 0.0, %v3371
        %3373 = vmatprep.mubr.f32.mxu0 0.0
        %3374 = vmatmul.mubr.f32.gmra.mrb[0].mxu0 %v3164
        %v3375 = vpop.f32.mrb[0].mxu0
        %v3376 = vadd.f32 0.0, %v3375
        %v3377 = vpop.f32.mrb[0].mxu0
        %v3378 = vadd.f32 0.0, %v3377
        %3379 = vmatprep.mubr.f32.mxu0 0.0
        %3380 = vmatmul.mubr.f32.gmra.mrb[0].mxu0 %v3167
        %v3381 = vpop.f32.mrb[0].mxu0
        %v3382 = vadd.f32 0.0, %v3381
        %v3383 = vpop.f32.mrb[0].mxu0
        %v3384 = vadd.f32 0.0, %v3383
        %3385 = vmatprep.mubr.f32.mxu0 0.0
        %3386 = vmatmul.mubr.f32.gmra.mrb[0].mxu0 %v3170
        %v3387 = vpop.f32.mrb[0].mxu0
        %v3388 = vadd.f32 0.0, %v3387
        %v3389 = vpop.f32.mrb[0].mxu0
        %v3390 = vadd.f32 0.0, %v3389
        %3391 = vmatprep.mubr.f32.mxu0 0.0
        %3392 = vmatmul.mubr.f32.gmra.mrb[0].mxu0 %v3173
        %v3393 = vpop.f32.mrb[0].mxu0
        %v3394 = vadd.f32 0.0, %v3393
        %v3395 = vpop.f32.mrb[0].mxu0
        %v3396 = vadd.f32 0.0, %v3395
        %3397 = vmatprep.mubr.f32.mxu0 0.0
        %3398 = vmatmul.mubr.f32.gmra.mrb[0].mxu0 %v3176
        %v3399 = vpop.f32.mrb[0].mxu0
        %v3400 = vadd.f32 0.0, %v3399
        %v3401 = vpop.f32.mrb[0].mxu0
        %v3402 = vadd.f32 0.0, %v3401
        %3403 = vmatprep.mubr.f32.mxu0 0.0
        %3404 = vmatmul.mubr.f32.gmra.mrb[0].mxu0 %v3179
        %v3405 = vpop.f32.mrb[0].mxu0
        %v3406 = vadd.f32 0.0, %v3405
        %v3407 = vpop.f32.mrb[0].mxu0
        %v3408 = vadd.f32 0.0, %v3407
        %3409 = vmatprep.mubr.f32.mxu0 0.0
        %3410 = vmatmul.mubr.f32.gmra.mrb[0].mxu0 %v3182
        %v3411 = vpop.f32.mrb[0].mxu0
        %v3412 = vadd.f32 0.0, %v3411
        %v3413 = vpop.f32.mrb[0].mxu0
        %v3414 = vadd.f32 0.0, %v3413
        %3415 = vmatprep.mubr.f32.mxu0 0.0
        %3416 = vmatmul.mubr.f32.gmra.mrb[0].mxu0 %v3185
        %v3417 = vpop.f32.mrb[0].mxu0
        %v3418 = vadd.f32 0.0, %v3417
        %v3419 = vpop.f32.mrb[0].mxu0
        %v3420 = vadd.f32 0.0, %v3419
        %3421 = vmatprep.mubr.f32.mxu0 0.0
        %3422 = vmatmul.mubr.f32.gmra.mrb[0].mxu0 %v3188
        %v3423 = vpop.f32.mrb[0].mxu0
        %v3424 = vadd.f32 0.0, %v3423
        %v3425 = vpop.f32.mrb[0].mxu0
        %v3426 = vadd.f32 0.0, %v3425
        %3427 = vmatprep.mubr.f32.mxu0 0.0
        %3428 = vmatmul.mubr.f32.gmra.mrb[0].mxu0 %v3191
        %v3429 = vpop.f32.mrb[0].mxu0
        %v3430 = vadd.f32 0.0, %v3429
        %v3431 = vpop.f32.mrb[0].mxu0
        %v3432 = vadd.f32 0.0, %v3431
        %3433 = vmatprep.mubr.f32.mxu0 0.0
        %3434 = vmatmul.mubr.f32.gmra.mrb[0].mxu0 %v3194
        %v3435 = vpop.f32.mrb[0].mxu0
        %v3436 = vadd.f32 0.0, %v3435
        %v3437 = vpop.f32.mrb[0].mxu0
        %v3438 = vadd.f32 0.0, %v3437
        %3439 = vmatprep.mubr.f32.mxu0 0.0
        %3440 = vmatmul.mubr.f32.gmra.mrb[0].mxu0 %v3197
        %v3441 = vpop.f32.mrb[0].mxu0
        %v3442 = vadd.f32 0.0, %v3441
        %v3443 = vpop.f32.mrb[0].mxu0
        %v3444 = vadd.f32 0.0, %v3443
        %3445 = vmatprep.mubr.f32.mxu0 0.0
        %3446 = vmatmul.mubr.f32.gmra.mrb[0].mxu0 %v3200
        %v3447 = vpop.f32.mrb[0].mxu0
        %v3448 = vadd.f32 0.0, %v3447
        %v3449 = vpop.f32.mrb[0].mxu0
        %v3450 = vadd.f32 0.0, %v3449
        %3451 = vmatprep.mubr.f32.mxu0 0.0
        %3452 = vmatmul.mubr.f32.gmra.mrb[0].mxu0 %v3203
        %v3453 = vpop.f32.mrb[0].mxu0
        %v3454 = vadd.f32 0.0, %v3453
        %v3455 = vpop.f32.mrb[0].mxu0
        %v3456 = vadd.f32 0.0, %v3455
        %3457 = vmatprep.mubr.f32.mxu0 0.0
        %3458 = vmatmul.mubr.f32.gmra.mrb[0].mxu0 %v3206
        %v3459 = vpop.f32.mrb[0].mxu0
        %v3460 = vadd.f32 0.0, %v3459
        %v3461 = vpop.f32.mrb[0].mxu0
        %v3462 = vadd.f32 0.0, %v3461
        %3463 = vmatprep.mubr.f32.mxu0 0.0
        %3464 = vmatmul.mubr.f32.gmra.mrb[0].mxu0 %v3209
        %v3465 = vpop.f32.mrb[0].mxu0
        %v3466 = vadd.f32 0.0, %v3465
        %v3467 = vpop.f32.mrb[0].mxu0
        %v3468 = vadd.f32 0.0, %v3467
        %3469 = vmatprep.mubr.f32.mxu0 0.0
        %3470 = vmatmul.mubr.f32.gmra.mrb[0].mxu0 %v3212
        %v3471 = vpop.f32.mrb[0].mxu0
        %v3472 = vadd.f32 0.0, %v3471
        %v3473 = vpop.f32.mrb[0].mxu0
        %v3474 = vadd.f32 0.0, %v3473
        %3475 = vdwg.mxu0
        %v3476 = vmul.f32 %v1987, %v3286
        %v3477 = vmul.f32 %v1827, %v3288
        %v3478 = vmul.f32 %v1988, %v3292
        %v3479 = vmul.f32 %v1828, %v3294
        %v3480 = vmul.f32 %v1989, %v3298
        %v3481 = vmul.f32 %v1829, %v3300
        %v3482 = vmul.f32 %v1990, %v3304
        %v3483 = vmul.f32 %v1830, %v3306
        %v3484 = vmul.f32 %v1991, %v3310
        %v3485 = vmul.f32 %v1831, %v3312
        %v3486 = vmul.f32 %v1992, %v3316
        %v3487 = vmul.f32 %v1832, %v3318
        %v3488 = vmul.f32 %v1993, %v3322
        %v3489 = vmul.f32 %v1833, %v3324
        %v3490 = vmul.f32 %v1994, %v3328
        %v3491 = vmul.f32 %v1834, %v3330
        %v3492 = vmul.f32 %v1995, %v3334
        %v3493 = vmul.f32 %v1835, %v3336
        %v3494 = vmul.f32 %v1996, %v3340
        %v3495 = vmul.f32 %v1836, %v3342
        %v3496 = vmul.f32 %v1997, %v3346
        %v3497 = vmul.f32 %v1837, %v3348
        %v3498 = vmul.f32 %v1998, %v3352
        %v3499 = vmul.f32 %v1838, %v3354
        %v3500 = vmul.f32 %v1999, %v3358
        %v3501 = vmul.f32 %v1839, %v3360
        %v3502 = vmul.f32 %v2000, %v3364
        %v3503 = vmul.f32 %v1840, %v3366
        %v3504 = vmul.f32 %v2001, %v3370
        %v3505 = vmul.f32 %v1841, %v3372
        %v3506 = vmul.f32 %v2002, %v3376
        %v3507 = vmul.f32 %v1842, %v3378
        %v3508 = vmul.f32 %v2003, %v3382
        %v3509 = vmul.f32 %v1843, %v3384
        %v3510 = vmul.f32 %v2004, %v3388
        %v3511 = vmul.f32 %v1844, %v3390
        %v3512 = vmul.f32 %v2005, %v3394
        %v3513 = vmul.f32 %v1845, %v3396
        %v3514 = vmul.f32 %v2006, %v3400
        %v3515 = vmul.f32 %v1846, %v3402
        %v3516 = vmul.f32 %v2007, %v3406
        %v3517 = vmul.f32 %v1847, %v3408
        %v3518 = vmul.f32 %v2008, %v3412
        %v3519 = vmul.f32 %v1848, %v3414
        %v3520 = vmul.f32 %v2009, %v3418
        %v3521 = vmul.f32 %v1849, %v3420
        %v3522 = vmul.f32 %v2010, %v3424
        %v3523 = vmul.f32 %v1850, %v3426
        %v3524 = vmul.f32 %v2011, %v3430
        %v3525 = vmul.f32 %v1851, %v3432
        %v3526 = vmul.f32 %v2012, %v3436
        %v3527 = vmul.f32 %v1852, %v3438
        %v3528 = vmul.f32 %v2013, %v3442
        %v3529 = vmul.f32 %v1853, %v3444
        %v3530 = vmul.f32 %v2014, %v3448
        %v3531 = vmul.f32 %v1854, %v3450
        %v3532 = vmul.f32 %v2015, %v3454
        %v3533 = vmul.f32 %v1855, %v3456
        %v3534 = vmul.f32 %v2016, %v3460
        %v3535 = vmul.f32 %v1856, %v3462
        %v3536 = vmul.f32 %v2017, %v3466
        %v3537 = vmul.f32 %v1857, %v3468
        %v3538 = vmul.f32 %v2018, %v3472
        %v3539 = vmul.f32 %v1858, %v3474
        %3540 = vst [vmem:[%s764] sm:$0xff] %v3476
        %3541 = vst.msk [vmem:[%s764 + $0x8] sm:$0xff] %vm1585, %v3477
        %3542 = vst [vmem:[%s764 + $0x10] sm:$0xff] %v3478
        %3543 = vst.msk [vmem:[%s764 + $0x18] sm:$0xff] %vm1585, %v3479
        %3544 = vst [vmem:[%s764 + $0x20] sm:$0xff] %v3480
        %3545 = vst.msk [vmem:[%s764 + $0x28] sm:$0xff] %vm1585, %v3481
        %3546 = vst [vmem:[%s764 + $0x30] sm:$0xff] %v3482
        %3547 = vst.msk [vmem:[%s764 + $0x38] sm:$0xff] %vm1585, %v3483
        %3548 = vst [vmem:[%s764 + $0x40] sm:$0xff] %v3484
        %3549 = vst.msk [vmem:[%s764 + $0x48] sm:$0xff] %vm1585, %v3485
        %3550 = vst [vmem:[%s764 + $0x50] sm:$0xff] %v3486
        %3551 = vst.msk [vmem:[%s764 + $0x58] sm:$0xff] %vm1585, %v3487
        %3552 = vst [vmem:[%s764 + $0x60] sm:$0xff] %v3488
        %3553 = vst.msk [vmem:[%s764 + $0x68] sm:$0xff] %vm1585, %v3489
        %3554 = vst [vmem:[%s764 + $0x70] sm:$0xff] %v3490
        %3555 = vst.msk [vmem:[%s764 + $0x78] sm:$0xff] %vm1585, %v3491
        %3556 = vst [vmem:[%s764 + $0x80] sm:$0xff] %v3492
        %3557 = vst.msk [vmem:[%s764 + $0x88] sm:$0xff] %vm1585, %v3493
        %3558 = vst [vmem:[%s764 + $0x90] sm:$0xff] %v3494
        %3559 = vst.msk [vmem:[%s764 + $0x98] sm:$0xff] %vm1585, %v3495
        %3560 = vst [vmem:[%s764 + $0xa0] sm:$0xff] %v3496
        %3561 = vst.msk [vmem:[%s764 + $0xa8] sm:$0xff] %vm1585, %v3497
        %3562 = vst [vmem:[%s764 + $0xb0] sm:$0xff] %v3498
        %3563 = vst.msk [vmem:[%s764 + $0xb8] sm:$0xff] %vm1585, %v3499
        %3564 = vst [vmem:[%s764 + $0xc0] sm:$0xff] %v3500
        %3565 = vst.msk [vmem:[%s764 + $0xc8] sm:$0xff] %vm1585, %v3501
        %3566 = vst [vmem:[%s764 + $0xd0] sm:$0xff] %v3502
        %3567 = vst.msk [vmem:[%s764 + $0xd8] sm:$0xff] %vm1585, %v3503
        %3568 = vst [vmem:[%s764 + $0xe0] sm:$0xff] %v3504
        %3569 = vst.msk [vmem:[%s764 + $0xe8] sm:$0xff] %vm1585, %v3505
        %3570 = vst [vmem:[%s764 + $0xf0] sm:$0xff] %v3506
        %3571 = vst.msk [vmem:[%s764 + $0xf8] sm:$0xff] %vm1585, %v3507
        %3572 = vst [vmem:[%s764 + $0x100] sm:$0xff] %v3508
        %3573 = vst.msk [vmem:[%s764 + $0x108] sm:$0xff] %vm1585, %v3509
        %3574 = vst [vmem:[%s764 + $0x110] sm:$0xff] %v3510
        %3575 = vst.msk [vmem:[%s764 + $0x118] sm:$0xff] %vm1585, %v3511
        %3576 = vst [vmem:[%s764 + $0x120] sm:$0xff] %v3512
        %3577 = vst.msk [vmem:[%s764 + $0x128] sm:$0xff] %vm1585, %v3513
        %3578 = vst [vmem:[%s764 + $0x130] sm:$0xff] %v3514
        %3579 = vst.msk [vmem:[%s764 + $0x138] sm:$0xff] %vm1585, %v3515
        %3580 = vst [vmem:[%s764 + $0x140] sm:$0xff] %v3516
        %3581 = vst.msk [vmem:[%s764 + $0x148] sm:$0xff] %vm1585, %v3517
        %3582 = vst [vmem:[%s764 + $0x150] sm:$0xff] %v3518
        %3583 = vst.msk [vmem:[%s764 + $0x158] sm:$0xff] %vm1585, %v3519
        %3584 = vst [vmem:[%s764 + $0x160] sm:$0xff] %v3520
        %3585 = vst.msk [vmem:[%s764 + $0x168] sm:$0xff] %vm1585, %v3521
        %3586 = vst [vmem:[%s764 + $0x170] sm:$0xff] %v3522
        %3587 = vst.msk [vmem:[%s764 + $0x178] sm:$0xff] %vm1585, %v3523
        %3588 = vst [vmem:[%s764 + $0x180] sm:$0xff] %v3524
        %3589 = vst.msk [vmem:[%s764 + $0x188] sm:$0xff] %vm1585, %v3525
        %3590 = vst [vmem:[%s764 + $0x190] sm:$0xff] %v3526
        %3591 = vst.msk [vmem:[%s764 + $0x198] sm:$0xff] %vm1585, %v3527
        %3592 = vst [vmem:[%s764 + $0x1a0] sm:$0xff] %v3528
        %3593 = vst.msk [vmem:[%s764 + $0x1a8] sm:$0xff] %vm1585, %v3529
        %3594 = vst [vmem:[%s764 + $0x1b0] sm:$0xff] %v3530
        %3595 = vst.msk [vmem:[%s764 + $0x1b8] sm:$0xff] %vm1585, %v3531
        %3596 = vst [vmem:[%s764 + $0x1c0] sm:$0xff] %v3532
        %3597 = vst.msk [vmem:[%s764 + $0x1c8] sm:$0xff] %vm1585, %v3533
        %3598 = vst [vmem:[%s764 + $0x1d0] sm:$0xff] %v3534
        %3599 = vst.msk [vmem:[%s764 + $0x1d8] sm:$0xff] %vm1585, %v3535
        %3600 = vst [vmem:[%s764 + $0x1e0] sm:$0xff] %v3536
        %3601 = vst.msk [vmem:[%s764 + $0x1e8] sm:$0xff] %vm1585, %v3537
        %3602 = vst [vmem:[%s764 + $0x1f0] sm:$0xff] %v3538
        %3603 = vst.msk [vmem:[%s764 + $0x1f8] sm:$0xff] %vm1585, %v3539
        %s3604 = sand.u32 %s384, 1
        %s3605 = scalar_lea.sflag [#allocation4], %s3604
        %s3606 = sand.u32 %s384, 1
        %s3607 = smul.addr %s3606, 512
        %s3608 = scalar_lea.vmem [#allocation25], %s3607
        // Predicated region
        $region133: #{asff_level2_forward.1} parent=75 // pred_check
          %p3609 = pneg %p394
        $region134: #{asff_level2_forward.1} parent=75 // pred_check_branch
          %3611 = sbr.rel (%p3609) target = $region136
        $region135: #{asff_level2_forward.1} parent=75 // pred_region
          %s3612 = smul.u32 32, %s47
          %s3614 = ssub.s32 8192, 8192
          %3615 = vsyncadd %s3605, %s3614
          %s3616 = smul.addr %s3612, 2
          %s3617 = smul.addr %s46, 64
          %s3618 = sadd.s32 %s3616, %s3617
          %s3619 = smul.addr %s3618, 128
          %s3620 = scalar_lea.hbm %s14, %s3619
          %s3621 = sshll.u32 %s3608, 4
          %s3622 = int_to_ptr.vmem [resolvable:$true] %s3621
          %3627 = dma.vmem_to_hbm [thread:$0]  %s3622, 8192, %s3620, %s3605, 256, 256, 16
        $region136: #{asff_level2_forward.1} parent=75 // pred_fallthru
          _
      $region76: #{asff_level2_forward.1} parent=5 // pred_fallthru
        _
      %p3628 = scmp.le.s32.totalorder 2, %s37
      // Predicated region
      $region137: #{asff_level2_forward.1} parent=5 // pred_check
        %p3629 = pneg %p3628
      $region138: #{asff_level2_forward.1} parent=5 // pred_check_branch
        %3631 = sbr.rel (%p3629) target = $region140
      $region139: #{asff_level2_forward.1} parent=5 // pred_region
        %s3632 = ssub.s32 %s37, 2
        // Predicated region
        $region141: #{asff_level2_forward.1} parent=139 // pred_check
          %p3633 = pneg %p400
        $region142: #{asff_level2_forward.1} parent=139 // pred_check_branch
          %3635 = sbr.rel (%p3633) target = $region144
        $region143: #{asff_level2_forward.1} parent=139 // pred_region
          %s3636 = sand.u32 %s385, 1
          %s3637 = scalar_lea.sflag [#allocation4], %s3636
          %s3638 = sand.u32 %s385, 1
          %s3639 = smul.addr %s3638, 512
          %s3640 = scalar_lea.vmem [#allocation25], %s3639
          %3641 = dma.done %s3637, 8192
        $region144: #{asff_level2_forward.1} parent=139 // pred_fallthru
          _
      $region140: #{asff_level2_forward.1} parent=5 // pred_fallthru
        _
    $region6: #{asff_level2_forward.1} parent=1 // loop_footer
      %s41 = sadd.s32 1, %s37
    $region7: #{asff_level2_forward.1} parent=1 // loop_footer_branch
      %36 = sbr.rel target = $region3
    $region8: #{asff_level2_forward.1} parent=1 // loop_exit
      _
    %3642 = vsyncpa [#allocation3], 1
    %s3643 = scalar_lea.sflag [#allocation3], 1
    %3644 = vsyncpa %s3643, 1
    %3645 = vsyncpa [#allocation6], 1
    %s3646 = scalar_lea.sflag [#allocation6], 1
    %3647 = vsyncpa %s3646, 1
    %3648 = vsyncpa [#allocation9], 1
    %3649 = vsyncpa [#allocation12], 1
    %3650 = vsyncpa [#allocation15], 1
    %3651 = vsyncpa [#allocation18], 1
    %3652 = vsyncpa [#allocation21], 1
    %3653 = vsyncpa [#allocation24], 1
    %s3654 = scalar_lea.sflag [#allocation24], 1
    %3655 = vsyncpa %s3654, 1
    %3656 = vsyncpa [#allocation4], 1
    %s3657 = scalar_lea.sflag [#allocation4], 1
    %3658 = vsyncpa %s3657, 1

</llo_original>
